<compile_context>
chip_gen: v6e
topology: v6e:2x2x1
jax: 0.10.0
libtpu: 0.0.40
codegen_flags: <defaults>
</compile_context>

<pallas_src>
import functools

import jax
import jax.numpy as jnp
from jax import lax
from jax.experimental import pallas as pl
from jax.experimental.pallas import tpu as pltpu

LANE = 128


def _round_up(x, m):
    return (x + m - 1) // m * m


def _char_rnn_kernel(tok_ref,        # SMEM scalar prefetch: [Tp*B] int32 token ids
                     xw_ref,         # [V, 1, H] f32 : embedding @ W_x + b_u (VMEM-resident)
                     wh_ref,         # [H, H]   f32 : recurrent weight (VMEM-resident)
                     wl_ref,         # [H, Vp]  bf16: logits weight, lane-padded (VMEM-resident)
                     bl_ref,         # [1, Vp]  f32 : logits bias, lane-padded
                     h0_ref,         # [B, H]   f32 : initial hidden state
                     h_seq_ref,      # out block [Tt, B, H]  f32
                     logits_ref,     # out block [Tt, B, Vp] bf16
                     h_carry,        # VMEM scratch [B, H] f32 : hidden carry across blocks
                     x_rows,         # VMEM scratch [B, H] f32 : gathered x-path rows
                     *, tt, batch, unroll):
    tb = pl.program_id(0)

    @pl.when(tb == 0)
    def _():
        h_carry[...] = h0_ref[...]

    def step(i, h_prev):
        t = tb * tt + i
        # In-kernel embedding/x-path gather: xw[tok] = emb[tok] @ W_x + b_u.
        for b in range(batch):
            tok = tok_ref[t * batch + b]                 # scalar read from SMEM
            x_rows[pl.ds(b, 1), :] = xw_ref[tok]         # [1, H] dynamic row load
        # h_next = tanh(x_path + h_prev @ W_h)   (f32 recurrence, no drift compounding)
        acc = x_rows[...] + jnp.dot(h_prev, wh_ref[...],
                                    preferred_element_type=jnp.float32)
        h_next = jnp.tanh(acc)
        h_seq_ref[i] = h_next
        # logits = h_next @ W_l + b_l   (lane-dense padded V, bf16 writeback)
        logits = jnp.dot(h_next.astype(wl_ref.dtype), wl_ref[...],
                         preferred_element_type=jnp.float32) + bl_ref[...]
        logits_ref[i] = logits.astype(logits_ref.dtype)
        return h_next

    h_last = lax.fori_loop(0, tt, step, h_carry[...], unroll=unroll)
    h_carry[...] = h_last


def init_params(key, num_tokens, embedding_size=64, rnn_num_units=128):
    """Deterministic synthetic parameters in PyTorch layout (out, in)."""
    k1, k2, k3, k4, k5 = jax.random.split(key, 5)
    in_u = embedding_size + rnn_num_units
    return {
        "embedding": jax.random.normal(k1, (num_tokens, embedding_size), jnp.float32),
        "w_update": jax.random.normal(k2, (rnn_num_units, in_u), jnp.float32) * 0.05,
        "b_update": jax.random.normal(k3, (rnn_num_units,), jnp.float32) * 0.05,
        "w_logits": jax.random.normal(k4, (num_tokens, rnn_num_units), jnp.float32) * 0.05,
        "b_logits": jax.random.normal(k5, (num_tokens,), jnp.float32) * 0.05,
    }


def prepare_params(params, logits_dtype=jnp.bfloat16):
    """One-time layout prep:
      * fold embedding @ W_x + b_u into a [V,1,H] f32 table (kills one dot + the gather),
      * keep W_h in f32 (recurrent fidelity), transpose once,
      * transpose + lane-pad W_logits to [H, Vp] bf16."""
    emb = params["embedding"].astype(jnp.float32)     # [V, E]
    w_u = params["w_update"].astype(jnp.float32)      # [H, E+H]  (PyTorch: out, in)
    b_u = params["b_update"].astype(jnp.float32)      # [H]
    w_l = params["w_logits"]                          # [V, H]
    b_l = params["b_logits"]                          # [V]

    V, E = emb.shape
    H = w_u.shape[0]
    Vp = _round_up(V, LANE)

    w_x = w_u[:, :E].T                                # [E, H]
    w_h = w_u[:, E:].T                                # [H, H]
    xw = (emb @ w_x + b_u[None, :]).reshape(V, 1, H)  # [V, 1, H] f32

    w_lp = jnp.zeros((H, Vp), logits_dtype).at[:, :V].set(w_l.T.astype(logits_dtype))
    b_lp = jnp.zeros((1, Vp), jnp.float32).at[:, :V].set(b_l.astype(jnp.float32))

    return {
        "xw": xw,
        "w_h": w_h,
        "w_l": w_lp,
        "b_l": b_lp,
        "num_tokens": V,
        "embedding_size": E,
        "rnn_num_units": H,
    }


def char_rnn_sequence(tokens, h0, prep, time_block=None):
    """Fused forward over a full sequence.

    tokens: [T, B] int32, h0: [B, H] f32.
    Returns (h_seq [T, B, H], logits [T, B, V]) — per-step semantics identical to
    CharRNNCell.forward applied T times.
    """
    T, B = tokens.shape
    V = prep["num_tokens"]
    H = prep["rnn_num_units"]
    Vp = prep["w_l"].shape[1]

    Tt = time_block if time_block is not None else min(T, 32)   # timesteps per grid step
    Tp = _round_up(T, Tt)
    n_blocks = Tp // Tt
    unroll = min(Tt, 8)

    tok = tokens.astype(jnp.int32)
    if Tp != T:
        tok = jnp.concatenate([tok, jnp.zeros((Tp - T, B), jnp.int32)], axis=0)
    tok_flat = tok.reshape(-1)                                  # flat -> compact SMEM pad

    kernel = functools.partial(_char_rnn_kernel, tt=Tt, batch=B, unroll=unroll)

    grid_spec = pltpu.PrefetchScalarGridSpec(
        num_scalar_prefetch=1,                                  # tokens -> SMEM
        grid=(n_blocks,),
        in_specs=[
            pl.BlockSpec((V, 1, H), lambda tb, *_: (0, 0, 0)),  # xw table (VMEM-resident)
            pl.BlockSpec((H, H), lambda tb, *_: (0, 0)),        # W_h
            pl.BlockSpec((H, Vp), lambda tb, *_: (0, 0)),       # W_l
            pl.BlockSpec((1, Vp), lambda tb, *_: (0, 0)),       # b_l
            pl.BlockSpec((B, H), lambda tb, *_: (0, 0)),        # h0 (used at block 0)
        ],
        out_specs=(
            pl.BlockSpec((Tt, B, H), lambda tb, *_: (tb, 0, 0)),   # h_seq block
            pl.BlockSpec((Tt, B, Vp), lambda tb, *_: (tb, 0, 0)),  # logits block (lane-dense)
        ),
        scratch_shapes=[
            pltpu.VMEM((B, H), jnp.float32),   # hidden-state carry across time blocks
            pltpu.VMEM((B, H), jnp.float32),   # gathered x-path rows
        ],
    )

    h_seq, logits_p = pl.pallas_call(
        kernel,
        out_shape=(
            jax.ShapeDtypeStruct((Tp, B, H), jnp.float32),
            jax.ShapeDtypeStruct((Tp, B, Vp), jnp.bfloat16),
        ),
        grid_spec=grid_spec,
        compiler_params=pltpu.CompilerParams(
            dimension_semantics=("arbitrary",),        # recurrent in time
        ),
    )(tok_flat, prep["xw"], prep["w_h"], prep["w_l"], prep["b_l"], h0)

    return h_seq[:T], logits_p[:T, :, :V].astype(jnp.float32)


def char_rnn_cell(x_tokens, h_prev, prep):
    """Single-step forward matching CharRNNCell.forward(x, h_prev) exactly."""
    h_seq, logits = char_rnn_sequence(x_tokens[None, :], h_prev, prep)
    return h_seq[0], logits[0]


def reference_sequence(tokens, h0, params):
    """Pure-JAX f32 reference mirroring the PyTorch forward, scanned over time."""
    def step(h, x_t):
        x_emb = jnp.take(params["embedding"], x_t, axis=0)
        xh = jnp.concatenate([x_emb, h], axis=-1)
        h_next = jnp.tanh(xh @ params["w_update"].T + params["b_update"])
        logits = h_next @ params["w_logits"].T + params["b_logits"]
        return h_next, (h_next, logits)
    _, (h_seq, logits_seq) = jax.lax.scan(step, h0, tokens)
    return h_seq, logits_seq


if __name__ == "__main__":
    num_tokens = 16
    embedding_size = 64
    rnn_num_units = 128
    batch = 8
    seq_len = 8

    key = jax.random.PRNGKey(0)
    kp, kx = jax.random.split(key)
    params = init_params(kp, num_tokens, embedding_size, rnn_num_units)
    prep = prepare_params(params)

    tokens = jax.random.randint(kx, (seq_len, batch), 0, num_tokens, dtype=jnp.int32)
    h0 = jnp.zeros((batch, rnn_num_units), jnp.float32)   # initial_state

    # Fused-sequence Pallas forward (single grid step for T=8).
    h_seq, logits_seq = jax.block_until_ready(char_rnn_sequence(tokens, h0, prep))
    h_ref, logits_ref = reference_sequence(tokens, h0, params)

    assert h_seq.shape == (seq_len, batch, rnn_num_units)
    assert logits_seq.shape == (seq_len, batch, num_tokens)
    # f32 recurrence; bf16 logits weights/output -> loosened tolerance on logits.
    assert jnp.allclose(h_seq, h_ref, atol=3e-2, rtol=3e-2), \
        float(jnp.max(jnp.abs(h_seq - h_ref)))
    assert jnp.allclose(logits_seq, logits_ref, atol=3e-2, rtol=3e-2), \
        float(jnp.max(jnp.abs(logits_seq - logits_ref)))

    # Single-step API (exact module forward signature).
    h1, l1 = jax.block_until_ready(char_rnn_cell(tokens[0], h0, prep))
    assert jnp.allclose(h1, h_ref[0], atol=3e-2, rtol=3e-2)
    assert jnp.allclose(l1, logits_ref[0], atol=3e-2, rtol=3e-2)

    print("KERNEL_OK")
</pallas_src>

<mosaic_0001>
module attributes {stable_mosaic.version = 11 : i64} {
  func.func @_char_rnn_kernel(%arg0: i32, %arg1: memref<64xi32, #tpu.memory_space<smem>>, %arg2: memref<16x1x128xf32, #tpu.memory_space<vmem>>, %arg3: memref<128x128xf32, #tpu.memory_space<vmem>>, %arg4: memref<128x128xbf16, #tpu.memory_space<vmem>>, %arg5: memref<1x128xf32, #tpu.memory_space<vmem>>, %arg6: memref<8x128xf32, #tpu.memory_space<vmem>>, %arg7: memref<8x8x128xf32, #tpu.memory_space<vmem>>, %arg8: memref<8x8x128xbf16, #tpu.memory_space<vmem>>, %arg9: memref<8x128xf32, #tpu.memory_space<vmem>>, %arg10: memref<8x128xf32, #tpu.memory_space<vmem>>) attributes {dimension_semantics = [#tpu.dimension_semantics<arbitrary>], iteration_bounds = array<i64: 1>, scalar_prefetch = 1 : i64, scratch_operands = 2 : i64, tpu.core_type = #tpu.core_type<tc>, window_params = [{pipeline_mode = #tpu.pipeline_mode<synchronous>, transform_indices = @transform_0, window_bounds = array<i64: 16, 1, 128>}, {pipeline_mode = #tpu.pipeline_mode<synchronous>, transform_indices = @transform_1, window_bounds = array<i64: 128, 128>}, {pipeline_mode = #tpu.pipeline_mode<synchronous>, transform_indices = @transform_2, window_bounds = array<i64: 128, 128>}, {pipeline_mode = #tpu.pipeline_mode<synchronous>, transform_indices = @transform_3, window_bounds = array<i64: 1, 128>}, {pipeline_mode = #tpu.pipeline_mode<synchronous>, transform_indices = @transform_4, window_bounds = array<i64: 8, 128>}, {transform_indices = @transform_5, window_bounds = array<i64: 8, 8, 128>}, {transform_indices = @transform_6, window_bounds = array<i64: 8, 8, 128>}]} {
    %c0_i32 = arith.constant 0 : i32
    %0 = arith.cmpi eq, %arg0, %c0_i32 : i32
    %1 = arith.extui %0 : i1 to i32
    %c0_i32_0 = arith.constant 0 : i32
    %2 = arith.cmpi ne, %1, %c0_i32_0 : i32
    scf.if %2 {
      %c0_501 = arith.constant 0 : index
      %c0_502 = arith.constant 0 : index
      %693 = vector.load %arg6[%c0_501, %c0_502] : memref<8x128xf32, #tpu.memory_space<vmem>>, vector<8x128xf32>
      %c0_503 = arith.constant 0 : index
      %c0_504 = arith.constant 0 : index
      %694 = vector.load %arg9[%c0_503, %c0_504] : memref<8x128xf32, #tpu.memory_space<vmem>>, vector<8x128xf32>
      tpu.vector_store %arg9[%c0_503, %c0_504], %693 {strides = array<i32>} : memref<8x128xf32, #tpu.memory_space<vmem>>, vector<8x128xf32>,
    } else {
    }
    %c0 = arith.constant 0 : index
    %c0_1 = arith.constant 0 : index
    %3 = vector.load %arg9[%c0, %c0_1] : memref<8x128xf32, #tpu.memory_space<vmem>>, vector<8x128xf32>
    %c0_i32_2 = arith.constant 0 : i32
    %c8_i32 = arith.constant 8 : i32
    %4 = arith.muli %arg0, %c8_i32 : i32
    %5 = arith.addi %4, %c0_i32_2 : i32
    %c8_i32_3 = arith.constant 8 : i32
    %6 = arith.muli %5, %c8_i32_3 : i32
    %c0_i32_4 = arith.constant 0 : i32
    %7 = arith.addi %6, %c0_i32_4 : i32
    %8 = arith.index_cast %7 : i32 to index
    %9 = memref.load %arg1[%8] : memref<64xi32, #tpu.memory_space<smem>>
    %10 = arith.index_cast %9 : i32 to index
    %c0_5 = arith.constant 0 : index
    %c0_6 = arith.constant 0 : index
    %11 = vector.load %arg2[%10, %c0_5, %c0_6] : memref<16x1x128xf32, #tpu.memory_space<vmem>>, vector<1x1x128xf32>
    %12 = vector.shape_cast %11 : vector<1x1x128xf32> to vector<1x128xf32>
    %c0_7 = arith.constant 0 : index
    %c0_8 = arith.constant 0 : index
    %13 = vector.load %arg10[%c0_7, %c0_8] : memref<8x128xf32, #tpu.memory_space<vmem>>, vector<1x128xf32>
    tpu.vector_store %arg10[%c0_7, %c0_8], %12 {strides = array<i32>} : memref<8x128xf32, #tpu.memory_space<vmem>>, vector<1x128xf32>,
    %c8_i32_9 = arith.constant 8 : i32
    %14 = arith.muli %5, %c8_i32_9 : i32
    %c1_i32 = arith.constant 1 : i32
    %15 = arith.addi %14, %c1_i32 : i32
    %16 = arith.index_cast %15 : i32 to index
    %17 = memref.load %arg1[%16] : memref<64xi32, #tpu.memory_space<smem>>
    %18 = arith.index_cast %17 : i32 to index
    %c0_10 = arith.constant 0 : index
    %c0_11 = arith.constant 0 : index
    %19 = vector.load %arg2[%18, %c0_10, %c0_11] : memref<16x1x128xf32, #tpu.memory_space<vmem>>, vector<1x1x128xf32>
    %20 = vector.shape_cast %19 : vector<1x1x128xf32> to vector<1x128xf32>
    %c1 = arith.constant 1 : index
    %c0_12 = arith.constant 0 : index
    %21 = vector.load %arg10[%c1, %c0_12] : memref<8x128xf32, #tpu.memory_space<vmem>>, vector<1x128xf32>
    tpu.vector_store %arg10[%c1, %c0_12], %20 {strides = array<i32>} : memref<8x128xf32, #tpu.memory_space<vmem>>, vector<1x128xf32>,
    %c8_i32_13 = arith.constant 8 : i32
    %22 = arith.muli %5, %c8_i32_13 : i32
    %c2_i32 = arith.constant 2 : i32
    %23 = arith.addi %22, %c2_i32 : i32
    %24 = arith.index_cast %23 : i32 to index
    %25 = memref.load %arg1[%24] : memref<64xi32, #tpu.memory_space<smem>>
    %26 = arith.index_cast %25 : i32 to index
    %c0_14 = arith.constant 0 : index
    %c0_15 = arith.constant 0 : index
    %27 = vector.load %arg2[%26, %c0_14, %c0_15] : memref<16x1x128xf32, #tpu.memory_space<vmem>>, vector<1x1x128xf32>
    %28 = vector.shape_cast %27 : vector<1x1x128xf32> to vector<1x128xf32>
    %c2 = arith.constant 2 : index
    %c0_16 = arith.constant 0 : index
    %29 = vector.load %arg10[%c2, %c0_16] : memref<8x128xf32, #tpu.memory_space<vmem>>, vector<1x128xf32>
    tpu.vector_store %arg10[%c2, %c0_16], %28 {strides = array<i32>} : memref<8x128xf32, #tpu.memory_space<vmem>>, vector<1x128xf32>,
    %c8_i32_17 = arith.constant 8 : i32
    %30 = arith.muli %5, %c8_i32_17 : i32
    %c3_i32 = arith.constant 3 : i32
    %31 = arith.addi %30, %c3_i32 : i32
    %32 = arith.index_cast %31 : i32 to index
    %33 = memref.load %arg1[%32] : memref<64xi32, #tpu.memory_space<smem>>
    %34 = arith.index_cast %33 : i32 to index
    %c0_18 = arith.constant 0 : index
    %c0_19 = arith.constant 0 : index
    %35 = vector.load %arg2[%34, %c0_18, %c0_19] : memref<16x1x128xf32, #tpu.memory_space<vmem>>, vector<1x1x128xf32>
    %36 = vector.shape_cast %35 : vector<1x1x128xf32> to vector<1x128xf32>
    %c3 = arith.constant 3 : index
    %c0_20 = arith.constant 0 : index
    %37 = vector.load %arg10[%c3, %c0_20] : memref<8x128xf32, #tpu.memory_space<vmem>>, vector<1x128xf32>
    tpu.vector_store %arg10[%c3, %c0_20], %36 {strides = array<i32>} : memref<8x128xf32, #tpu.memory_space<vmem>>, vector<1x128xf32>,
    %c8_i32_21 = arith.constant 8 : i32
    %38 = arith.muli %5, %c8_i32_21 : i32
    %c4_i32 = arith.constant 4 : i32
    %39 = arith.addi %38, %c4_i32 : i32
    %40 = arith.index_cast %39 : i32 to index
    %41 = memref.load %arg1[%40] : memref<64xi32, #tpu.memory_space<smem>>
    %42 = arith.index_cast %41 : i32 to index
    %c0_22 = arith.constant 0 : index
    %c0_23 = arith.constant 0 : index
    %43 = vector.load %arg2[%42, %c0_22, %c0_23] : memref<16x1x128xf32, #tpu.memory_space<vmem>>, vector<1x1x128xf32>
    %44 = vector.shape_cast %43 : vector<1x1x128xf32> to vector<1x128xf32>
    %c4 = arith.constant 4 : index
    %c0_24 = arith.constant 0 : index
    %45 = vector.load %arg10[%c4, %c0_24] : memref<8x128xf32, #tpu.memory_space<vmem>>, vector<1x128xf32>
    tpu.vector_store %arg10[%c4, %c0_24], %44 {strides = array<i32>} : memref<8x128xf32, #tpu.memory_space<vmem>>, vector<1x128xf32>,
    %c8_i32_25 = arith.constant 8 : i32
    %46 = arith.muli %5, %c8_i32_25 : i32
    %c5_i32 = arith.constant 5 : i32
    %47 = arith.addi %46, %c5_i32 : i32
    %48 = arith.index_cast %47 : i32 to index
    %49 = memref.load %arg1[%48] : memref<64xi32, #tpu.memory_space<smem>>
    %50 = arith.index_cast %49 : i32 to index
    %c0_26 = arith.constant 0 : index
    %c0_27 = arith.constant 0 : index
    %51 = vector.load %arg2[%50, %c0_26, %c0_27] : memref<16x1x128xf32, #tpu.memory_space<vmem>>, vector<1x1x128xf32>
    %52 = vector.shape_cast %51 : vector<1x1x128xf32> to vector<1x128xf32>
    %c5 = arith.constant 5 : index
    %c0_28 = arith.constant 0 : index
    %53 = vector.load %arg10[%c5, %c0_28] : memref<8x128xf32, #tpu.memory_space<vmem>>, vector<1x128xf32>
    tpu.vector_store %arg10[%c5, %c0_28], %52 {strides = array<i32>} : memref<8x128xf32, #tpu.memory_space<vmem>>, vector<1x128xf32>,
    %c8_i32_29 = arith.constant 8 : i32
    %54 = arith.muli %5, %c8_i32_29 : i32
    %c6_i32 = arith.constant 6 : i32
    %55 = arith.addi %54, %c6_i32 : i32
    %56 = arith.index_cast %55 : i32 to index
    %57 = memref.load %arg1[%56] : memref<64xi32, #tpu.memory_space<smem>>
    %58 = arith.index_cast %57 : i32 to index
    %c0_30 = arith.constant 0 : index
    %c0_31 = arith.constant 0 : index
    %59 = vector.load %arg2[%58, %c0_30, %c0_31] : memref<16x1x128xf32, #tpu.memory_space<vmem>>, vector<1x1x128xf32>
    %60 = vector.shape_cast %59 : vector<1x1x128xf32> to vector<1x128xf32>
    %c6 = arith.constant 6 : index
    %c0_32 = arith.constant 0 : index
    %61 = vector.load %arg10[%c6, %c0_32] : memref<8x128xf32, #tpu.memory_space<vmem>>, vector<1x128xf32>
    tpu.vector_store %arg10[%c6, %c0_32], %60 {strides = array<i32>} : memref<8x128xf32, #tpu.memory_space<vmem>>, vector<1x128xf32>,
    %c8_i32_33 = arith.constant 8 : i32
    %62 = arith.muli %5, %c8_i32_33 : i32
    %c7_i32 = arith.constant 7 : i32
    %63 = arith.addi %62, %c7_i32 : i32
    %64 = arith.index_cast %63 : i32 to index
    %65 = memref.load %arg1[%64] : memref<64xi32, #tpu.memory_space<smem>>
    %66 = arith.index_cast %65 : i32 to index
    %c0_34 = arith.constant 0 : index
    %c0_35 = arith.constant 0 : index
    %67 = vector.load %arg2[%66, %c0_34, %c0_35] : memref<16x1x128xf32, #tpu.memory_space<vmem>>, vector<1x1x128xf32>
    %68 = vector.shape_cast %67 : vector<1x1x128xf32> to vector<1x128xf32>
    %c7 = arith.constant 7 : index
    %c0_36 = arith.constant 0 : index
    %69 = vector.load %arg10[%c7, %c0_36] : memref<8x128xf32, #tpu.memory_space<vmem>>, vector<1x128xf32>
    tpu.vector_store %arg10[%c7, %c0_36], %68 {strides = array<i32>} : memref<8x128xf32, #tpu.memory_space<vmem>>, vector<1x128xf32>,
    %c0_37 = arith.constant 0 : index
    %c0_38 = arith.constant 0 : index
    %70 = vector.load %arg10[%c0_37, %c0_38] : memref<8x128xf32, #tpu.memory_space<vmem>>, vector<8x128xf32>
    %c0_39 = arith.constant 0 : index
    %c0_40 = arith.constant 0 : index
    %71 = vector.load %arg3[%c0_39, %c0_40] : memref<128x128xf32, #tpu.memory_space<vmem>>, vector<128x128xf32>
    %cst = arith.constant dense<0.000000e+00> : vector<8x128xf32>
    %72 = tpu.matmul %3, %71, %cst {dimension_numbers = #tpu.dot_dimension_numbers<[1], [0], [0], [1], [0, 0, 1, 1], [], []>} : vector<8x128xf32>, vector<128x128xf32>, vector<8x128xf32> -> vector<8x128xf32>
    %73 = arith.addf %70, %72 : vector<8x128xf32>
    %74 = math.tanh %73 : vector<8x128xf32>
    %75 = arith.index_cast %c0_i32_2 : i32 to index
    %c0_41 = arith.constant 0 : index
    %c0_42 = arith.constant 0 : index
    %76 = vector.load %arg7[%75, %c0_41, %c0_42] : memref<8x8x128xf32, #tpu.memory_space<vmem>>, vector<1x8x128xf32>
    %77 = vector.shape_cast %76 : vector<1x8x128xf32> to vector<8x128xf32>
    %78 = vector.shape_cast %74 : vector<8x128xf32> to vector<1x8x128xf32>
    tpu.vector_store %arg7[%75, %c0_41, %c0_42], %78 {strides = array<i32>} : memref<8x8x128xf32, #tpu.memory_space<vmem>>, vector<1x8x128xf32>,
    %79 = arith.truncf %74 : vector<8x128xf32> to vector<8x128xbf16>
    %c0_43 = arith.constant 0 : index
    %c0_44 = arith.constant 0 : index
    %80 = vector.load %arg4[%c0_43, %c0_44] : memref<128x128xbf16, #tpu.memory_space<vmem>>, vector<128x128xbf16>
    %cst_45 = arith.constant dense<0.000000e+00> : vector<8x128xf32>
    %81 = tpu.matmul %79, %80, %cst_45 {dimension_numbers = #tpu.dot_dimension_numbers<[1], [0], [0], [1], [0, 0, 1, 1], [], []>} : vector<8x128xbf16>, vector<128x128xbf16>, vector<8x128xf32> -> vector<8x128xf32>
    %c0_46 = arith.constant 0 : index
    %c0_47 = arith.constant 0 : index
    %82 = vector.load %arg5[%c0_46, %c0_47] : memref<1x128xf32, #tpu.memory_space<vmem>>, vector<1x128xf32>
    %83 = vector.broadcast %82 : vector<1x128xf32> to vector<8x128xf32>
    %84 = arith.addf %81, %83 : vector<8x128xf32>
    %85 = arith.truncf %84 : vector<8x128xf32> to vector<8x128xbf16>
    %86 = arith.index_cast %c0_i32_2 : i32 to index
    %c0_48 = arith.constant 0 : index
    %c0_49 = arith.constant 0 : index
    %87 = vector.load %arg8[%86, %c0_48, %c0_49] : memref<8x8x128xbf16, #tpu.memory_space<vmem>>, vector<1x8x128xbf16>
    %88 = vector.shape_cast %87 : vector<1x8x128xbf16> to vector<8x128xbf16>
    %89 = vector.shape_cast %85 : vector<8x128xbf16> to vector<1x8x128xbf16>
    tpu.vector_store %arg8[%86, %c0_48, %c0_49], %89 {strides = array<i32>} : memref<8x8x128xbf16, #tpu.memory_space<vmem>>, vector<1x8x128xbf16>,
    %c1_i32_50 = arith.constant 1 : i32
    %c8_i32_51 = arith.constant 8 : i32
    %90 = arith.muli %arg0, %c8_i32_51 : i32
    %91 = arith.addi %90, %c1_i32_50 : i32
    %c8_i32_52 = arith.constant 8 : i32
    %92 = arith.muli %91, %c8_i32_52 : i32
    %c0_i32_53 = arith.constant 0 : i32
    %93 = arith.addi %92, %c0_i32_53 : i32
    %94 = arith.index_cast %93 : i32 to index
    %95 = memref.load %arg1[%94] : memref<64xi32, #tpu.memory_space<smem>>
    %96 = arith.index_cast %95 : i32 to index
    %c0_54 = arith.constant 0 : index
    %c0_55 = arith.constant 0 : index
    %97 = vector.load %arg2[%96, %c0_54, %c0_55] : memref<16x1x128xf32, #tpu.memory_space<vmem>>, vector<1x1x128xf32>
    %98 = vector.shape_cast %97 : vector<1x1x128xf32> to vector<1x128xf32>
    %c0_56 = arith.constant 0 : index
    %c0_57 = arith.constant 0 : index
    %99 = vector.load %arg10[%c0_56, %c0_57] : memref<8x128xf32, #tpu.memory_space<vmem>>, vector<1x128xf32>
    tpu.vector_store %arg10[%c0_56, %c0_57], %98 {strides = array<i32>} : memref<8x128xf32, #tpu.memory_space<vmem>>, vector<1x128xf32>,
    %c8_i32_58 = arith.constant 8 : i32
    %100 = arith.muli %91, %c8_i32_58 : i32
    %c1_i32_59 = arith.constant 1 : i32
    %101 = arith.addi %100, %c1_i32_59 : i32
    %102 = arith.index_cast %101 : i32 to index
    %103 = memref.load %arg1[%102] : memref<64xi32, #tpu.memory_space<smem>>
    %104 = arith.index_cast %103 : i32 to index
    %c0_60 = arith.constant 0 : index
    %c0_61 = arith.constant 0 : index
    %105 = vector.load %arg2[%104, %c0_60, %c0_61] : memref<16x1x128xf32, #tpu.memory_space<vmem>>, vector<1x1x128xf32>
    %106 = vector.shape_cast %105 : vector<1x1x128xf32> to vector<1x128xf32>
    %c1_62 = arith.constant 1 : index
    %c0_63 = arith.constant 0 : index
    %107 = vector.load %arg10[%c1_62, %c0_63] : memref<8x128xf32, #tpu.memory_space<vmem>>, vector<1x128xf32>
    tpu.vector_store %arg10[%c1_62, %c0_63], %106 {strides = array<i32>} : memref<8x128xf32, #tpu.memory_space<vmem>>, vector<1x128xf32>,
    %c8_i32_64 = arith.constant 8 : i32
    %108 = arith.muli %91, %c8_i32_64 : i32
    %c2_i32_65 = arith.constant 2 : i32
    %109 = arith.addi %108, %c2_i32_65 : i32
    %110 = arith.index_cast %109 : i32 to index
    %111 = memref.load %arg1[%110] : memref<64xi32, #tpu.memory_space<smem>>
    %112 = arith.index_cast %111 : i32 to index
    %c0_66 = arith.constant 0 : index
    %c0_67 = arith.constant 0 : index
    %113 = vector.load %arg2[%112, %c0_66, %c0_67] : memref<16x1x128xf32, #tpu.memory_space<vmem>>, vector<1x1x128xf32>
    %114 = vector.shape_cast %113 : vector<1x1x128xf32> to vector<1x128xf32>
    %c2_68 = arith.constant 2 : index
    %c0_69 = arith.constant 0 : index
    %115 = vector.load %arg10[%c2_68, %c0_69] : memref<8x128xf32, #tpu.memory_space<vmem>>, vector<1x128xf32>
    tpu.vector_store %arg10[%c2_68, %c0_69], %114 {strides = array<i32>} : memref<8x128xf32, #tpu.memory_space<vmem>>, vector<1x128xf32>,
    %c8_i32_70 = arith.constant 8 : i32
    %116 = arith.muli %91, %c8_i32_70 : i32
    %c3_i32_71 = arith.constant 3 : i32
    %117 = arith.addi %116, %c3_i32_71 : i32
    %118 = arith.index_cast %117 : i32 to index
    %119 = memref.load %arg1[%118] : memref<64xi32, #tpu.memory_space<smem>>
    %120 = arith.index_cast %119 : i32 to index
    %c0_72 = arith.constant 0 : index
    %c0_73 = arith.constant 0 : index
    %121 = vector.load %arg2[%120, %c0_72, %c0_73] : memref<16x1x128xf32, #tpu.memory_space<vmem>>, vector<1x1x128xf32>
    %122 = vector.shape_cast %121 : vector<1x1x128xf32> to vector<1x128xf32>
    %c3_74 = arith.constant 3 : index
    %c0_75 = arith.constant 0 : index
    %123 = vector.load %arg10[%c3_74, %c0_75] : memref<8x128xf32, #tpu.memory_space<vmem>>, vector<1x128xf32>
    tpu.vector_store %arg10[%c3_74, %c0_75], %122 {strides = array<i32>} : memref<8x128xf32, #tpu.memory_space<vmem>>, vector<1x128xf32>,
    %c8_i32_76 = arith.constant 8 : i32
    %124 = arith.muli %91, %c8_i32_76 : i32
    %c4_i32_77 = arith.constant 4 : i32
    %125 = arith.addi %124, %c4_i32_77 : i32
    %126 = arith.index_cast %125 : i32 to index
    %127 = memref.load %arg1[%126] : memref<64xi32, #tpu.memory_space<smem>>
    %128 = arith.index_cast %127 : i32 to index
    %c0_78 = arith.constant 0 : index
    %c0_79 = arith.constant 0 : index
    %129 = vector.load %arg2[%128, %c0_78, %c0_79] : memref<16x1x128xf32, #tpu.memory_space<vmem>>, vector<1x1x128xf32>
    %130 = vector.shape_cast %129 : vector<1x1x128xf32> to vector<1x128xf32>
    %c4_80 = arith.constant 4 : index
    %c0_81 = arith.constant 0 : index
    %131 = vector.load %arg10[%c4_80, %c0_81] : memref<8x128xf32, #tpu.memory_space<vmem>>, vector<1x128xf32>
    tpu.vector_store %arg10[%c4_80, %c0_81], %130 {strides = array<i32>} : memref<8x128xf32, #tpu.memory_space<vmem>>, vector<1x128xf32>,
    %c8_i32_82 = arith.constant 8 : i32
    %132 = arith.muli %91, %c8_i32_82 : i32
    %c5_i32_83 = arith.constant 5 : i32
    %133 = arith.addi %132, %c5_i32_83 : i32
    %134 = arith.index_cast %133 : i32 to index
    %135 = memref.load %arg1[%134] : memref<64xi32, #tpu.memory_space<smem>>
    %136 = arith.index_cast %135 : i32 to index
    %c0_84 = arith.constant 0 : index
    %c0_85 = arith.constant 0 : index
    %137 = vector.load %arg2[%136, %c0_84, %c0_85] : memref<16x1x128xf32, #tpu.memory_space<vmem>>, vector<1x1x128xf32>
    %138 = vector.shape_cast %137 : vector<1x1x128xf32> to vector<1x128xf32>
    %c5_86 = arith.constant 5 : index
    %c0_87 = arith.constant 0 : index
    %139 = vector.load %arg10[%c5_86, %c0_87] : memref<8x128xf32, #tpu.memory_space<vmem>>, vector<1x128xf32>
    tpu.vector_store %arg10[%c5_86, %c0_87], %138 {strides = array<i32>} : memref<8x128xf32, #tpu.memory_space<vmem>>, vector<1x128xf32>,
    %c8_i32_88 = arith.constant 8 : i32
    %140 = arith.muli %91, %c8_i32_88 : i32
    %c6_i32_89 = arith.constant 6 : i32
    %141 = arith.addi %140, %c6_i32_89 : i32
    %142 = arith.index_cast %141 : i32 to index
    %143 = memref.load %arg1[%142] : memref<64xi32, #tpu.memory_space<smem>>
    %144 = arith.index_cast %143 : i32 to index
    %c0_90 = arith.constant 0 : index
    %c0_91 = arith.constant 0 : index
    %145 = vector.load %arg2[%144, %c0_90, %c0_91] : memref<16x1x128xf32, #tpu.memory_space<vmem>>, vector<1x1x128xf32>
    %146 = vector.shape_cast %145 : vector<1x1x128xf32> to vector<1x128xf32>
    %c6_92 = arith.constant 6 : index
    %c0_93 = arith.constant 0 : index
    %147 = vector.load %arg10[%c6_92, %c0_93] : memref<8x128xf32, #tpu.memory_space<vmem>>, vector<1x128xf32>
    tpu.vector_store %arg10[%c6_92, %c0_93], %146 {strides = array<i32>} : memref<8x128xf32, #tpu.memory_space<vmem>>, vector<1x128xf32>,
    %c8_i32_94 = arith.constant 8 : i32
    %148 = arith.muli %91, %c8_i32_94 : i32
    %c7_i32_95 = arith.constant 7 : i32
    %149 = arith.addi %148, %c7_i32_95 : i32
    %150 = arith.index_cast %149 : i32 to index
    %151 = memref.load %arg1[%150] : memref<64xi32, #tpu.memory_space<smem>>
    %152 = arith.index_cast %151 : i32 to index
    %c0_96 = arith.constant 0 : index
    %c0_97 = arith.constant 0 : index
    %153 = vector.load %arg2[%152, %c0_96, %c0_97] : memref<16x1x128xf32, #tpu.memory_space<vmem>>, vector<1x1x128xf32>
    %154 = vector.shape_cast %153 : vector<1x1x128xf32> to vector<1x128xf32>
    %c7_98 = arith.constant 7 : index
    %c0_99 = arith.constant 0 : index
    %155 = vector.load %arg10[%c7_98, %c0_99] : memref<8x128xf32, #tpu.memory_space<vmem>>, vector<1x128xf32>
    tpu.vector_store %arg10[%c7_98, %c0_99], %154 {strides = array<i32>} : memref<8x128xf32, #tpu.memory_space<vmem>>, vector<1x128xf32>,
    %c0_100 = arith.constant 0 : index
    %c0_101 = arith.constant 0 : index
    %156 = vector.load %arg10[%c0_100, %c0_101] : memref<8x128xf32, #tpu.memory_space<vmem>>, vector<8x128xf32>
    %c0_102 = arith.constant 0 : index
    %c0_103 = arith.constant 0 : index
    %157 = vector.load %arg3[%c0_102, %c0_103] : memref<128x128xf32, #tpu.memory_space<vmem>>, vector<128x128xf32>
    %cst_104 = arith.constant dense<0.000000e+00> : vector<8x128xf32>
    %158 = tpu.matmul %74, %157, %cst_104 {dimension_numbers = #tpu.dot_dimension_numbers<[1], [0], [0], [1], [0, 0, 1, 1], [], []>} : vector<8x128xf32>, vector<128x128xf32>, vector<8x128xf32> -> vector<8x128xf32>
    %159 = arith.addf %156, %158 : vector<8x128xf32>
    %160 = math.tanh %159 : vector<8x128xf32>
    %161 = arith.index_cast %c1_i32_50 : i32 to index
    %c0_105 = arith.constant 0 : index
    %c0_106 = arith.constant 0 : index
    %162 = vector.load %arg7[%161, %c0_105, %c0_106] : memref<8x8x128xf32, #tpu.memory_space<vmem>>, vector<1x8x128xf32>
    %163 = vector.shape_cast %162 : vector<1x8x128xf32> to vector<8x128xf32>
    %164 = vector.shape_cast %160 : vector<8x128xf32> to vector<1x8x128xf32>
    tpu.vector_store %arg7[%161, %c0_105, %c0_106], %164 {strides = array<i32>} : memref<8x8x128xf32, #tpu.memory_space<vmem>>, vector<1x8x128xf32>,
    %165 = arith.truncf %160 : vector<8x128xf32> to vector<8x128xbf16>
    %c0_107 = arith.constant 0 : index
    %c0_108 = arith.constant 0 : index
    %166 = vector.load %arg4[%c0_107, %c0_108] : memref<128x128xbf16, #tpu.memory_space<vmem>>, vector<128x128xbf16>
    %cst_109 = arith.constant dense<0.000000e+00> : vector<8x128xf32>
    %167 = tpu.matmul %165, %166, %cst_109 {dimension_numbers = #tpu.dot_dimension_numbers<[1], [0], [0], [1], [0, 0, 1, 1], [], []>} : vector<8x128xbf16>, vector<128x128xbf16>, vector<8x128xf32> -> vector<8x128xf32>
    %c0_110 = arith.constant 0 : index
    %c0_111 = arith.constant 0 : index
    %168 = vector.load %arg5[%c0_110, %c0_111] : memref<1x128xf32, #tpu.memory_space<vmem>>, vector<1x128xf32>
    %169 = vector.broadcast %168 : vector<1x128xf32> to vector<8x128xf32>
    %170 = arith.addf %167, %169 : vector<8x128xf32>
    %171 = arith.truncf %170 : vector<8x128xf32> to vector<8x128xbf16>
    %172 = arith.index_cast %c1_i32_50 : i32 to index
    %c0_112 = arith.constant 0 : index
    %c0_113 = arith.constant 0 : index
    %173 = vector.load %arg8[%172, %c0_112, %c0_113] : memref<8x8x128xbf16, #tpu.memory_space<vmem>>, vector<1x8x128xbf16>
    %174 = vector.shape_cast %173 : vector<1x8x128xbf16> to vector<8x128xbf16>
    %175 = vector.shape_cast %171 : vector<8x128xbf16> to vector<1x8x128xbf16>
    tpu.vector_store %arg8[%172, %c0_112, %c0_113], %175 {strides = array<i32>} : memref<8x8x128xbf16, #tpu.memory_space<vmem>>, vector<1x8x128xbf16>,
    %c2_i32_114 = arith.constant 2 : i32
    %c8_i32_115 = arith.constant 8 : i32
    %176 = arith.muli %arg0, %c8_i32_115 : i32
    %177 = arith.addi %176, %c2_i32_114 : i32
    %c8_i32_116 = arith.constant 8 : i32
    %178 = arith.muli %177, %c8_i32_116 : i32
    %c0_i32_117 = arith.constant 0 : i32
    %179 = arith.addi %178, %c0_i32_117 : i32
    %180 = arith.index_cast %179 : i32 to index
    %181 = memref.load %arg1[%180] : memref<64xi32, #tpu.memory_space<smem>>
    %182 = arith.index_cast %181 : i32 to index
    %c0_118 = arith.constant 0 : index
    %c0_119 = arith.constant 0 : index
    %183 = vector.load %arg2[%182, %c0_118, %c0_119] : memref<16x1x128xf32, #tpu.memory_space<vmem>>, vector<1x1x128xf32>
    %184 = vector.shape_cast %183 : vector<1x1x128xf32> to vector<1x128xf32>
    %c0_120 = arith.constant 0 : index
    %c0_121 = arith.constant 0 : index
    %185 = vector.load %arg10[%c0_120, %c0_121] : memref<8x128xf32, #tpu.memory_space<vmem>>, vector<1x128xf32>
    tpu.vector_store %arg10[%c0_120, %c0_121], %184 {strides = array<i32>} : memref<8x128xf32, #tpu.memory_space<vmem>>, vector<1x128xf32>,
    %c8_i32_122 = arith.constant 8 : i32
    %186 = arith.muli %177, %c8_i32_122 : i32
    %c1_i32_123 = arith.constant 1 : i32
    %187 = arith.addi %186, %c1_i32_123 : i32
    %188 = arith.index_cast %187 : i32 to index
    %189 = memref.load %arg1[%188] : memref<64xi32, #tpu.memory_space<smem>>
    %190 = arith.index_cast %189 : i32 to index
    %c0_124 = arith.constant 0 : index
    %c0_125 = arith.constant 0 : index
    %191 = vector.load %arg2[%190, %c0_124, %c0_125] : memref<16x1x128xf32, #tpu.memory_space<vmem>>, vector<1x1x128xf32>
    %192 = vector.shape_cast %191 : vector<1x1x128xf32> to vector<1x128xf32>
    %c1_126 = arith.constant 1 : index
    %c0_127 = arith.constant 0 : index
    %193 = vector.load %arg10[%c1_126, %c0_127] : memref<8x128xf32, #tpu.memory_space<vmem>>, vector<1x128xf32>
    tpu.vector_store %arg10[%c1_126, %c0_127], %192 {strides = array<i32>} : memref<8x128xf32, #tpu.memory_space<vmem>>, vector<1x128xf32>,
    %c8_i32_128 = arith.constant 8 : i32
    %194 = arith.muli %177, %c8_i32_128 : i32
    %c2_i32_129 = arith.constant 2 : i32
    %195 = arith.addi %194, %c2_i32_129 : i32
    %196 = arith.index_cast %195 : i32 to index
    %197 = memref.load %arg1[%196] : memref<64xi32, #tpu.memory_space<smem>>
    %198 = arith.index_cast %197 : i32 to index
    %c0_130 = arith.constant 0 : index
    %c0_131 = arith.constant 0 : index
    %199 = vector.load %arg2[%198, %c0_130, %c0_131] : memref<16x1x128xf32, #tpu.memory_space<vmem>>, vector<1x1x128xf32>
    %200 = vector.shape_cast %199 : vector<1x1x128xf32> to vector<1x128xf32>
    %c2_132 = arith.constant 2 : index
    %c0_133 = arith.constant 0 : index
    %201 = vector.load %arg10[%c2_132, %c0_133] : memref<8x128xf32, #tpu.memory_space<vmem>>, vector<1x128xf32>
    tpu.vector_store %arg10[%c2_132, %c0_133], %200 {strides = array<i32>} : memref<8x128xf32, #tpu.memory_space<vmem>>, vector<1x128xf32>,
    %c8_i32_134 = arith.constant 8 : i32
    %202 = arith.muli %177, %c8_i32_134 : i32
    %c3_i32_135 = arith.constant 3 : i32
    %203 = arith.addi %202, %c3_i32_135 : i32
    %204 = arith.index_cast %203 : i32 to index
    %205 = memref.load %arg1[%204] : memref<64xi32, #tpu.memory_space<smem>>
    %206 = arith.index_cast %205 : i32 to index
    %c0_136 = arith.constant 0 : index
    %c0_137 = arith.constant 0 : index
    %207 = vector.load %arg2[%206, %c0_136, %c0_137] : memref<16x1x128xf32, #tpu.memory_space<vmem>>, vector<1x1x128xf32>
    %208 = vector.shape_cast %207 : vector<1x1x128xf32> to vector<1x128xf32>
    %c3_138 = arith.constant 3 : index
    %c0_139 = arith.constant 0 : index
    %209 = vector.load %arg10[%c3_138, %c0_139] : memref<8x128xf32, #tpu.memory_space<vmem>>, vector<1x128xf32>
    tpu.vector_store %arg10[%c3_138, %c0_139], %208 {strides = array<i32>} : memref<8x128xf32, #tpu.memory_space<vmem>>, vector<1x128xf32>,
    %c8_i32_140 = arith.constant 8 : i32
    %210 = arith.muli %177, %c8_i32_140 : i32
    %c4_i32_141 = arith.constant 4 : i32
    %211 = arith.addi %210, %c4_i32_141 : i32
    %212 = arith.index_cast %211 : i32 to index
    %213 = memref.load %arg1[%212] : memref<64xi32, #tpu.memory_space<smem>>
    %214 = arith.index_cast %213 : i32 to index
    %c0_142 = arith.constant 0 : index
    %c0_143 = arith.constant 0 : index
    %215 = vector.load %arg2[%214, %c0_142, %c0_143] : memref<16x1x128xf32, #tpu.memory_space<vmem>>, vector<1x1x128xf32>
    %216 = vector.shape_cast %215 : vector<1x1x128xf32> to vector<1x128xf32>
    %c4_144 = arith.constant 4 : index
    %c0_145 = arith.constant 0 : index
    %217 = vector.load %arg10[%c4_144, %c0_145] : memref<8x128xf32, #tpu.memory_space<vmem>>, vector<1x128xf32>
    tpu.vector_store %arg10[%c4_144, %c0_145], %216 {strides = array<i32>} : memref<8x128xf32, #tpu.memory_space<vmem>>, vector<1x128xf32>,
    %c8_i32_146 = arith.constant 8 : i32
    %218 = arith.muli %177, %c8_i32_146 : i32
    %c5_i32_147 = arith.constant 5 : i32
    %219 = arith.addi %218, %c5_i32_147 : i32
    %220 = arith.index_cast %219 : i32 to index
    %221 = memref.load %arg1[%220] : memref<64xi32, #tpu.memory_space<smem>>
    %222 = arith.index_cast %221 : i32 to index
    %c0_148 = arith.constant 0 : index
    %c0_149 = arith.constant 0 : index
    %223 = vector.load %arg2[%222, %c0_148, %c0_149] : memref<16x1x128xf32, #tpu.memory_space<vmem>>, vector<1x1x128xf32>
    %224 = vector.shape_cast %223 : vector<1x1x128xf32> to vector<1x128xf32>
    %c5_150 = arith.constant 5 : index
    %c0_151 = arith.constant 0 : index
    %225 = vector.load %arg10[%c5_150, %c0_151] : memref<8x128xf32, #tpu.memory_space<vmem>>, vector<1x128xf32>
    tpu.vector_store %arg10[%c5_150, %c0_151], %224 {strides = array<i32>} : memref<8x128xf32, #tpu.memory_space<vmem>>, vector<1x128xf32>,
    %c8_i32_152 = arith.constant 8 : i32
    %226 = arith.muli %177, %c8_i32_152 : i32
    %c6_i32_153 = arith.constant 6 : i32
    %227 = arith.addi %226, %c6_i32_153 : i32
    %228 = arith.index_cast %227 : i32 to index
    %229 = memref.load %arg1[%228] : memref<64xi32, #tpu.memory_space<smem>>
    %230 = arith.index_cast %229 : i32 to index
    %c0_154 = arith.constant 0 : index
    %c0_155 = arith.constant 0 : index
    %231 = vector.load %arg2[%230, %c0_154, %c0_155] : memref<16x1x128xf32, #tpu.memory_space<vmem>>, vector<1x1x128xf32>
    %232 = vector.shape_cast %231 : vector<1x1x128xf32> to vector<1x128xf32>
    %c6_156 = arith.constant 6 : index
    %c0_157 = arith.constant 0 : index
    %233 = vector.load %arg10[%c6_156, %c0_157] : memref<8x128xf32, #tpu.memory_space<vmem>>, vector<1x128xf32>
    tpu.vector_store %arg10[%c6_156, %c0_157], %232 {strides = array<i32>} : memref<8x128xf32, #tpu.memory_space<vmem>>, vector<1x128xf32>,
    %c8_i32_158 = arith.constant 8 : i32
    %234 = arith.muli %177, %c8_i32_158 : i32
    %c7_i32_159 = arith.constant 7 : i32
    %235 = arith.addi %234, %c7_i32_159 : i32
    %236 = arith.index_cast %235 : i32 to index
    %237 = memref.load %arg1[%236] : memref<64xi32, #tpu.memory_space<smem>>
    %238 = arith.index_cast %237 : i32 to index
    %c0_160 = arith.constant 0 : index
    %c0_161 = arith.constant 0 : index
    %239 = vector.load %arg2[%238, %c0_160, %c0_161] : memref<16x1x128xf32, #tpu.memory_space<vmem>>, vector<1x1x128xf32>
    %240 = vector.shape_cast %239 : vector<1x1x128xf32> to vector<1x128xf32>
    %c7_162 = arith.constant 7 : index
    %c0_163 = arith.constant 0 : index
    %241 = vector.load %arg10[%c7_162, %c0_163] : memref<8x128xf32, #tpu.memory_space<vmem>>, vector<1x128xf32>
    tpu.vector_store %arg10[%c7_162, %c0_163], %240 {strides = array<i32>} : memref<8x128xf32, #tpu.memory_space<vmem>>, vector<1x128xf32>,
    %c0_164 = arith.constant 0 : index
    %c0_165 = arith.constant 0 : index
    %242 = vector.load %arg10[%c0_164, %c0_165] : memref<8x128xf32, #tpu.memory_space<vmem>>, vector<8x128xf32>
    %c0_166 = arith.constant 0 : index
    %c0_167 = arith.constant 0 : index
    %243 = vector.load %arg3[%c0_166, %c0_167] : memref<128x128xf32, #tpu.memory_space<vmem>>, vector<128x128xf32>
    %cst_168 = arith.constant dense<0.000000e+00> : vector<8x128xf32>
    %244 = tpu.matmul %160, %243, %cst_168 {dimension_numbers = #tpu.dot_dimension_numbers<[1], [0], [0], [1], [0, 0, 1, 1], [], []>} : vector<8x128xf32>, vector<128x128xf32>, vector<8x128xf32> -> vector<8x128xf32>
    %245 = arith.addf %242, %244 : vector<8x128xf32>
    %246 = math.tanh %245 : vector<8x128xf32>
    %247 = arith.index_cast %c2_i32_114 : i32 to index
    %c0_169 = arith.constant 0 : index
    %c0_170 = arith.constant 0 : index
    %248 = vector.load %arg7[%247, %c0_169, %c0_170] : memref<8x8x128xf32, #tpu.memory_space<vmem>>, vector<1x8x128xf32>
    %249 = vector.shape_cast %248 : vector<1x8x128xf32> to vector<8x128xf32>
    %250 = vector.shape_cast %246 : vector<8x128xf32> to vector<1x8x128xf32>
    tpu.vector_store %arg7[%247, %c0_169, %c0_170], %250 {strides = array<i32>} : memref<8x8x128xf32, #tpu.memory_space<vmem>>, vector<1x8x128xf32>,
    %251 = arith.truncf %246 : vector<8x128xf32> to vector<8x128xbf16>
    %c0_171 = arith.constant 0 : index
    %c0_172 = arith.constant 0 : index
    %252 = vector.load %arg4[%c0_171, %c0_172] : memref<128x128xbf16, #tpu.memory_space<vmem>>, vector<128x128xbf16>
    %cst_173 = arith.constant dense<0.000000e+00> : vector<8x128xf32>
    %253 = tpu.matmul %251, %252, %cst_173 {dimension_numbers = #tpu.dot_dimension_numbers<[1], [0], [0], [1], [0, 0, 1, 1], [], []>} : vector<8x128xbf16>, vector<128x128xbf16>, vector<8x128xf32> -> vector<8x128xf32>
    %c0_174 = arith.constant 0 : index
    %c0_175 = arith.constant 0 : index
    %254 = vector.load %arg5[%c0_174, %c0_175] : memref<1x128xf32, #tpu.memory_space<vmem>>, vector<1x128xf32>
    %255 = vector.broadcast %254 : vector<1x128xf32> to vector<8x128xf32>
    %256 = arith.addf %253, %255 : vector<8x128xf32>
    %257 = arith.truncf %256 : vector<8x128xf32> to vector<8x128xbf16>
    %258 = arith.index_cast %c2_i32_114 : i32 to index
    %c0_176 = arith.constant 0 : index
    %c0_177 = arith.constant 0 : index
    %259 = vector.load %arg8[%258, %c0_176, %c0_177] : memref<8x8x128xbf16, #tpu.memory_space<vmem>>, vector<1x8x128xbf16>
    %260 = vector.shape_cast %259 : vector<1x8x128xbf16> to vector<8x128xbf16>
    %261 = vector.shape_cast %257 : vector<8x128xbf16> to vector<1x8x128xbf16>
    tpu.vector_store %arg8[%258, %c0_176, %c0_177], %261 {strides = array<i32>} : memref<8x8x128xbf16, #tpu.memory_space<vmem>>, vector<1x8x128xbf16>,
    %c3_i32_178 = arith.constant 3 : i32
    %c8_i32_179 = arith.constant 8 : i32
    %262 = arith.muli %arg0, %c8_i32_179 : i32
    %263 = arith.addi %262, %c3_i32_178 : i32
    %c8_i32_180 = arith.constant 8 : i32
    %264 = arith.muli %263, %c8_i32_180 : i32
    %c0_i32_181 = arith.constant 0 : i32
    %265 = arith.addi %264, %c0_i32_181 : i32
    %266 = arith.index_cast %265 : i32 to index
    %267 = memref.load %arg1[%266] : memref<64xi32, #tpu.memory_space<smem>>
    %268 = arith.index_cast %267 : i32 to index
    %c0_182 = arith.constant 0 : index
    %c0_183 = arith.constant 0 : index
    %269 = vector.load %arg2[%268, %c0_182, %c0_183] : memref<16x1x128xf32, #tpu.memory_space<vmem>>, vector<1x1x128xf32>
    %270 = vector.shape_cast %269 : vector<1x1x128xf32> to vector<1x128xf32>
    %c0_184 = arith.constant 0 : index
    %c0_185 = arith.constant 0 : index
    %271 = vector.load %arg10[%c0_184, %c0_185] : memref<8x128xf32, #tpu.memory_space<vmem>>, vector<1x128xf32>
    tpu.vector_store %arg10[%c0_184, %c0_185], %270 {strides = array<i32>} : memref<8x128xf32, #tpu.memory_space<vmem>>, vector<1x128xf32>,
    %c8_i32_186 = arith.constant 8 : i32
    %272 = arith.muli %263, %c8_i32_186 : i32
    %c1_i32_187 = arith.constant 1 : i32
    %273 = arith.addi %272, %c1_i32_187 : i32
    %274 = arith.index_cast %273 : i32 to index
    %275 = memref.load %arg1[%274] : memref<64xi32, #tpu.memory_space<smem>>
    %276 = arith.index_cast %275 : i32 to index
    %c0_188 = arith.constant 0 : index
    %c0_189 = arith.constant 0 : index
    %277 = vector.load %arg2[%276, %c0_188, %c0_189] : memref<16x1x128xf32, #tpu.memory_space<vmem>>, vector<1x1x128xf32>
    %278 = vector.shape_cast %277 : vector<1x1x128xf32> to vector<1x128xf32>
    %c1_190 = arith.constant 1 : index
    %c0_191 = arith.constant 0 : index
    %279 = vector.load %arg10[%c1_190, %c0_191] : memref<8x128xf32, #tpu.memory_space<vmem>>, vector<1x128xf32>
    tpu.vector_store %arg10[%c1_190, %c0_191], %278 {strides = array<i32>} : memref<8x128xf32, #tpu.memory_space<vmem>>, vector<1x128xf32>,
    %c8_i32_192 = arith.constant 8 : i32
    %280 = arith.muli %263, %c8_i32_192 : i32
    %c2_i32_193 = arith.constant 2 : i32
    %281 = arith.addi %280, %c2_i32_193 : i32
    %282 = arith.index_cast %281 : i32 to index
    %283 = memref.load %arg1[%282] : memref<64xi32, #tpu.memory_space<smem>>
    %284 = arith.index_cast %283 : i32 to index
    %c0_194 = arith.constant 0 : index
    %c0_195 = arith.constant 0 : index
    %285 = vector.load %arg2[%284, %c0_194, %c0_195] : memref<16x1x128xf32, #tpu.memory_space<vmem>>, vector<1x1x128xf32>
    %286 = vector.shape_cast %285 : vector<1x1x128xf32> to vector<1x128xf32>
    %c2_196 = arith.constant 2 : index
    %c0_197 = arith.constant 0 : index
    %287 = vector.load %arg10[%c2_196, %c0_197] : memref<8x128xf32, #tpu.memory_space<vmem>>, vector<1x128xf32>
    tpu.vector_store %arg10[%c2_196, %c0_197], %286 {strides = array<i32>} : memref<8x128xf32, #tpu.memory_space<vmem>>, vector<1x128xf32>,
    %c8_i32_198 = arith.constant 8 : i32
    %288 = arith.muli %263, %c8_i32_198 : i32
    %c3_i32_199 = arith.constant 3 : i32
    %289 = arith.addi %288, %c3_i32_199 : i32
    %290 = arith.index_cast %289 : i32 to index
    %291 = memref.load %arg1[%290] : memref<64xi32, #tpu.memory_space<smem>>
    %292 = arith.index_cast %291 : i32 to index
    %c0_200 = arith.constant 0 : index
    %c0_201 = arith.constant 0 : index
    %293 = vector.load %arg2[%292, %c0_200, %c0_201] : memref<16x1x128xf32, #tpu.memory_space<vmem>>, vector<1x1x128xf32>
    %294 = vector.shape_cast %293 : vector<1x1x128xf32> to vector<1x128xf32>
    %c3_202 = arith.constant 3 : index
    %c0_203 = arith.constant 0 : index
    %295 = vector.load %arg10[%c3_202, %c0_203] : memref<8x128xf32, #tpu.memory_space<vmem>>, vector<1x128xf32>
    tpu.vector_store %arg10[%c3_202, %c0_203], %294 {strides = array<i32>} : memref<8x128xf32, #tpu.memory_space<vmem>>, vector<1x128xf32>,
    %c8_i32_204 = arith.constant 8 : i32
    %296 = arith.muli %263, %c8_i32_204 : i32
    %c4_i32_205 = arith.constant 4 : i32
    %297 = arith.addi %296, %c4_i32_205 : i32
    %298 = arith.index_cast %297 : i32 to index
    %299 = memref.load %arg1[%298] : memref<64xi32, #tpu.memory_space<smem>>
    %300 = arith.index_cast %299 : i32 to index
    %c0_206 = arith.constant 0 : index
    %c0_207 = arith.constant 0 : index
    %301 = vector.load %arg2[%300, %c0_206, %c0_207] : memref<16x1x128xf32, #tpu.memory_space<vmem>>, vector<1x1x128xf32>
    %302 = vector.shape_cast %301 : vector<1x1x128xf32> to vector<1x128xf32>
    %c4_208 = arith.constant 4 : index
    %c0_209 = arith.constant 0 : index
    %303 = vector.load %arg10[%c4_208, %c0_209] : memref<8x128xf32, #tpu.memory_space<vmem>>, vector<1x128xf32>
    tpu.vector_store %arg10[%c4_208, %c0_209], %302 {strides = array<i32>} : memref<8x128xf32, #tpu.memory_space<vmem>>, vector<1x128xf32>,
    %c8_i32_210 = arith.constant 8 : i32
    %304 = arith.muli %263, %c8_i32_210 : i32
    %c5_i32_211 = arith.constant 5 : i32
    %305 = arith.addi %304, %c5_i32_211 : i32
    %306 = arith.index_cast %305 : i32 to index
    %307 = memref.load %arg1[%306] : memref<64xi32, #tpu.memory_space<smem>>
    %308 = arith.index_cast %307 : i32 to index
    %c0_212 = arith.constant 0 : index
    %c0_213 = arith.constant 0 : index
    %309 = vector.load %arg2[%308, %c0_212, %c0_213] : memref<16x1x128xf32, #tpu.memory_space<vmem>>, vector<1x1x128xf32>
    %310 = vector.shape_cast %309 : vector<1x1x128xf32> to vector<1x128xf32>
    %c5_214 = arith.constant 5 : index
    %c0_215 = arith.constant 0 : index
    %311 = vector.load %arg10[%c5_214, %c0_215] : memref<8x128xf32, #tpu.memory_space<vmem>>, vector<1x128xf32>
    tpu.vector_store %arg10[%c5_214, %c0_215], %310 {strides = array<i32>} : memref<8x128xf32, #tpu.memory_space<vmem>>, vector<1x128xf32>,
    %c8_i32_216 = arith.constant 8 : i32
    %312 = arith.muli %263, %c8_i32_216 : i32
    %c6_i32_217 = arith.constant 6 : i32
    %313 = arith.addi %312, %c6_i32_217 : i32
    %314 = arith.index_cast %313 : i32 to index
    %315 = memref.load %arg1[%314] : memref<64xi32, #tpu.memory_space<smem>>
    %316 = arith.index_cast %315 : i32 to index
    %c0_218 = arith.constant 0 : index
    %c0_219 = arith.constant 0 : index
    %317 = vector.load %arg2[%316, %c0_218, %c0_219] : memref<16x1x128xf32, #tpu.memory_space<vmem>>, vector<1x1x128xf32>
    %318 = vector.shape_cast %317 : vector<1x1x128xf32> to vector<1x128xf32>
    %c6_220 = arith.constant 6 : index
    %c0_221 = arith.constant 0 : index
    %319 = vector.load %arg10[%c6_220, %c0_221] : memref<8x128xf32, #tpu.memory_space<vmem>>, vector<1x128xf32>
    tpu.vector_store %arg10[%c6_220, %c0_221], %318 {strides = array<i32>} : memref<8x128xf32, #tpu.memory_space<vmem>>, vector<1x128xf32>,
    %c8_i32_222 = arith.constant 8 : i32
    %320 = arith.muli %263, %c8_i32_222 : i32
    %c7_i32_223 = arith.constant 7 : i32
    %321 = arith.addi %320, %c7_i32_223 : i32
    %322 = arith.index_cast %321 : i32 to index
    %323 = memref.load %arg1[%322] : memref<64xi32, #tpu.memory_space<smem>>
    %324 = arith.index_cast %323 : i32 to index
    %c0_224 = arith.constant 0 : index
    %c0_225 = arith.constant 0 : index
    %325 = vector.load %arg2[%324, %c0_224, %c0_225] : memref<16x1x128xf32, #tpu.memory_space<vmem>>, vector<1x1x128xf32>
    %326 = vector.shape_cast %325 : vector<1x1x128xf32> to vector<1x128xf32>
    %c7_226 = arith.constant 7 : index
    %c0_227 = arith.constant 0 : index
    %327 = vector.load %arg10[%c7_226, %c0_227] : memref<8x128xf32, #tpu.memory_space<vmem>>, vector<1x128xf32>
    tpu.vector_store %arg10[%c7_226, %c0_227], %326 {strides = array<i32>} : memref<8x128xf32, #tpu.memory_space<vmem>>, vector<1x128xf32>,
    %c0_228 = arith.constant 0 : index
    %c0_229 = arith.constant 0 : index
    %328 = vector.load %arg10[%c0_228, %c0_229] : memref<8x128xf32, #tpu.memory_space<vmem>>, vector<8x128xf32>
    %c0_230 = arith.constant 0 : index
    %c0_231 = arith.constant 0 : index
    %329 = vector.load %arg3[%c0_230, %c0_231] : memref<128x128xf32, #tpu.memory_space<vmem>>, vector<128x128xf32>
    %cst_232 = arith.constant dense<0.000000e+00> : vector<8x128xf32>
    %330 = tpu.matmul %246, %329, %cst_232 {dimension_numbers = #tpu.dot_dimension_numbers<[1], [0], [0], [1], [0, 0, 1, 1], [], []>} : vector<8x128xf32>, vector<128x128xf32>, vector<8x128xf32> -> vector<8x128xf32>
    %331 = arith.addf %328, %330 : vector<8x128xf32>
    %332 = math.tanh %331 : vector<8x128xf32>
    %333 = arith.index_cast %c3_i32_178 : i32 to index
    %c0_233 = arith.constant 0 : index
    %c0_234 = arith.constant 0 : index
    %334 = vector.load %arg7[%333, %c0_233, %c0_234] : memref<8x8x128xf32, #tpu.memory_space<vmem>>, vector<1x8x128xf32>
    %335 = vector.shape_cast %334 : vector<1x8x128xf32> to vector<8x128xf32>
    %336 = vector.shape_cast %332 : vector<8x128xf32> to vector<1x8x128xf32>
    tpu.vector_store %arg7[%333, %c0_233, %c0_234], %336 {strides = array<i32>} : memref<8x8x128xf32, #tpu.memory_space<vmem>>, vector<1x8x128xf32>,
    %337 = arith.truncf %332 : vector<8x128xf32> to vector<8x128xbf16>
    %c0_235 = arith.constant 0 : index
    %c0_236 = arith.constant 0 : index
    %338 = vector.load %arg4[%c0_235, %c0_236] : memref<128x128xbf16, #tpu.memory_space<vmem>>, vector<128x128xbf16>
    %cst_237 = arith.constant dense<0.000000e+00> : vector<8x128xf32>
    %339 = tpu.matmul %337, %338, %cst_237 {dimension_numbers = #tpu.dot_dimension_numbers<[1], [0], [0], [1], [0, 0, 1, 1], [], []>} : vector<8x128xbf16>, vector<128x128xbf16>, vector<8x128xf32> -> vector<8x128xf32>
    %c0_238 = arith.constant 0 : index
    %c0_239 = arith.constant 0 : index
    %340 = vector.load %arg5[%c0_238, %c0_239] : memref<1x128xf32, #tpu.memory_space<vmem>>, vector<1x128xf32>
    %341 = vector.broadcast %340 : vector<1x128xf32> to vector<8x128xf32>
    %342 = arith.addf %339, %341 : vector<8x128xf32>
    %343 = arith.truncf %342 : vector<8x128xf32> to vector<8x128xbf16>
    %344 = arith.index_cast %c3_i32_178 : i32 to index
    %c0_240 = arith.constant 0 : index
    %c0_241 = arith.constant 0 : index
    %345 = vector.load %arg8[%344, %c0_240, %c0_241] : memref<8x8x128xbf16, #tpu.memory_space<vmem>>, vector<1x8x128xbf16>
    %346 = vector.shape_cast %345 : vector<1x8x128xbf16> to vector<8x128xbf16>
    %347 = vector.shape_cast %343 : vector<8x128xbf16> to vector<1x8x128xbf16>
    tpu.vector_store %arg8[%344, %c0_240, %c0_241], %347 {strides = array<i32>} : memref<8x8x128xbf16, #tpu.memory_space<vmem>>, vector<1x8x128xbf16>,
    %c4_i32_242 = arith.constant 4 : i32
    %c8_i32_243 = arith.constant 8 : i32
    %348 = arith.muli %arg0, %c8_i32_243 : i32
    %349 = arith.addi %348, %c4_i32_242 : i32
    %c8_i32_244 = arith.constant 8 : i32
    %350 = arith.muli %349, %c8_i32_244 : i32
    %c0_i32_245 = arith.constant 0 : i32
    %351 = arith.addi %350, %c0_i32_245 : i32
    %352 = arith.index_cast %351 : i32 to index
    %353 = memref.load %arg1[%352] : memref<64xi32, #tpu.memory_space<smem>>
    %354 = arith.index_cast %353 : i32 to index
    %c0_246 = arith.constant 0 : index
    %c0_247 = arith.constant 0 : index
    %355 = vector.load %arg2[%354, %c0_246, %c0_247] : memref<16x1x128xf32, #tpu.memory_space<vmem>>, vector<1x1x128xf32>
    %356 = vector.shape_cast %355 : vector<1x1x128xf32> to vector<1x128xf32>
    %c0_248 = arith.constant 0 : index
    %c0_249 = arith.constant 0 : index
    %357 = vector.load %arg10[%c0_248, %c0_249] : memref<8x128xf32, #tpu.memory_space<vmem>>, vector<1x128xf32>
    tpu.vector_store %arg10[%c0_248, %c0_249], %356 {strides = array<i32>} : memref<8x128xf32, #tpu.memory_space<vmem>>, vector<1x128xf32>,
    %c8_i32_250 = arith.constant 8 : i32
    %358 = arith.muli %349, %c8_i32_250 : i32
    %c1_i32_251 = arith.constant 1 : i32
    %359 = arith.addi %358, %c1_i32_251 : i32
    %360 = arith.index_cast %359 : i32 to index
    %361 = memref.load %arg1[%360] : memref<64xi32, #tpu.memory_space<smem>>
    %362 = arith.index_cast %361 : i32 to index
    %c0_252 = arith.constant 0 : index
    %c0_253 = arith.constant 0 : index
    %363 = vector.load %arg2[%362, %c0_252, %c0_253] : memref<16x1x128xf32, #tpu.memory_space<vmem>>, vector<1x1x128xf32>
    %364 = vector.shape_cast %363 : vector<1x1x128xf32> to vector<1x128xf32>
    %c1_254 = arith.constant 1 : index
    %c0_255 = arith.constant 0 : index
    %365 = vector.load %arg10[%c1_254, %c0_255] : memref<8x128xf32, #tpu.memory_space<vmem>>, vector<1x128xf32>
    tpu.vector_store %arg10[%c1_254, %c0_255], %364 {strides = array<i32>} : memref<8x128xf32, #tpu.memory_space<vmem>>, vector<1x128xf32>,
    %c8_i32_256 = arith.constant 8 : i32
    %366 = arith.muli %349, %c8_i32_256 : i32
    %c2_i32_257 = arith.constant 2 : i32
    %367 = arith.addi %366, %c2_i32_257 : i32
    %368 = arith.index_cast %367 : i32 to index
    %369 = memref.load %arg1[%368] : memref<64xi32, #tpu.memory_space<smem>>
    %370 = arith.index_cast %369 : i32 to index
    %c0_258 = arith.constant 0 : index
    %c0_259 = arith.constant 0 : index
    %371 = vector.load %arg2[%370, %c0_258, %c0_259] : memref<16x1x128xf32, #tpu.memory_space<vmem>>, vector<1x1x128xf32>
    %372 = vector.shape_cast %371 : vector<1x1x128xf32> to vector<1x128xf32>
    %c2_260 = arith.constant 2 : index
    %c0_261 = arith.constant 0 : index
    %373 = vector.load %arg10[%c2_260, %c0_261] : memref<8x128xf32, #tpu.memory_space<vmem>>, vector<1x128xf32>
    tpu.vector_store %arg10[%c2_260, %c0_261], %372 {strides = array<i32>} : memref<8x128xf32, #tpu.memory_space<vmem>>, vector<1x128xf32>,
    %c8_i32_262 = arith.constant 8 : i32
    %374 = arith.muli %349, %c8_i32_262 : i32
    %c3_i32_263 = arith.constant 3 : i32
    %375 = arith.addi %374, %c3_i32_263 : i32
    %376 = arith.index_cast %375 : i32 to index
    %377 = memref.load %arg1[%376] : memref<64xi32, #tpu.memory_space<smem>>
    %378 = arith.index_cast %377 : i32 to index
    %c0_264 = arith.constant 0 : index
    %c0_265 = arith.constant 0 : index
    %379 = vector.load %arg2[%378, %c0_264, %c0_265] : memref<16x1x128xf32, #tpu.memory_space<vmem>>, vector<1x1x128xf32>
    %380 = vector.shape_cast %379 : vector<1x1x128xf32> to vector<1x128xf32>
    %c3_266 = arith.constant 3 : index
    %c0_267 = arith.constant 0 : index
    %381 = vector.load %arg10[%c3_266, %c0_267] : memref<8x128xf32, #tpu.memory_space<vmem>>, vector<1x128xf32>
    tpu.vector_store %arg10[%c3_266, %c0_267], %380 {strides = array<i32>} : memref<8x128xf32, #tpu.memory_space<vmem>>, vector<1x128xf32>,
    %c8_i32_268 = arith.constant 8 : i32
    %382 = arith.muli %349, %c8_i32_268 : i32
    %c4_i32_269 = arith.constant 4 : i32
    %383 = arith.addi %382, %c4_i32_269 : i32
    %384 = arith.index_cast %383 : i32 to index
    %385 = memref.load %arg1[%384] : memref<64xi32, #tpu.memory_space<smem>>
    %386 = arith.index_cast %385 : i32 to index
    %c0_270 = arith.constant 0 : index
    %c0_271 = arith.constant 0 : index
    %387 = vector.load %arg2[%386, %c0_270, %c0_271] : memref<16x1x128xf32, #tpu.memory_space<vmem>>, vector<1x1x128xf32>
    %388 = vector.shape_cast %387 : vector<1x1x128xf32> to vector<1x128xf32>
    %c4_272 = arith.constant 4 : index
    %c0_273 = arith.constant 0 : index
    %389 = vector.load %arg10[%c4_272, %c0_273] : memref<8x128xf32, #tpu.memory_space<vmem>>, vector<1x128xf32>
    tpu.vector_store %arg10[%c4_272, %c0_273], %388 {strides = array<i32>} : memref<8x128xf32, #tpu.memory_space<vmem>>, vector<1x128xf32>,
    %c8_i32_274 = arith.constant 8 : i32
    %390 = arith.muli %349, %c8_i32_274 : i32
    %c5_i32_275 = arith.constant 5 : i32
    %391 = arith.addi %390, %c5_i32_275 : i32
    %392 = arith.index_cast %391 : i32 to index
    %393 = memref.load %arg1[%392] : memref<64xi32, #tpu.memory_space<smem>>
    %394 = arith.index_cast %393 : i32 to index
    %c0_276 = arith.constant 0 : index
    %c0_277 = arith.constant 0 : index
    %395 = vector.load %arg2[%394, %c0_276, %c0_277] : memref<16x1x128xf32, #tpu.memory_space<vmem>>, vector<1x1x128xf32>
    %396 = vector.shape_cast %395 : vector<1x1x128xf32> to vector<1x128xf32>
    %c5_278 = arith.constant 5 : index
    %c0_279 = arith.constant 0 : index
    %397 = vector.load %arg10[%c5_278, %c0_279] : memref<8x128xf32, #tpu.memory_space<vmem>>, vector<1x128xf32>
    tpu.vector_store %arg10[%c5_278, %c0_279], %396 {strides = array<i32>} : memref<8x128xf32, #tpu.memory_space<vmem>>, vector<1x128xf32>,
    %c8_i32_280 = arith.constant 8 : i32
    %398 = arith.muli %349, %c8_i32_280 : i32
    %c6_i32_281 = arith.constant 6 : i32
    %399 = arith.addi %398, %c6_i32_281 : i32
    %400 = arith.index_cast %399 : i32 to index
    %401 = memref.load %arg1[%400] : memref<64xi32, #tpu.memory_space<smem>>
    %402 = arith.index_cast %401 : i32 to index
    %c0_282 = arith.constant 0 : index
    %c0_283 = arith.constant 0 : index
    %403 = vector.load %arg2[%402, %c0_282, %c0_283] : memref<16x1x128xf32, #tpu.memory_space<vmem>>, vector<1x1x128xf32>
    %404 = vector.shape_cast %403 : vector<1x1x128xf32> to vector<1x128xf32>
    %c6_284 = arith.constant 6 : index
    %c0_285 = arith.constant 0 : index
    %405 = vector.load %arg10[%c6_284, %c0_285] : memref<8x128xf32, #tpu.memory_space<vmem>>, vector<1x128xf32>
    tpu.vector_store %arg10[%c6_284, %c0_285], %404 {strides = array<i32>} : memref<8x128xf32, #tpu.memory_space<vmem>>, vector<1x128xf32>,
    %c8_i32_286 = arith.constant 8 : i32
    %406 = arith.muli %349, %c8_i32_286 : i32
    %c7_i32_287 = arith.constant 7 : i32
    %407 = arith.addi %406, %c7_i32_287 : i32
    %408 = arith.index_cast %407 : i32 to index
    %409 = memref.load %arg1[%408] : memref<64xi32, #tpu.memory_space<smem>>
    %410 = arith.index_cast %409 : i32 to index
    %c0_288 = arith.constant 0 : index
    %c0_289 = arith.constant 0 : index
    %411 = vector.load %arg2[%410, %c0_288, %c0_289] : memref<16x1x128xf32, #tpu.memory_space<vmem>>, vector<1x1x128xf32>
    %412 = vector.shape_cast %411 : vector<1x1x128xf32> to vector<1x128xf32>
    %c7_290 = arith.constant 7 : index
    %c0_291 = arith.constant 0 : index
    %413 = vector.load %arg10[%c7_290, %c0_291] : memref<8x128xf32, #tpu.memory_space<vmem>>, vector<1x128xf32>
    tpu.vector_store %arg10[%c7_290, %c0_291], %412 {strides = array<i32>} : memref<8x128xf32, #tpu.memory_space<vmem>>, vector<1x128xf32>,
    %c0_292 = arith.constant 0 : index
    %c0_293 = arith.constant 0 : index
    %414 = vector.load %arg10[%c0_292, %c0_293] : memref<8x128xf32, #tpu.memory_space<vmem>>, vector<8x128xf32>
    %c0_294 = arith.constant 0 : index
    %c0_295 = arith.constant 0 : index
    %415 = vector.load %arg3[%c0_294, %c0_295] : memref<128x128xf32, #tpu.memory_space<vmem>>, vector<128x128xf32>
    %cst_296 = arith.constant dense<0.000000e+00> : vector<8x128xf32>
    %416 = tpu.matmul %332, %415, %cst_296 {dimension_numbers = #tpu.dot_dimension_numbers<[1], [0], [0], [1], [0, 0, 1, 1], [], []>} : vector<8x128xf32>, vector<128x128xf32>, vector<8x128xf32> -> vector<8x128xf32>
    %417 = arith.addf %414, %416 : vector<8x128xf32>
    %418 = math.tanh %417 : vector<8x128xf32>
    %419 = arith.index_cast %c4_i32_242 : i32 to index
    %c0_297 = arith.constant 0 : index
    %c0_298 = arith.constant 0 : index
    %420 = vector.load %arg7[%419, %c0_297, %c0_298] : memref<8x8x128xf32, #tpu.memory_space<vmem>>, vector<1x8x128xf32>
    %421 = vector.shape_cast %420 : vector<1x8x128xf32> to vector<8x128xf32>
    %422 = vector.shape_cast %418 : vector<8x128xf32> to vector<1x8x128xf32>
    tpu.vector_store %arg7[%419, %c0_297, %c0_298], %422 {strides = array<i32>} : memref<8x8x128xf32, #tpu.memory_space<vmem>>, vector<1x8x128xf32>,
    %423 = arith.truncf %418 : vector<8x128xf32> to vector<8x128xbf16>
    %c0_299 = arith.constant 0 : index
    %c0_300 = arith.constant 0 : index
    %424 = vector.load %arg4[%c0_299, %c0_300] : memref<128x128xbf16, #tpu.memory_space<vmem>>, vector<128x128xbf16>
    %cst_301 = arith.constant dense<0.000000e+00> : vector<8x128xf32>
    %425 = tpu.matmul %423, %424, %cst_301 {dimension_numbers = #tpu.dot_dimension_numbers<[1], [0], [0], [1], [0, 0, 1, 1], [], []>} : vector<8x128xbf16>, vector<128x128xbf16>, vector<8x128xf32> -> vector<8x128xf32>
    %c0_302 = arith.constant 0 : index
    %c0_303 = arith.constant 0 : index
    %426 = vector.load %arg5[%c0_302, %c0_303] : memref<1x128xf32, #tpu.memory_space<vmem>>, vector<1x128xf32>
    %427 = vector.broadcast %426 : vector<1x128xf32> to vector<8x128xf32>
    %428 = arith.addf %425, %427 : vector<8x128xf32>
    %429 = arith.truncf %428 : vector<8x128xf32> to vector<8x128xbf16>
    %430 = arith.index_cast %c4_i32_242 : i32 to index
    %c0_304 = arith.constant 0 : index
    %c0_305 = arith.constant 0 : index
    %431 = vector.load %arg8[%430, %c0_304, %c0_305] : memref<8x8x128xbf16, #tpu.memory_space<vmem>>, vector<1x8x128xbf16>
    %432 = vector.shape_cast %431 : vector<1x8x128xbf16> to vector<8x128xbf16>
    %433 = vector.shape_cast %429 : vector<8x128xbf16> to vector<1x8x128xbf16>
    tpu.vector_store %arg8[%430, %c0_304, %c0_305], %433 {strides = array<i32>} : memref<8x8x128xbf16, #tpu.memory_space<vmem>>, vector<1x8x128xbf16>,
    %c5_i32_306 = arith.constant 5 : i32
    %c8_i32_307 = arith.constant 8 : i32
    %434 = arith.muli %arg0, %c8_i32_307 : i32
    %435 = arith.addi %434, %c5_i32_306 : i32
    %c8_i32_308 = arith.constant 8 : i32
    %436 = arith.muli %435, %c8_i32_308 : i32
    %c0_i32_309 = arith.constant 0 : i32
    %437 = arith.addi %436, %c0_i32_309 : i32
    %438 = arith.index_cast %437 : i32 to index
    %439 = memref.load %arg1[%438] : memref<64xi32, #tpu.memory_space<smem>>
    %440 = arith.index_cast %439 : i32 to index
    %c0_310 = arith.constant 0 : index
    %c0_311 = arith.constant 0 : index
    %441 = vector.load %arg2[%440, %c0_310, %c0_311] : memref<16x1x128xf32, #tpu.memory_space<vmem>>, vector<1x1x128xf32>
    %442 = vector.shape_cast %441 : vector<1x1x128xf32> to vector<1x128xf32>
    %c0_312 = arith.constant 0 : index
    %c0_313 = arith.constant 0 : index
    %443 = vector.load %arg10[%c0_312, %c0_313] : memref<8x128xf32, #tpu.memory_space<vmem>>, vector<1x128xf32>
    tpu.vector_store %arg10[%c0_312, %c0_313], %442 {strides = array<i32>} : memref<8x128xf32, #tpu.memory_space<vmem>>, vector<1x128xf32>,
    %c8_i32_314 = arith.constant 8 : i32
    %444 = arith.muli %435, %c8_i32_314 : i32
    %c1_i32_315 = arith.constant 1 : i32
    %445 = arith.addi %444, %c1_i32_315 : i32
    %446 = arith.index_cast %445 : i32 to index
    %447 = memref.load %arg1[%446] : memref<64xi32, #tpu.memory_space<smem>>
    %448 = arith.index_cast %447 : i32 to index
    %c0_316 = arith.constant 0 : index
    %c0_317 = arith.constant 0 : index
    %449 = vector.load %arg2[%448, %c0_316, %c0_317] : memref<16x1x128xf32, #tpu.memory_space<vmem>>, vector<1x1x128xf32>
    %450 = vector.shape_cast %449 : vector<1x1x128xf32> to vector<1x128xf32>
    %c1_318 = arith.constant 1 : index
    %c0_319 = arith.constant 0 : index
    %451 = vector.load %arg10[%c1_318, %c0_319] : memref<8x128xf32, #tpu.memory_space<vmem>>, vector<1x128xf32>
    tpu.vector_store %arg10[%c1_318, %c0_319], %450 {strides = array<i32>} : memref<8x128xf32, #tpu.memory_space<vmem>>, vector<1x128xf32>,
    %c8_i32_320 = arith.constant 8 : i32
    %452 = arith.muli %435, %c8_i32_320 : i32
    %c2_i32_321 = arith.constant 2 : i32
    %453 = arith.addi %452, %c2_i32_321 : i32
    %454 = arith.index_cast %453 : i32 to index
    %455 = memref.load %arg1[%454] : memref<64xi32, #tpu.memory_space<smem>>
    %456 = arith.index_cast %455 : i32 to index
    %c0_322 = arith.constant 0 : index
    %c0_323 = arith.constant 0 : index
    %457 = vector.load %arg2[%456, %c0_322, %c0_323] : memref<16x1x128xf32, #tpu.memory_space<vmem>>, vector<1x1x128xf32>
    %458 = vector.shape_cast %457 : vector<1x1x128xf32> to vector<1x128xf32>
    %c2_324 = arith.constant 2 : index
    %c0_325 = arith.constant 0 : index
    %459 = vector.load %arg10[%c2_324, %c0_325] : memref<8x128xf32, #tpu.memory_space<vmem>>, vector<1x128xf32>
    tpu.vector_store %arg10[%c2_324, %c0_325], %458 {strides = array<i32>} : memref<8x128xf32, #tpu.memory_space<vmem>>, vector<1x128xf32>,
    %c8_i32_326 = arith.constant 8 : i32
    %460 = arith.muli %435, %c8_i32_326 : i32
    %c3_i32_327 = arith.constant 3 : i32
    %461 = arith.addi %460, %c3_i32_327 : i32
    %462 = arith.index_cast %461 : i32 to index
    %463 = memref.load %arg1[%462] : memref<64xi32, #tpu.memory_space<smem>>
    %464 = arith.index_cast %463 : i32 to index
    %c0_328 = arith.constant 0 : index
    %c0_329 = arith.constant 0 : index
    %465 = vector.load %arg2[%464, %c0_328, %c0_329] : memref<16x1x128xf32, #tpu.memory_space<vmem>>, vector<1x1x128xf32>
    %466 = vector.shape_cast %465 : vector<1x1x128xf32> to vector<1x128xf32>
    %c3_330 = arith.constant 3 : index
    %c0_331 = arith.constant 0 : index
    %467 = vector.load %arg10[%c3_330, %c0_331] : memref<8x128xf32, #tpu.memory_space<vmem>>, vector<1x128xf32>
    tpu.vector_store %arg10[%c3_330, %c0_331], %466 {strides = array<i32>} : memref<8x128xf32, #tpu.memory_space<vmem>>, vector<1x128xf32>,
    %c8_i32_332 = arith.constant 8 : i32
    %468 = arith.muli %435, %c8_i32_332 : i32
    %c4_i32_333 = arith.constant 4 : i32
    %469 = arith.addi %468, %c4_i32_333 : i32
    %470 = arith.index_cast %469 : i32 to index
    %471 = memref.load %arg1[%470] : memref<64xi32, #tpu.memory_space<smem>>
    %472 = arith.index_cast %471 : i32 to index
    %c0_334 = arith.constant 0 : index
    %c0_335 = arith.constant 0 : index
    %473 = vector.load %arg2[%472, %c0_334, %c0_335] : memref<16x1x128xf32, #tpu.memory_space<vmem>>, vector<1x1x128xf32>
    %474 = vector.shape_cast %473 : vector<1x1x128xf32> to vector<1x128xf32>
    %c4_336 = arith.constant 4 : index
    %c0_337 = arith.constant 0 : index
    %475 = vector.load %arg10[%c4_336, %c0_337] : memref<8x128xf32, #tpu.memory_space<vmem>>, vector<1x128xf32>
    tpu.vector_store %arg10[%c4_336, %c0_337], %474 {strides = array<i32>} : memref<8x128xf32, #tpu.memory_space<vmem>>, vector<1x128xf32>,
    %c8_i32_338 = arith.constant 8 : i32
    %476 = arith.muli %435, %c8_i32_338 : i32
    %c5_i32_339 = arith.constant 5 : i32
    %477 = arith.addi %476, %c5_i32_339 : i32
    %478 = arith.index_cast %477 : i32 to index
    %479 = memref.load %arg1[%478] : memref<64xi32, #tpu.memory_space<smem>>
    %480 = arith.index_cast %479 : i32 to index
    %c0_340 = arith.constant 0 : index
    %c0_341 = arith.constant 0 : index
    %481 = vector.load %arg2[%480, %c0_340, %c0_341] : memref<16x1x128xf32, #tpu.memory_space<vmem>>, vector<1x1x128xf32>
    %482 = vector.shape_cast %481 : vector<1x1x128xf32> to vector<1x128xf32>
    %c5_342 = arith.constant 5 : index
    %c0_343 = arith.constant 0 : index
    %483 = vector.load %arg10[%c5_342, %c0_343] : memref<8x128xf32, #tpu.memory_space<vmem>>, vector<1x128xf32>
    tpu.vector_store %arg10[%c5_342, %c0_343], %482 {strides = array<i32>} : memref<8x128xf32, #tpu.memory_space<vmem>>, vector<1x128xf32>,
    %c8_i32_344 = arith.constant 8 : i32
    %484 = arith.muli %435, %c8_i32_344 : i32
    %c6_i32_345 = arith.constant 6 : i32
    %485 = arith.addi %484, %c6_i32_345 : i32
    %486 = arith.index_cast %485 : i32 to index
    %487 = memref.load %arg1[%486] : memref<64xi32, #tpu.memory_space<smem>>
    %488 = arith.index_cast %487 : i32 to index
    %c0_346 = arith.constant 0 : index
    %c0_347 = arith.constant 0 : index
    %489 = vector.load %arg2[%488, %c0_346, %c0_347] : memref<16x1x128xf32, #tpu.memory_space<vmem>>, vector<1x1x128xf32>
    %490 = vector.shape_cast %489 : vector<1x1x128xf32> to vector<1x128xf32>
    %c6_348 = arith.constant 6 : index
    %c0_349 = arith.constant 0 : index
    %491 = vector.load %arg10[%c6_348, %c0_349] : memref<8x128xf32, #tpu.memory_space<vmem>>, vector<1x128xf32>
    tpu.vector_store %arg10[%c6_348, %c0_349], %490 {strides = array<i32>} : memref<8x128xf32, #tpu.memory_space<vmem>>, vector<1x128xf32>,
    %c8_i32_350 = arith.constant 8 : i32
    %492 = arith.muli %435, %c8_i32_350 : i32
    %c7_i32_351 = arith.constant 7 : i32
    %493 = arith.addi %492, %c7_i32_351 : i32
    %494 = arith.index_cast %493 : i32 to index
    %495 = memref.load %arg1[%494] : memref<64xi32, #tpu.memory_space<smem>>
    %496 = arith.index_cast %495 : i32 to index
    %c0_352 = arith.constant 0 : index
    %c0_353 = arith.constant 0 : index
    %497 = vector.load %arg2[%496, %c0_352, %c0_353] : memref<16x1x128xf32, #tpu.memory_space<vmem>>, vector<1x1x128xf32>
    %498 = vector.shape_cast %497 : vector<1x1x128xf32> to vector<1x128xf32>
    %c7_354 = arith.constant 7 : index
    %c0_355 = arith.constant 0 : index
    %499 = vector.load %arg10[%c7_354, %c0_355] : memref<8x128xf32, #tpu.memory_space<vmem>>, vector<1x128xf32>
    tpu.vector_store %arg10[%c7_354, %c0_355], %498 {strides = array<i32>} : memref<8x128xf32, #tpu.memory_space<vmem>>, vector<1x128xf32>,
    %c0_356 = arith.constant 0 : index
    %c0_357 = arith.constant 0 : index
    %500 = vector.load %arg10[%c0_356, %c0_357] : memref<8x128xf32, #tpu.memory_space<vmem>>, vector<8x128xf32>
    %c0_358 = arith.constant 0 : index
    %c0_359 = arith.constant 0 : index
    %501 = vector.load %arg3[%c0_358, %c0_359] : memref<128x128xf32, #tpu.memory_space<vmem>>, vector<128x128xf32>
    %cst_360 = arith.constant dense<0.000000e+00> : vector<8x128xf32>
    %502 = tpu.matmul %418, %501, %cst_360 {dimension_numbers = #tpu.dot_dimension_numbers<[1], [0], [0], [1], [0, 0, 1, 1], [], []>} : vector<8x128xf32>, vector<128x128xf32>, vector<8x128xf32> -> vector<8x128xf32>
    %503 = arith.addf %500, %502 : vector<8x128xf32>
    %504 = math.tanh %503 : vector<8x128xf32>
    %505 = arith.index_cast %c5_i32_306 : i32 to index
    %c0_361 = arith.constant 0 : index
    %c0_362 = arith.constant 0 : index
    %506 = vector.load %arg7[%505, %c0_361, %c0_362] : memref<8x8x128xf32, #tpu.memory_space<vmem>>, vector<1x8x128xf32>
    %507 = vector.shape_cast %506 : vector<1x8x128xf32> to vector<8x128xf32>
    %508 = vector.shape_cast %504 : vector<8x128xf32> to vector<1x8x128xf32>
    tpu.vector_store %arg7[%505, %c0_361, %c0_362], %508 {strides = array<i32>} : memref<8x8x128xf32, #tpu.memory_space<vmem>>, vector<1x8x128xf32>,
    %509 = arith.truncf %504 : vector<8x128xf32> to vector<8x128xbf16>
    %c0_363 = arith.constant 0 : index
    %c0_364 = arith.constant 0 : index
    %510 = vector.load %arg4[%c0_363, %c0_364] : memref<128x128xbf16, #tpu.memory_space<vmem>>, vector<128x128xbf16>
    %cst_365 = arith.constant dense<0.000000e+00> : vector<8x128xf32>
    %511 = tpu.matmul %509, %510, %cst_365 {dimension_numbers = #tpu.dot_dimension_numbers<[1], [0], [0], [1], [0, 0, 1, 1], [], []>} : vector<8x128xbf16>, vector<128x128xbf16>, vector<8x128xf32> -> vector<8x128xf32>
    %c0_366 = arith.constant 0 : index
    %c0_367 = arith.constant 0 : index
    %512 = vector.load %arg5[%c0_366, %c0_367] : memref<1x128xf32, #tpu.memory_space<vmem>>, vector<1x128xf32>
    %513 = vector.broadcast %512 : vector<1x128xf32> to vector<8x128xf32>
    %514 = arith.addf %511, %513 : vector<8x128xf32>
    %515 = arith.truncf %514 : vector<8x128xf32> to vector<8x128xbf16>
    %516 = arith.index_cast %c5_i32_306 : i32 to index
    %c0_368 = arith.constant 0 : index
    %c0_369 = arith.constant 0 : index
    %517 = vector.load %arg8[%516, %c0_368, %c0_369] : memref<8x8x128xbf16, #tpu.memory_space<vmem>>, vector<1x8x128xbf16>
    %518 = vector.shape_cast %517 : vector<1x8x128xbf16> to vector<8x128xbf16>
    %519 = vector.shape_cast %515 : vector<8x128xbf16> to vector<1x8x128xbf16>
    tpu.vector_store %arg8[%516, %c0_368, %c0_369], %519 {strides = array<i32>} : memref<8x8x128xbf16, #tpu.memory_space<vmem>>, vector<1x8x128xbf16>,
    %c6_i32_370 = arith.constant 6 : i32
    %c8_i32_371 = arith.constant 8 : i32
    %520 = arith.muli %arg0, %c8_i32_371 : i32
    %521 = arith.addi %520, %c6_i32_370 : i32
    %c8_i32_372 = arith.constant 8 : i32
    %522 = arith.muli %521, %c8_i32_372 : i32
    %c0_i32_373 = arith.constant 0 : i32
    %523 = arith.addi %522, %c0_i32_373 : i32
    %524 = arith.index_cast %523 : i32 to index
    %525 = memref.load %arg1[%524] : memref<64xi32, #tpu.memory_space<smem>>
    %526 = arith.index_cast %525 : i32 to index
    %c0_374 = arith.constant 0 : index
    %c0_375 = arith.constant 0 : index
    %527 = vector.load %arg2[%526, %c0_374, %c0_375] : memref<16x1x128xf32, #tpu.memory_space<vmem>>, vector<1x1x128xf32>
    %528 = vector.shape_cast %527 : vector<1x1x128xf32> to vector<1x128xf32>
    %c0_376 = arith.constant 0 : index
    %c0_377 = arith.constant 0 : index
    %529 = vector.load %arg10[%c0_376, %c0_377] : memref<8x128xf32, #tpu.memory_space<vmem>>, vector<1x128xf32>
    tpu.vector_store %arg10[%c0_376, %c0_377], %528 {strides = array<i32>} : memref<8x128xf32, #tpu.memory_space<vmem>>, vector<1x128xf32>,
    %c8_i32_378 = arith.constant 8 : i32
    %530 = arith.muli %521, %c8_i32_378 : i32
    %c1_i32_379 = arith.constant 1 : i32
    %531 = arith.addi %530, %c1_i32_379 : i32
    %532 = arith.index_cast %531 : i32 to index
    %533 = memref.load %arg1[%532] : memref<64xi32, #tpu.memory_space<smem>>
    %534 = arith.index_cast %533 : i32 to index
    %c0_380 = arith.constant 0 : index
    %c0_381 = arith.constant 0 : index
    %535 = vector.load %arg2[%534, %c0_380, %c0_381] : memref<16x1x128xf32, #tpu.memory_space<vmem>>, vector<1x1x128xf32>
    %536 = vector.shape_cast %535 : vector<1x1x128xf32> to vector<1x128xf32>
    %c1_382 = arith.constant 1 : index
    %c0_383 = arith.constant 0 : index
    %537 = vector.load %arg10[%c1_382, %c0_383] : memref<8x128xf32, #tpu.memory_space<vmem>>, vector<1x128xf32>
    tpu.vector_store %arg10[%c1_382, %c0_383], %536 {strides = array<i32>} : memref<8x128xf32, #tpu.memory_space<vmem>>, vector<1x128xf32>,
    %c8_i32_384 = arith.constant 8 : i32
    %538 = arith.muli %521, %c8_i32_384 : i32
    %c2_i32_385 = arith.constant 2 : i32
    %539 = arith.addi %538, %c2_i32_385 : i32
    %540 = arith.index_cast %539 : i32 to index
    %541 = memref.load %arg1[%540] : memref<64xi32, #tpu.memory_space<smem>>
    %542 = arith.index_cast %541 : i32 to index
    %c0_386 = arith.constant 0 : index
    %c0_387 = arith.constant 0 : index
    %543 = vector.load %arg2[%542, %c0_386, %c0_387] : memref<16x1x128xf32, #tpu.memory_space<vmem>>, vector<1x1x128xf32>
    %544 = vector.shape_cast %543 : vector<1x1x128xf32> to vector<1x128xf32>
    %c2_388 = arith.constant 2 : index
    %c0_389 = arith.constant 0 : index
    %545 = vector.load %arg10[%c2_388, %c0_389] : memref<8x128xf32, #tpu.memory_space<vmem>>, vector<1x128xf32>
    tpu.vector_store %arg10[%c2_388, %c0_389], %544 {strides = array<i32>} : memref<8x128xf32, #tpu.memory_space<vmem>>, vector<1x128xf32>,
    %c8_i32_390 = arith.constant 8 : i32
    %546 = arith.muli %521, %c8_i32_390 : i32
    %c3_i32_391 = arith.constant 3 : i32
    %547 = arith.addi %546, %c3_i32_391 : i32
    %548 = arith.index_cast %547 : i32 to index
    %549 = memref.load %arg1[%548] : memref<64xi32, #tpu.memory_space<smem>>
    %550 = arith.index_cast %549 : i32 to index
    %c0_392 = arith.constant 0 : index
    %c0_393 = arith.constant 0 : index
    %551 = vector.load %arg2[%550, %c0_392, %c0_393] : memref<16x1x128xf32, #tpu.memory_space<vmem>>, vector<1x1x128xf32>
    %552 = vector.shape_cast %551 : vector<1x1x128xf32> to vector<1x128xf32>
    %c3_394 = arith.constant 3 : index
    %c0_395 = arith.constant 0 : index
    %553 = vector.load %arg10[%c3_394, %c0_395] : memref<8x128xf32, #tpu.memory_space<vmem>>, vector<1x128xf32>
    tpu.vector_store %arg10[%c3_394, %c0_395], %552 {strides = array<i32>} : memref<8x128xf32, #tpu.memory_space<vmem>>, vector<1x128xf32>,
    %c8_i32_396 = arith.constant 8 : i32
    %554 = arith.muli %521, %c8_i32_396 : i32
    %c4_i32_397 = arith.constant 4 : i32
    %555 = arith.addi %554, %c4_i32_397 : i32
    %556 = arith.index_cast %555 : i32 to index
    %557 = memref.load %arg1[%556] : memref<64xi32, #tpu.memory_space<smem>>
    %558 = arith.index_cast %557 : i32 to index
    %c0_398 = arith.constant 0 : index
    %c0_399 = arith.constant 0 : index
    %559 = vector.load %arg2[%558, %c0_398, %c0_399] : memref<16x1x128xf32, #tpu.memory_space<vmem>>, vector<1x1x128xf32>
    %560 = vector.shape_cast %559 : vector<1x1x128xf32> to vector<1x128xf32>
    %c4_400 = arith.constant 4 : index
    %c0_401 = arith.constant 0 : index
    %561 = vector.load %arg10[%c4_400, %c0_401] : memref<8x128xf32, #tpu.memory_space<vmem>>, vector<1x128xf32>
    tpu.vector_store %arg10[%c4_400, %c0_401], %560 {strides = array<i32>} : memref<8x128xf32, #tpu.memory_space<vmem>>, vector<1x128xf32>,
    %c8_i32_402 = arith.constant 8 : i32
    %562 = arith.muli %521, %c8_i32_402 : i32
    %c5_i32_403 = arith.constant 5 : i32
    %563 = arith.addi %562, %c5_i32_403 : i32
    %564 = arith.index_cast %563 : i32 to index
    %565 = memref.load %arg1[%564] : memref<64xi32, #tpu.memory_space<smem>>
    %566 = arith.index_cast %565 : i32 to index
    %c0_404 = arith.constant 0 : index
    %c0_405 = arith.constant 0 : index
    %567 = vector.load %arg2[%566, %c0_404, %c0_405] : memref<16x1x128xf32, #tpu.memory_space<vmem>>, vector<1x1x128xf32>
    %568 = vector.shape_cast %567 : vector<1x1x128xf32> to vector<1x128xf32>
    %c5_406 = arith.constant 5 : index
    %c0_407 = arith.constant 0 : index
    %569 = vector.load %arg10[%c5_406, %c0_407] : memref<8x128xf32, #tpu.memory_space<vmem>>, vector<1x128xf32>
    tpu.vector_store %arg10[%c5_406, %c0_407], %568 {strides = array<i32>} : memref<8x128xf32, #tpu.memory_space<vmem>>, vector<1x128xf32>,
    %c8_i32_408 = arith.constant 8 : i32
    %570 = arith.muli %521, %c8_i32_408 : i32
    %c6_i32_409 = arith.constant 6 : i32
    %571 = arith.addi %570, %c6_i32_409 : i32
    %572 = arith.index_cast %571 : i32 to index
    %573 = memref.load %arg1[%572] : memref<64xi32, #tpu.memory_space<smem>>
    %574 = arith.index_cast %573 : i32 to index
    %c0_410 = arith.constant 0 : index
    %c0_411 = arith.constant 0 : index
    %575 = vector.load %arg2[%574, %c0_410, %c0_411] : memref<16x1x128xf32, #tpu.memory_space<vmem>>, vector<1x1x128xf32>
    %576 = vector.shape_cast %575 : vector<1x1x128xf32> to vector<1x128xf32>
    %c6_412 = arith.constant 6 : index
    %c0_413 = arith.constant 0 : index
    %577 = vector.load %arg10[%c6_412, %c0_413] : memref<8x128xf32, #tpu.memory_space<vmem>>, vector<1x128xf32>
    tpu.vector_store %arg10[%c6_412, %c0_413], %576 {strides = array<i32>} : memref<8x128xf32, #tpu.memory_space<vmem>>, vector<1x128xf32>,
    %c8_i32_414 = arith.constant 8 : i32
    %578 = arith.muli %521, %c8_i32_414 : i32
    %c7_i32_415 = arith.constant 7 : i32
    %579 = arith.addi %578, %c7_i32_415 : i32
    %580 = arith.index_cast %579 : i32 to index
    %581 = memref.load %arg1[%580] : memref<64xi32, #tpu.memory_space<smem>>
    %582 = arith.index_cast %581 : i32 to index
    %c0_416 = arith.constant 0 : index
    %c0_417 = arith.constant 0 : index
    %583 = vector.load %arg2[%582, %c0_416, %c0_417] : memref<16x1x128xf32, #tpu.memory_space<vmem>>, vector<1x1x128xf32>
    %584 = vector.shape_cast %583 : vector<1x1x128xf32> to vector<1x128xf32>
    %c7_418 = arith.constant 7 : index
    %c0_419 = arith.constant 0 : index
    %585 = vector.load %arg10[%c7_418, %c0_419] : memref<8x128xf32, #tpu.memory_space<vmem>>, vector<1x128xf32>
    tpu.vector_store %arg10[%c7_418, %c0_419], %584 {strides = array<i32>} : memref<8x128xf32, #tpu.memory_space<vmem>>, vector<1x128xf32>,
    %c0_420 = arith.constant 0 : index
    %c0_421 = arith.constant 0 : index
    %586 = vector.load %arg10[%c0_420, %c0_421] : memref<8x128xf32, #tpu.memory_space<vmem>>, vector<8x128xf32>
    %c0_422 = arith.constant 0 : index
    %c0_423 = arith.constant 0 : index
    %587 = vector.load %arg3[%c0_422, %c0_423] : memref<128x128xf32, #tpu.memory_space<vmem>>, vector<128x128xf32>
    %cst_424 = arith.constant dense<0.000000e+00> : vector<8x128xf32>
    %588 = tpu.matmul %504, %587, %cst_424 {dimension_numbers = #tpu.dot_dimension_numbers<[1], [0], [0], [1], [0, 0, 1, 1], [], []>} : vector<8x128xf32>, vector<128x128xf32>, vector<8x128xf32> -> vector<8x128xf32>
    %589 = arith.addf %586, %588 : vector<8x128xf32>
    %590 = math.tanh %589 : vector<8x128xf32>
    %591 = arith.index_cast %c6_i32_370 : i32 to index
    %c0_425 = arith.constant 0 : index
    %c0_426 = arith.constant 0 : index
    %592 = vector.load %arg7[%591, %c0_425, %c0_426] : memref<8x8x128xf32, #tpu.memory_space<vmem>>, vector<1x8x128xf32>
    %593 = vector.shape_cast %592 : vector<1x8x128xf32> to vector<8x128xf32>
    %594 = vector.shape_cast %590 : vector<8x128xf32> to vector<1x8x128xf32>
    tpu.vector_store %arg7[%591, %c0_425, %c0_426], %594 {strides = array<i32>} : memref<8x8x128xf32, #tpu.memory_space<vmem>>, vector<1x8x128xf32>,
    %595 = arith.truncf %590 : vector<8x128xf32> to vector<8x128xbf16>
    %c0_427 = arith.constant 0 : index
    %c0_428 = arith.constant 0 : index
    %596 = vector.load %arg4[%c0_427, %c0_428] : memref<128x128xbf16, #tpu.memory_space<vmem>>, vector<128x128xbf16>
    %cst_429 = arith.constant dense<0.000000e+00> : vector<8x128xf32>
    %597 = tpu.matmul %595, %596, %cst_429 {dimension_numbers = #tpu.dot_dimension_numbers<[1], [0], [0], [1], [0, 0, 1, 1], [], []>} : vector<8x128xbf16>, vector<128x128xbf16>, vector<8x128xf32> -> vector<8x128xf32>
    %c0_430 = arith.constant 0 : index
    %c0_431 = arith.constant 0 : index
    %598 = vector.load %arg5[%c0_430, %c0_431] : memref<1x128xf32, #tpu.memory_space<vmem>>, vector<1x128xf32>
    %599 = vector.broadcast %598 : vector<1x128xf32> to vector<8x128xf32>
    %600 = arith.addf %597, %599 : vector<8x128xf32>
    %601 = arith.truncf %600 : vector<8x128xf32> to vector<8x128xbf16>
    %602 = arith.index_cast %c6_i32_370 : i32 to index
    %c0_432 = arith.constant 0 : index
    %c0_433 = arith.constant 0 : index
    %603 = vector.load %arg8[%602, %c0_432, %c0_433] : memref<8x8x128xbf16, #tpu.memory_space<vmem>>, vector<1x8x128xbf16>
    %604 = vector.shape_cast %603 : vector<1x8x128xbf16> to vector<8x128xbf16>
    %605 = vector.shape_cast %601 : vector<8x128xbf16> to vector<1x8x128xbf16>
    tpu.vector_store %arg8[%602, %c0_432, %c0_433], %605 {strides = array<i32>} : memref<8x8x128xbf16, #tpu.memory_space<vmem>>, vector<1x8x128xbf16>,
    %c7_i32_434 = arith.constant 7 : i32
    %c8_i32_435 = arith.constant 8 : i32
    %606 = arith.muli %arg0, %c8_i32_435 : i32
    %607 = arith.addi %606, %c7_i32_434 : i32
    %c8_i32_436 = arith.constant 8 : i32
    %608 = arith.muli %607, %c8_i32_436 : i32
    %c0_i32_437 = arith.constant 0 : i32
    %609 = arith.addi %608, %c0_i32_437 : i32
    %610 = arith.index_cast %609 : i32 to index
    %611 = memref.load %arg1[%610] : memref<64xi32, #tpu.memory_space<smem>>
    %612 = arith.index_cast %611 : i32 to index
    %c0_438 = arith.constant 0 : index
    %c0_439 = arith.constant 0 : index
    %613 = vector.load %arg2[%612, %c0_438, %c0_439] : memref<16x1x128xf32, #tpu.memory_space<vmem>>, vector<1x1x128xf32>
    %614 = vector.shape_cast %613 : vector<1x1x128xf32> to vector<1x128xf32>
    %c0_440 = arith.constant 0 : index
    %c0_441 = arith.constant 0 : index
    %615 = vector.load %arg10[%c0_440, %c0_441] : memref<8x128xf32, #tpu.memory_space<vmem>>, vector<1x128xf32>
    tpu.vector_store %arg10[%c0_440, %c0_441], %614 {strides = array<i32>} : memref<8x128xf32, #tpu.memory_space<vmem>>, vector<1x128xf32>,
    %c8_i32_442 = arith.constant 8 : i32
    %616 = arith.muli %607, %c8_i32_442 : i32
    %c1_i32_443 = arith.constant 1 : i32
    %617 = arith.addi %616, %c1_i32_443 : i32
    %618 = arith.index_cast %617 : i32 to index
    %619 = memref.load %arg1[%618] : memref<64xi32, #tpu.memory_space<smem>>
    %620 = arith.index_cast %619 : i32 to index
    %c0_444 = arith.constant 0 : index
    %c0_445 = arith.constant 0 : index
    %621 = vector.load %arg2[%620, %c0_444, %c0_445] : memref<16x1x128xf32, #tpu.memory_space<vmem>>, vector<1x1x128xf32>
    %622 = vector.shape_cast %621 : vector<1x1x128xf32> to vector<1x128xf32>
    %c1_446 = arith.constant 1 : index
    %c0_447 = arith.constant 0 : index
    %623 = vector.load %arg10[%c1_446, %c0_447] : memref<8x128xf32, #tpu.memory_space<vmem>>, vector<1x128xf32>
    tpu.vector_store %arg10[%c1_446, %c0_447], %622 {strides = array<i32>} : memref<8x128xf32, #tpu.memory_space<vmem>>, vector<1x128xf32>,
    %c8_i32_448 = arith.constant 8 : i32
    %624 = arith.muli %607, %c8_i32_448 : i32
    %c2_i32_449 = arith.constant 2 : i32
    %625 = arith.addi %624, %c2_i32_449 : i32
    %626 = arith.index_cast %625 : i32 to index
    %627 = memref.load %arg1[%626] : memref<64xi32, #tpu.memory_space<smem>>
    %628 = arith.index_cast %627 : i32 to index
    %c0_450 = arith.constant 0 : index
    %c0_451 = arith.constant 0 : index
    %629 = vector.load %arg2[%628, %c0_450, %c0_451] : memref<16x1x128xf32, #tpu.memory_space<vmem>>, vector<1x1x128xf32>
    %630 = vector.shape_cast %629 : vector<1x1x128xf32> to vector<1x128xf32>
    %c2_452 = arith.constant 2 : index
    %c0_453 = arith.constant 0 : index
    %631 = vector.load %arg10[%c2_452, %c0_453] : memref<8x128xf32, #tpu.memory_space<vmem>>, vector<1x128xf32>
    tpu.vector_store %arg10[%c2_452, %c0_453], %630 {strides = array<i32>} : memref<8x128xf32, #tpu.memory_space<vmem>>, vector<1x128xf32>,
    %c8_i32_454 = arith.constant 8 : i32
    %632 = arith.muli %607, %c8_i32_454 : i32
    %c3_i32_455 = arith.constant 3 : i32
    %633 = arith.addi %632, %c3_i32_455 : i32
    %634 = arith.index_cast %633 : i32 to index
    %635 = memref.load %arg1[%634] : memref<64xi32, #tpu.memory_space<smem>>
    %636 = arith.index_cast %635 : i32 to index
    %c0_456 = arith.constant 0 : index
    %c0_457 = arith.constant 0 : index
    %637 = vector.load %arg2[%636, %c0_456, %c0_457] : memref<16x1x128xf32, #tpu.memory_space<vmem>>, vector<1x1x128xf32>
    %638 = vector.shape_cast %637 : vector<1x1x128xf32> to vector<1x128xf32>
    %c3_458 = arith.constant 3 : index
    %c0_459 = arith.constant 0 : index
    %639 = vector.load %arg10[%c3_458, %c0_459] : memref<8x128xf32, #tpu.memory_space<vmem>>, vector<1x128xf32>
    tpu.vector_store %arg10[%c3_458, %c0_459], %638 {strides = array<i32>} : memref<8x128xf32, #tpu.memory_space<vmem>>, vector<1x128xf32>,
    %c8_i32_460 = arith.constant 8 : i32
    %640 = arith.muli %607, %c8_i32_460 : i32
    %c4_i32_461 = arith.constant 4 : i32
    %641 = arith.addi %640, %c4_i32_461 : i32
    %642 = arith.index_cast %641 : i32 to index
    %643 = memref.load %arg1[%642] : memref<64xi32, #tpu.memory_space<smem>>
    %644 = arith.index_cast %643 : i32 to index
    %c0_462 = arith.constant 0 : index
    %c0_463 = arith.constant 0 : index
    %645 = vector.load %arg2[%644, %c0_462, %c0_463] : memref<16x1x128xf32, #tpu.memory_space<vmem>>, vector<1x1x128xf32>
    %646 = vector.shape_cast %645 : vector<1x1x128xf32> to vector<1x128xf32>
    %c4_464 = arith.constant 4 : index
    %c0_465 = arith.constant 0 : index
    %647 = vector.load %arg10[%c4_464, %c0_465] : memref<8x128xf32, #tpu.memory_space<vmem>>, vector<1x128xf32>
    tpu.vector_store %arg10[%c4_464, %c0_465], %646 {strides = array<i32>} : memref<8x128xf32, #tpu.memory_space<vmem>>, vector<1x128xf32>,
    %c8_i32_466 = arith.constant 8 : i32
    %648 = arith.muli %607, %c8_i32_466 : i32
    %c5_i32_467 = arith.constant 5 : i32
    %649 = arith.addi %648, %c5_i32_467 : i32
    %650 = arith.index_cast %649 : i32 to index
    %651 = memref.load %arg1[%650] : memref<64xi32, #tpu.memory_space<smem>>
    %652 = arith.index_cast %651 : i32 to index
    %c0_468 = arith.constant 0 : index
    %c0_469 = arith.constant 0 : index
    %653 = vector.load %arg2[%652, %c0_468, %c0_469] : memref<16x1x128xf32, #tpu.memory_space<vmem>>, vector<1x1x128xf32>
    %654 = vector.shape_cast %653 : vector<1x1x128xf32> to vector<1x128xf32>
    %c5_470 = arith.constant 5 : index
    %c0_471 = arith.constant 0 : index
    %655 = vector.load %arg10[%c5_470, %c0_471] : memref<8x128xf32, #tpu.memory_space<vmem>>, vector<1x128xf32>
    tpu.vector_store %arg10[%c5_470, %c0_471], %654 {strides = array<i32>} : memref<8x128xf32, #tpu.memory_space<vmem>>, vector<1x128xf32>,
    %c8_i32_472 = arith.constant 8 : i32
    %656 = arith.muli %607, %c8_i32_472 : i32
    %c6_i32_473 = arith.constant 6 : i32
    %657 = arith.addi %656, %c6_i32_473 : i32
    %658 = arith.index_cast %657 : i32 to index
    %659 = memref.load %arg1[%658] : memref<64xi32, #tpu.memory_space<smem>>
    %660 = arith.index_cast %659 : i32 to index
    %c0_474 = arith.constant 0 : index
    %c0_475 = arith.constant 0 : index
    %661 = vector.load %arg2[%660, %c0_474, %c0_475] : memref<16x1x128xf32, #tpu.memory_space<vmem>>, vector<1x1x128xf32>
    %662 = vector.shape_cast %661 : vector<1x1x128xf32> to vector<1x128xf32>
    %c6_476 = arith.constant 6 : index
    %c0_477 = arith.constant 0 : index
    %663 = vector.load %arg10[%c6_476, %c0_477] : memref<8x128xf32, #tpu.memory_space<vmem>>, vector<1x128xf32>
    tpu.vector_store %arg10[%c6_476, %c0_477], %662 {strides = array<i32>} : memref<8x128xf32, #tpu.memory_space<vmem>>, vector<1x128xf32>,
    %c8_i32_478 = arith.constant 8 : i32
    %664 = arith.muli %607, %c8_i32_478 : i32
    %c7_i32_479 = arith.constant 7 : i32
    %665 = arith.addi %664, %c7_i32_479 : i32
    %666 = arith.index_cast %665 : i32 to index
    %667 = memref.load %arg1[%666] : memref<64xi32, #tpu.memory_space<smem>>
    %668 = arith.index_cast %667 : i32 to index
    %c0_480 = arith.constant 0 : index
    %c0_481 = arith.constant 0 : index
    %669 = vector.load %arg2[%668, %c0_480, %c0_481] : memref<16x1x128xf32, #tpu.memory_space<vmem>>, vector<1x1x128xf32>
    %670 = vector.shape_cast %669 : vector<1x1x128xf32> to vector<1x128xf32>
    %c7_482 = arith.constant 7 : index
    %c0_483 = arith.constant 0 : index
    %671 = vector.load %arg10[%c7_482, %c0_483] : memref<8x128xf32, #tpu.memory_space<vmem>>, vector<1x128xf32>
    tpu.vector_store %arg10[%c7_482, %c0_483], %670 {strides = array<i32>} : memref<8x128xf32, #tpu.memory_space<vmem>>, vector<1x128xf32>,
    %c0_484 = arith.constant 0 : index
    %c0_485 = arith.constant 0 : index
    %672 = vector.load %arg10[%c0_484, %c0_485] : memref<8x128xf32, #tpu.memory_space<vmem>>, vector<8x128xf32>
    %c0_486 = arith.constant 0 : index
    %c0_487 = arith.constant 0 : index
    %673 = vector.load %arg3[%c0_486, %c0_487] : memref<128x128xf32, #tpu.memory_space<vmem>>, vector<128x128xf32>
    %cst_488 = arith.constant dense<0.000000e+00> : vector<8x128xf32>
    %674 = tpu.matmul %590, %673, %cst_488 {dimension_numbers = #tpu.dot_dimension_numbers<[1], [0], [0], [1], [0, 0, 1, 1], [], []>} : vector<8x128xf32>, vector<128x128xf32>, vector<8x128xf32> -> vector<8x128xf32>
    %675 = arith.addf %672, %674 : vector<8x128xf32>
    %676 = math.tanh %675 : vector<8x128xf32>
    %677 = arith.index_cast %c7_i32_434 : i32 to index
    %c0_489 = arith.constant 0 : index
    %c0_490 = arith.constant 0 : index
    %678 = vector.load %arg7[%677, %c0_489, %c0_490] : memref<8x8x128xf32, #tpu.memory_space<vmem>>, vector<1x8x128xf32>
    %679 = vector.shape_cast %678 : vector<1x8x128xf32> to vector<8x128xf32>
    %680 = vector.shape_cast %676 : vector<8x128xf32> to vector<1x8x128xf32>
    tpu.vector_store %arg7[%677, %c0_489, %c0_490], %680 {strides = array<i32>} : memref<8x8x128xf32, #tpu.memory_space<vmem>>, vector<1x8x128xf32>,
    %681 = arith.truncf %676 : vector<8x128xf32> to vector<8x128xbf16>
    %c0_491 = arith.constant 0 : index
    %c0_492 = arith.constant 0 : index
    %682 = vector.load %arg4[%c0_491, %c0_492] : memref<128x128xbf16, #tpu.memory_space<vmem>>, vector<128x128xbf16>
    %cst_493 = arith.constant dense<0.000000e+00> : vector<8x128xf32>
    %683 = tpu.matmul %681, %682, %cst_493 {dimension_numbers = #tpu.dot_dimension_numbers<[1], [0], [0], [1], [0, 0, 1, 1], [], []>} : vector<8x128xbf16>, vector<128x128xbf16>, vector<8x128xf32> -> vector<8x128xf32>
    %c0_494 = arith.constant 0 : index
    %c0_495 = arith.constant 0 : index
    %684 = vector.load %arg5[%c0_494, %c0_495] : memref<1x128xf32, #tpu.memory_space<vmem>>, vector<1x128xf32>
    %685 = vector.broadcast %684 : vector<1x128xf32> to vector<8x128xf32>
    %686 = arith.addf %683, %685 : vector<8x128xf32>
    %687 = arith.truncf %686 : vector<8x128xf32> to vector<8x128xbf16>
    %688 = arith.index_cast %c7_i32_434 : i32 to index
    %c0_496 = arith.constant 0 : index
    %c0_497 = arith.constant 0 : index
    %689 = vector.load %arg8[%688, %c0_496, %c0_497] : memref<8x8x128xbf16, #tpu.memory_space<vmem>>, vector<1x8x128xbf16>
    %690 = vector.shape_cast %689 : vector<1x8x128xbf16> to vector<8x128xbf16>
    %691 = vector.shape_cast %687 : vector<8x128xbf16> to vector<1x8x128xbf16>
    tpu.vector_store %arg8[%688, %c0_496, %c0_497], %691 {strides = array<i32>} : memref<8x8x128xbf16, #tpu.memory_space<vmem>>, vector<1x8x128xbf16>,
    %c8_i32_498 = arith.constant 8 : i32
    %c0_499 = arith.constant 0 : index
    %c0_500 = arith.constant 0 : index
    %692 = vector.load %arg9[%c0_499, %c0_500] : memref<8x128xf32, #tpu.memory_space<vmem>>, vector<8x128xf32>
    tpu.vector_store %arg9[%c0_499, %c0_500], %676 {strides = array<i32>} : memref<8x128xf32, #tpu.memory_space<vmem>>, vector<8x128xf32>,
    return
  }
  func.func @transform_0(%arg0: i32, %arg1: memref<64xi32, #tpu.memory_space<smem>>) -> (i32, i32, i32) {
    %c0_i32 = arith.constant 0 : i32
    %c0_i32_0 = arith.constant 0 : i32
    %c0_i32_1 = arith.constant 0 : i32
    %c0_i32_2 = arith.constant 0 : i32
    return %c0_i32, %c0_i32_0, %c0_i32_1 : i32, i32, i32
  }
  func.func @transform_1(%arg0: i32, %arg1: memref<64xi32, #tpu.memory_space<smem>>) -> (i32, i32) {
    %c0_i32 = arith.constant 0 : i32
    %c0_i32_0 = arith.constant 0 : i32
    %c0_i32_1 = arith.constant 0 : i32
    return %c0_i32, %c0_i32_0 : i32, i32
  }
  func.func @transform_2(%arg0: i32, %arg1: memref<64xi32, #tpu.memory_space<smem>>) -> (i32, i32) {
    %c0_i32 = arith.constant 0 : i32
    %c0_i32_0 = arith.constant 0 : i32
    %c0_i32_1 = arith.constant 0 : i32
    return %c0_i32, %c0_i32_0 : i32, i32
  }
  func.func @transform_3(%arg0: i32, %arg1: memref<64xi32, #tpu.memory_space<smem>>) -> (i32, i32) {
    %c0_i32 = arith.constant 0 : i32
    %c0_i32_0 = arith.constant 0 : i32
    %c0_i32_1 = arith.constant 0 : i32
    return %c0_i32, %c0_i32_0 : i32, i32
  }
  func.func @transform_4(%arg0: i32, %arg1: memref<64xi32, #tpu.memory_space<smem>>) -> (i32, i32) {
    %c0_i32 = arith.constant 0 : i32
    %c0_i32_0 = arith.constant 0 : i32
    %c0_i32_1 = arith.constant 0 : i32
    return %c0_i32, %c0_i32_0 : i32, i32
  }
  func.func @transform_5(%arg0: i32, %arg1: memref<64xi32, #tpu.memory_space<smem>>) -> (i32, i32, i32) {
    %c0_i32 = arith.constant 0 : i32
    %c0_i32_0 = arith.constant 0 : i32
    %c0_i32_1 = arith.constant 0 : i32
    return %arg0, %c0_i32, %c0_i32_0 : i32, i32, i32
  }
  func.func @transform_6(%arg0: i32, %arg1: memref<64xi32, #tpu.memory_space<smem>>) -> (i32, i32, i32) {
    %c0_i32 = arith.constant 0 : i32
    %c0_i32_0 = arith.constant 0 : i32
    %c0_i32_1 = arith.constant 0 : i32
    return %arg0, %c0_i32, %c0_i32_0 : i32, i32, i32
  }
}

</mosaic_0001>

<llo_original>
// kernel: tpu_custom_call.1
$region0: #{tpu_custom_call.1}
  #allocation0 [shape = 'u32[]', space=smem, size = 0x4, offset = 0x4, fixed_abs, tag = 'smem constant byte address 0x4 - core index']
  #allocation1 [shape = 'u32[144,128]{1,0:T(1,128)}', space=vmem, size = 0x12000, scoped, tag = 'internal scratch']
  #allocation2 [shape = 'f32[8,128]{1,0:T(8,128)}', space=vmem, size = 0x1000, scoped, tag = 'scratch operand']
  #allocation3 [shape = 'f32[8,128]{1,0:T(8,128)}', space=vmem, size = 0x1000, scoped, tag = 'scratch operand']
  #allocation4 [shape = 's32[1]{0}', space=sflag, size = 0x4, scoped, tag = 'scoped memory for tpu_custom_call.1']
  #allocation5 [shape = 'u8[512]{0}', space=smem, size = 0x200, scoped, tag = 'prefetched SMEM operand 0']
  %s0 = inlined_call_operand.hbm [shape: s32[64], index: 0, kind: input, shape index: {}]
  %s1 = inlined_call_operand.hbm [shape: f32[16,1,128], index: 1, kind: input, shape index: {}]
  %s2 = inlined_call_operand.hbm [shape: f32[128,128], index: 2, kind: input, shape index: {}]
  %s3 = inlined_call_operand.hbm [shape: bf16[128,128], index: 3, kind: input, shape index: {}]
  %s4 = inlined_call_operand.vmem [shape: f32[1,128], index: 4, kind: input, shape index: {}]
  %s5 = inlined_call_operand.vmem [shape: f32[8,128], index: 5, kind: input, shape index: {}]
  %s6 = inlined_call_operand.hbm [shape: f32[8,8,128], index: 6, kind: output, shape index: {0}]
  %s7 = inlined_call_operand.hbm [shape: bf16[8,8,128], index: 7, kind: output, shape index: {1}]
  %8 = xla_tuple %s6, %s7
  %s9 = sld [smem:[#allocation0]]
  $region54: #{tpu_custom_call.1} parent=0
    _
  %s11 = ssub.s32 1, %s9
  %s12 = scalar_select 0, %s11, %s9
  %14 = dma.hbm_to_smem %s0, 16, [#allocation5], [#allocation4]
  %15 = dma.done [#allocation4], 16
  %16 = sfence
  $region1: #{tpu_custom_call.1} parent=0
    #allocation6 [shape = 'u8[8192]{0}', space=vmem, size = 0x2000, scoped, tag = 'input window, operand 1, single buffered']
    #allocation7 [shape = 's32[1]{0}', space=sflag, size = 0x4, scoped, tag = 'scoped memory for tpu_custom_call.1']
    #allocation8 [shape = 's32[1]{0}', space=sflag, size = 0x4, scoped, tag = 'scoped memory for tpu_custom_call.1']
    #allocation9 [shape = 'u8[65536]{0}', space=vmem, size = 0x10000, scoped, tag = 'input window, operand 2, single buffered']
    #allocation10 [shape = 's32[1]{0}', space=sflag, size = 0x4, scoped, tag = 'scoped memory for tpu_custom_call.1']
    #allocation11 [shape = 'u8[32768]{0}', space=vmem, size = 0x8000, scoped, tag = 'input window, operand 3, single buffered']
    #allocation12 [shape = 'u8[32768]{0}', space=vmem, size = 0x8000, scoped, tag = 'output window, operand 0, single buffered']
    #allocation13 [shape = 'u8[16384]{0}', space=vmem, size = 0x4000, scoped, tag = 'output window, operand 1, single buffered']
    #allocation14 [shape = 's32[1]{0}', space=sflag, size = 0x4, scoped, tag = 'scoped memory for tpu_custom_call.1']
    %17 = vsyncpa [#allocation7], 0
    %18 = vsyncpa [#allocation10], 0
    %19 = vsyncpa [#allocation8], 0
    %20 = vsyncpa [#allocation14], 0
    // Predicated region
    $region2: #{tpu_custom_call.1} parent=1 // pred_check
      _
    $region3: #{tpu_custom_call.1} parent=1 // pred_check_branch
      %22 = sbr.rel (0) target = $region5
    $region4: #{tpu_custom_call.1} parent=1 // pred_region
      %s24 = ssub.s32 256, 256
      %25 = vsyncadd [#allocation7], %s24
      %s26 = sshll.u32 [#allocation6], 4
      %s27 = int_to_ptr.vmem [resolvable:$true] %s26
      %32 = dma.hbm_to_vmem [thread:$0]  %s1, 256, %s27, [#allocation7], 16, 16, 1
    $region5: #{tpu_custom_call.1} parent=1 // pred_fallthru
      _
    // Predicated region
    $region6: #{tpu_custom_call.1} parent=1 // pred_check
      _
    $region7: #{tpu_custom_call.1} parent=1 // pred_check_branch
      %34 = sbr.rel (0) target = $region9
    $region8: #{tpu_custom_call.1} parent=1 // pred_region
      %s36 = ssub.s32 2048, 2048
      %37 = vsyncadd [#allocation10], %s36
      %s38 = sshll.u32 [#allocation9], 4
      %s39 = int_to_ptr.vmem [resolvable:$true] %s38
      %44 = dma.hbm_to_vmem [thread:$0]  %s2, 2048, %s39, [#allocation10], 128, 128, 8
    $region9: #{tpu_custom_call.1} parent=1 // pred_fallthru
      _
    // Predicated region
    $region10: #{tpu_custom_call.1} parent=1 // pred_check
      _
    $region11: #{tpu_custom_call.1} parent=1 // pred_check_branch
      %46 = sbr.rel (0) target = $region13
    $region12: #{tpu_custom_call.1} parent=1 // pred_region
      %s48 = ssub.s32 1024, 1024
      %49 = vsyncadd [#allocation10], %s48
      %s50 = sshll.u32 [#allocation11], 4
      %s51 = int_to_ptr.vmem [resolvable:$true] %s50
      %56 = dma.hbm_to_vmem [thread:$0]  %s3, 1024, %s51, [#allocation10], 64, 64, 4
    $region13: #{tpu_custom_call.1} parent=1 // pred_fallthru
      _
    // Predicated region
    $region14: #{tpu_custom_call.1} parent=1 // pred_check
      _
    $region15: #{tpu_custom_call.1} parent=1 // pred_check_branch
      %58 = sbr.rel (0) target = $region17
    $region16: #{tpu_custom_call.1} parent=1 // pred_region
      _
    $region17: #{tpu_custom_call.1} parent=1 // pred_fallthru
      _
    // Predicated region
    $region18: #{tpu_custom_call.1} parent=1 // pred_check
      _
    $region19: #{tpu_custom_call.1} parent=1 // pred_check_branch
      %60 = sbr.rel (0) target = $region21
    $region20: #{tpu_custom_call.1} parent=1 // pred_region
      _
    $region21: #{tpu_custom_call.1} parent=1 // pred_fallthru
      _
    // Predicated region
    $region22: #{tpu_custom_call.1} parent=1 // pred_check
      _
    $region23: #{tpu_custom_call.1} parent=1 // pred_check_branch
      %62 = sbr.rel (0) target = $region25
    $region24: #{tpu_custom_call.1} parent=1 // pred_region
      %63 = dma.done [#allocation7], 256
    $region25: #{tpu_custom_call.1} parent=1 // pred_fallthru
      _
    // Predicated region
    $region26: #{tpu_custom_call.1} parent=1 // pred_check
      _
    $region27: #{tpu_custom_call.1} parent=1 // pred_check_branch
      %65 = sbr.rel (0) target = $region29
    $region28: #{tpu_custom_call.1} parent=1 // pred_region
      %66 = dma.done [#allocation10], 2048
    $region29: #{tpu_custom_call.1} parent=1 // pred_fallthru
      _
    // Predicated region
    $region30: #{tpu_custom_call.1} parent=1 // pred_check
      _
    $region31: #{tpu_custom_call.1} parent=1 // pred_check_branch
      %68 = sbr.rel (0) target = $region33
    $region32: #{tpu_custom_call.1} parent=1 // pred_region
      %69 = dma.done [#allocation10], 1024
    $region33: #{tpu_custom_call.1} parent=1 // pred_fallthru
      _
    %p71 = scmp.eq.s32.totalorder 0, 0
    // Predicated region
    $region34: #{tpu_custom_call.1} parent=1 // pred_check
      %p72 = pneg %p71
    $region35: #{tpu_custom_call.1} parent=1 // pred_check_branch
      %74 = sbr.rel (%p72) target = $region37
    $region36: #{tpu_custom_call.1} parent=1 // pred_region
      %v75 = vld [vmem:[%s5] sm:$0xff]
      %76 = vst [vmem:[#allocation2] sm:$0xff] %v75
    $region37: #{tpu_custom_call.1} parent=1 // pred_fallthru
      _
    %v77 = vld [vmem:[#allocation2] sm:$0xff]
    %s78 = smul.u32 0, 64
    %s79 = sld [smem:[#allocation5 + %s78]]
    %s80 = scalar_lea.vmem [#allocation6], %s79
    %v81 = vld [vmem:[%s80] sm:$0x1]
    %82 = vst [vmem:[#allocation3] sm:$0x1] %v81
    %s83 = sadd.s32 %s78, 1
    %s84 = sld [smem:[#allocation5 + %s83]]
    %s85 = scalar_lea.vmem [#allocation6], %s84
    %v86 = vld [vmem:[%s85] sm:$0x1]
    %87 = vst [vmem:[#allocation3 + $0x1] sm:$0x1] %v86
    %s88 = sadd.s32 %s78, 2
    %s89 = sld [smem:[#allocation5 + %s88]]
    %s90 = scalar_lea.vmem [#allocation6], %s89
    %v91 = vld [vmem:[%s90] sm:$0x1]
    %92 = vst [vmem:[#allocation3 + $0x2] sm:$0x1] %v91
    %s93 = sadd.s32 %s78, 3
    %s94 = sld [smem:[#allocation5 + %s93]]
    %s95 = scalar_lea.vmem [#allocation6], %s94
    %v96 = vld [vmem:[%s95] sm:$0x1]
    %97 = vst [vmem:[#allocation3 + $0x3] sm:$0x1] %v96
    %s98 = sadd.s32 %s78, 4
    %s99 = sld [smem:[#allocation5 + %s98]]
    %s100 = scalar_lea.vmem [#allocation6], %s99
    %v101 = vld [vmem:[%s100] sm:$0x1]
    %102 = vst [vmem:[#allocation3 + $0x4] sm:$0x1] %v101
    %s103 = sadd.s32 %s78, 5
    %s104 = sld [smem:[#allocation5 + %s103]]
    %s105 = scalar_lea.vmem [#allocation6], %s104
    %v106 = vld [vmem:[%s105] sm:$0x1]
    %107 = vst [vmem:[#allocation3 + $0x5] sm:$0x1] %v106
    %s108 = sadd.s32 %s78, 6
    %s109 = sld [smem:[#allocation5 + %s108]]
    %s110 = scalar_lea.vmem [#allocation6], %s109
    %v111 = vld [vmem:[%s110] sm:$0x1]
    %112 = vst [vmem:[#allocation3 + $0x6] sm:$0x1] %v111
    %s113 = sadd.s32 %s78, 7
    %s114 = sld [smem:[#allocation5 + %s113]]
    %s115 = scalar_lea.vmem [#allocation6], %s114
    %v116 = vld [vmem:[%s115] sm:$0x1]
    %117 = vst [vmem:[#allocation3 + $0x7] sm:$0x1] %v116
    %v118 = vld [vmem:[#allocation3] sm:$0xff]
    %v119 = vld [vmem:[#allocation9] sm:$0xff]
    %v120 = vld [vmem:[#allocation9 + $0x8] sm:$0xff]
    %v121 = vld [vmem:[#allocation9 + $0x10] sm:$0xff]
    %v122 = vld [vmem:[#allocation9 + $0x18] sm:$0xff]
    %v123 = vld [vmem:[#allocation9 + $0x20] sm:$0xff]
    %v124 = vld [vmem:[#allocation9 + $0x28] sm:$0xff]
    %v125 = vld [vmem:[#allocation9 + $0x30] sm:$0xff]
    %v126 = vld [vmem:[#allocation9 + $0x38] sm:$0xff]
    %v127 = vld [vmem:[#allocation9 + $0x40] sm:$0xff]
    %v128 = vld [vmem:[#allocation9 + $0x48] sm:$0xff]
    %v129 = vld [vmem:[#allocation9 + $0x50] sm:$0xff]
    %v130 = vld [vmem:[#allocation9 + $0x58] sm:$0xff]
    %v131 = vld [vmem:[#allocation9 + $0x60] sm:$0xff]
    %v132 = vld [vmem:[#allocation9 + $0x68] sm:$0xff]
    %v133 = vld [vmem:[#allocation9 + $0x70] sm:$0xff]
    %v134 = vld [vmem:[#allocation9 + $0x78] sm:$0xff]
    %135 = vmatprep.subr.mxu0 0.0
    %136 = vmatpush1.msra.mxu0 %v134
    %137 = vmatprep.subr.mxu0 0.0
    %138 = vmatpush1.msra.mxu0 %v133
    %139 = vmatprep.subr.mxu0 0.0
    %140 = vmatpush1.msra.mxu0 %v132
    %141 = vmatprep.subr.mxu0 0.0
    %142 = vmatpush1.msra.mxu0 %v131
    %143 = vmatprep.subr.mxu0 0.0
    %144 = vmatpush1.msra.mxu0 %v130
    %145 = vmatprep.subr.mxu0 0.0
    %146 = vmatpush1.msra.mxu0 %v129
    %147 = vmatprep.subr.mxu0 0.0
    %148 = vmatpush1.msra.mxu0 %v128
    %149 = vmatprep.subr.mxu0 0.0
    %150 = vmatpush1.msra.mxu0 %v127
    %151 = vmatprep.subr.mxu0 0.0
    %152 = vmatpush1.msra.mxu0 %v126
    %153 = vmatprep.subr.mxu0 0.0
    %154 = vmatpush1.msra.mxu0 %v125
    %155 = vmatprep.subr.mxu0 0.0
    %156 = vmatpush1.msra.mxu0 %v124
    %157 = vmatprep.subr.mxu0 0.0
    %158 = vmatpush1.msra.mxu0 %v123
    %159 = vmatprep.subr.mxu0 0.0
    %160 = vmatpush1.msra.mxu0 %v122
    %161 = vmatprep.subr.mxu0 0.0
    %162 = vmatpush1.msra.mxu0 %v121
    %163 = vmatprep.subr.mxu0 0.0
    %164 = vmatpush1.msra.mxu0 %v120
    %165 = vmatprep.subr.mxu0 0.0
    %166 = vmatpush1.msra.mxu0 %v119
    %167 = vmatprep.subr.mxu0 0.0
    %168 = vmatpush2.msra.mxu0 0.0
    %169 = vmatprep.subr.mxu0 0.0
    %170 = vmatpush2.msra.mxu0 0.0
    %171 = vmatprep.subr.mxu0 0.0
    %172 = vmatpush2.msra.mxu0 0.0
    %173 = vmatprep.subr.mxu0 0.0
    %174 = vmatpush2.msra.mxu0 0.0
    %175 = vmatprep.subr.mxu0 0.0
    %176 = vmatpush2.msra.mxu0 0.0
    %177 = vmatprep.subr.mxu0 0.0
    %178 = vmatpush2.msra.mxu0 0.0
    %179 = vmatprep.subr.mxu0 0.0
    %180 = vmatpush2.msra.mxu0 0.0
    %181 = vmatprep.subr.mxu0 0.0
    %182 = vmatpush2.msra.mxu0 0.0
    %183 = vmatprep.subr.mxu0 0.0
    %184 = vmatpush2.msra.mxu0 0.0
    %185 = vmatprep.subr.mxu0 0.0
    %186 = vmatpush2.msra.mxu0 0.0
    %187 = vmatprep.subr.mxu0 0.0
    %188 = vmatpush2.msra.mxu0 0.0
    %189 = vmatprep.subr.mxu0 0.0
    %190 = vmatpush2.msra.mxu0 0.0
    %191 = vmatprep.subr.mxu0 0.0
    %192 = vmatpush2.msra.mxu0 0.0
    %193 = vmatprep.subr.mxu0 0.0
    %194 = vmatpush2.msra.mxu0 0.0
    %195 = vmatprep.subr.mxu0 0.0
    %196 = vmatpush2.msra.mxu0 0.0
    %197 = vmatprep.subr.mxu0 0.0
    %198 = vmatpush2.msra.mxu0 0.0
    %199 = vmatprep.mubr.f32.mxu0 0.0
    %200 = vmatmul.mubr.f32.gmra.mxu0 %v77
    %v201 = vpop.f32.mrf.mxu0
    %v202 = vadd.f32 0.0, %v201
    %v203 = vpop.f32.mrf.mxu0
    %204 = vdwg.mxu0
    %v205 = vadd.f32 %v118, %v202
    %v206 = vtanh.pop %v205
    %207 = vst [vmem:[#allocation12] sm:$0xff] %v206
    %v208 = vpack.c.bf16 %v206, %v206
    %v209 = vld [vmem:[#allocation11] sm:$0xf]
    %v210 = vld [vmem:[#allocation11 + $0x4] sm:$0xf]
    %v211 = vld [vmem:[#allocation11 + $0x8] sm:$0xf]
    %v212 = vld [vmem:[#allocation11 + $0xc] sm:$0xf]
    %v213 = vld [vmem:[#allocation11 + $0x10] sm:$0xf]
    %v214 = vld [vmem:[#allocation11 + $0x14] sm:$0xf]
    %v215 = vld [vmem:[#allocation11 + $0x18] sm:$0xf]
    %v216 = vld [vmem:[#allocation11 + $0x1c] sm:$0xf]
    %v217 = vld [vmem:[#allocation11 + $0x20] sm:$0xf]
    %v218 = vld [vmem:[#allocation11 + $0x24] sm:$0xf]
    %v219 = vld [vmem:[#allocation11 + $0x28] sm:$0xf]
    %v220 = vld [vmem:[#allocation11 + $0x2c] sm:$0xf]
    %v221 = vld [vmem:[#allocation11 + $0x30] sm:$0xf]
    %v222 = vld [vmem:[#allocation11 + $0x34] sm:$0xf]
    %v223 = vld [vmem:[#allocation11 + $0x38] sm:$0xf]
    %v224 = vld [vmem:[#allocation11 + $0x3c] sm:$0xf]
    %v225 = vld [vmem:[%s4] sm:$0x1]
    %v227 = vlaneseq
    %v228 = vshrl.u32 %v227, 7
    %v229 = vsub.s32 0, %v228
    %v230 = vrot.slane %v225, %v229
    %v248 = vunpack.c.l.b16 %v209
    %v249 = vunpack.c.l.b16 %v210
    %v250 = vunpack.c.l.b16 %v211
    %v251 = vunpack.c.l.b16 %v212
    %v252 = vunpack.c.l.b16 %v213
    %v253 = vunpack.c.l.b16 %v214
    %v254 = vunpack.c.l.b16 %v215
    %v255 = vunpack.c.l.b16 %v216
    %v256 = vunpack.c.l.b16 %v217
    %v257 = vunpack.c.l.b16 %v218
    %v258 = vunpack.c.l.b16 %v219
    %v259 = vunpack.c.l.b16 %v220
    %v260 = vunpack.c.l.b16 %v221
    %v261 = vunpack.c.l.b16 %v222
    %v262 = vunpack.c.l.b16 %v223
    %v263 = vunpack.c.l.b16 %v224
    %v264 = vpack.c.b16 %v249, %v248
    %v265 = vpack.c.b16 %v251, %v250
    %v266 = vpack.c.b16 %v253, %v252
    %v267 = vpack.c.b16 %v255, %v254
    %v268 = vpack.c.b16 %v257, %v256
    %v269 = vpack.c.b16 %v259, %v258
    %v270 = vpack.c.b16 %v261, %v260
    %v271 = vpack.c.b16 %v263, %v262
    %280 = vmatprep.subr.bf16.mxu0 0
    %281 = vmatpush1.bf16.msra.mxu0 %v271
    %282 = vmatprep.subr.bf16.mxu0 0
    %283 = vmatpush1.bf16.msra.mxu0 %v270
    %284 = vmatprep.subr.bf16.mxu0 0
    %285 = vmatpush1.bf16.msra.mxu0 %v269
    %286 = vmatprep.subr.bf16.mxu0 0
    %287 = vmatpush1.bf16.msra.mxu0 %v268
    %288 = vmatprep.subr.bf16.mxu0 0
    %289 = vmatpush1.bf16.msra.mxu0 %v267
    %290 = vmatprep.subr.bf16.mxu0 0
    %291 = vmatpush1.bf16.msra.mxu0 %v266
    %292 = vmatprep.subr.bf16.mxu0 0
    %293 = vmatpush1.bf16.msra.mxu0 %v265
    %294 = vmatprep.subr.bf16.mxu0 0
    %295 = vmatpush1.bf16.msra.mxu0 %v264
    %296 = vmatprep.subr.bf16.mxu0 0
    %297 = vmatpush2.bf16.msra.mxu0 0
    %298 = vmatprep.subr.bf16.mxu0 0
    %299 = vmatpush2.bf16.msra.mxu0 0
    %300 = vmatprep.subr.bf16.mxu0 0
    %301 = vmatpush2.bf16.msra.mxu0 0
    %302 = vmatprep.subr.bf16.mxu0 0
    %303 = vmatpush2.bf16.msra.mxu0 0
    %304 = vmatprep.subr.bf16.mxu0 0
    %305 = vmatpush2.bf16.msra.mxu0 0
    %306 = vmatprep.subr.bf16.mxu0 0
    %307 = vmatpush2.bf16.msra.mxu0 0
    %308 = vmatprep.subr.bf16.mxu0 0
    %309 = vmatpush2.bf16.msra.mxu0 0
    %310 = vmatprep.subr.bf16.mxu0 0
    %311 = vmatpush2.bf16.msra.mxu0 0
    %312 = vmatprep.mubr.bf16.mxu0 0
    %313 = vmatmul.mubr.bf16.gmra.mxu0 %v208
    %v314 = vpop.f32.mrf.mxu0
    %v315 = vadd.f32 %v230, %v314
    %v316 = vpop.f32.mrf.mxu0
    %v317 = vpop.f32.mrf.mxu0
    %v318 = vpop.f32.mrf.mxu0
    %319 = vdwg.mxu0
    %v320 = vpack.c.bf16 %v315, %v315
    %321 = vst [vmem:[#allocation13] sm:$0xf] %v320
    %s322 = smul.u32 0, 8
    %s323 = sadd.s32 %s322, 1
    %s324 = smul.u32 %s323, 8
    %s325 = sld [smem:[#allocation5 + %s324]]
    %s326 = scalar_lea.vmem [#allocation6], %s325
    %v327 = vld [vmem:[%s326] sm:$0x1]
    %328 = vst [vmem:[#allocation3] sm:$0x1] %v327
    %s329 = sadd.s32 %s324, 1
    %s330 = sld [smem:[#allocation5 + %s329]]
    %s331 = scalar_lea.vmem [#allocation6], %s330
    %v332 = vld [vmem:[%s331] sm:$0x1]
    %333 = vst [vmem:[#allocation3 + $0x1] sm:$0x1] %v332
    %s334 = sadd.s32 %s324, 2
    %s335 = sld [smem:[#allocation5 + %s334]]
    %s336 = scalar_lea.vmem [#allocation6], %s335
    %v337 = vld [vmem:[%s336] sm:$0x1]
    %338 = vst [vmem:[#allocation3 + $0x2] sm:$0x1] %v337
    %s339 = sadd.s32 %s324, 3
    %s340 = sld [smem:[#allocation5 + %s339]]
    %s341 = scalar_lea.vmem [#allocation6], %s340
    %v342 = vld [vmem:[%s341] sm:$0x1]
    %343 = vst [vmem:[#allocation3 + $0x3] sm:$0x1] %v342
    %s344 = sadd.s32 %s324, 4
    %s345 = sld [smem:[#allocation5 + %s344]]
    %s346 = scalar_lea.vmem [#allocation6], %s345
    %v347 = vld [vmem:[%s346] sm:$0x1]
    %348 = vst [vmem:[#allocation3 + $0x4] sm:$0x1] %v347
    %s349 = sadd.s32 %s324, 5
    %s350 = sld [smem:[#allocation5 + %s349]]
    %s351 = scalar_lea.vmem [#allocation6], %s350
    %v352 = vld [vmem:[%s351] sm:$0x1]
    %353 = vst [vmem:[#allocation3 + $0x5] sm:$0x1] %v352
    %s354 = sadd.s32 %s324, 6
    %s355 = sld [smem:[#allocation5 + %s354]]
    %s356 = scalar_lea.vmem [#allocation6], %s355
    %v357 = vld [vmem:[%s356] sm:$0x1]
    %358 = vst [vmem:[#allocation3 + $0x6] sm:$0x1] %v357
    %s359 = sadd.s32 %s324, 7
    %s360 = sld [smem:[#allocation5 + %s359]]
    %s361 = scalar_lea.vmem [#allocation6], %s360
    %v362 = vld [vmem:[%s361] sm:$0x1]
    %363 = vst [vmem:[#allocation3 + $0x7] sm:$0x1] %v362
    %v364 = vld [vmem:[#allocation3] sm:$0xff]
    %v365 = vld [vmem:[#allocation9] sm:$0xff]
    %v366 = vld [vmem:[#allocation9 + $0x8] sm:$0xff]
    %v367 = vld [vmem:[#allocation9 + $0x10] sm:$0xff]
    %v368 = vld [vmem:[#allocation9 + $0x18] sm:$0xff]
    %v369 = vld [vmem:[#allocation9 + $0x20] sm:$0xff]
    %v370 = vld [vmem:[#allocation9 + $0x28] sm:$0xff]
    %v371 = vld [vmem:[#allocation9 + $0x30] sm:$0xff]
    %v372 = vld [vmem:[#allocation9 + $0x38] sm:$0xff]
    %v373 = vld [vmem:[#allocation9 + $0x40] sm:$0xff]
    %v374 = vld [vmem:[#allocation9 + $0x48] sm:$0xff]
    %v375 = vld [vmem:[#allocation9 + $0x50] sm:$0xff]
    %v376 = vld [vmem:[#allocation9 + $0x58] sm:$0xff]
    %v377 = vld [vmem:[#allocation9 + $0x60] sm:$0xff]
    %v378 = vld [vmem:[#allocation9 + $0x68] sm:$0xff]
    %v379 = vld [vmem:[#allocation9 + $0x70] sm:$0xff]
    %v380 = vld [vmem:[#allocation9 + $0x78] sm:$0xff]
    %381 = vmatprep.subr.mxu0 0.0
    %382 = vmatpush1.msra.mxu0 %v380
    %383 = vmatprep.subr.mxu0 0.0
    %384 = vmatpush1.msra.mxu0 %v379
    %385 = vmatprep.subr.mxu0 0.0
    %386 = vmatpush1.msra.mxu0 %v378
    %387 = vmatprep.subr.mxu0 0.0
    %388 = vmatpush1.msra.mxu0 %v377
    %389 = vmatprep.subr.mxu0 0.0
    %390 = vmatpush1.msra.mxu0 %v376
    %391 = vmatprep.subr.mxu0 0.0
    %392 = vmatpush1.msra.mxu0 %v375
    %393 = vmatprep.subr.mxu0 0.0
    %394 = vmatpush1.msra.mxu0 %v374
    %395 = vmatprep.subr.mxu0 0.0
    %396 = vmatpush1.msra.mxu0 %v373
    %397 = vmatprep.subr.mxu0 0.0
    %398 = vmatpush1.msra.mxu0 %v372
    %399 = vmatprep.subr.mxu0 0.0
    %400 = vmatpush1.msra.mxu0 %v371
    %401 = vmatprep.subr.mxu0 0.0
    %402 = vmatpush1.msra.mxu0 %v370
    %403 = vmatprep.subr.mxu0 0.0
    %404 = vmatpush1.msra.mxu0 %v369
    %405 = vmatprep.subr.mxu0 0.0
    %406 = vmatpush1.msra.mxu0 %v368
    %407 = vmatprep.subr.mxu0 0.0
    %408 = vmatpush1.msra.mxu0 %v367
    %409 = vmatprep.subr.mxu0 0.0
    %410 = vmatpush1.msra.mxu0 %v366
    %411 = vmatprep.subr.mxu0 0.0
    %412 = vmatpush1.msra.mxu0 %v365
    %413 = vmatprep.subr.mxu0 0.0
    %414 = vmatpush2.msra.mxu0 0.0
    %415 = vmatprep.subr.mxu0 0.0
    %416 = vmatpush2.msra.mxu0 0.0
    %417 = vmatprep.subr.mxu0 0.0
    %418 = vmatpush2.msra.mxu0 0.0
    %419 = vmatprep.subr.mxu0 0.0
    %420 = vmatpush2.msra.mxu0 0.0
    %421 = vmatprep.subr.mxu0 0.0
    %422 = vmatpush2.msra.mxu0 0.0
    %423 = vmatprep.subr.mxu0 0.0
    %424 = vmatpush2.msra.mxu0 0.0
    %425 = vmatprep.subr.mxu0 0.0
    %426 = vmatpush2.msra.mxu0 0.0
    %427 = vmatprep.subr.mxu0 0.0
    %428 = vmatpush2.msra.mxu0 0.0
    %429 = vmatprep.subr.mxu0 0.0
    %430 = vmatpush2.msra.mxu0 0.0
    %431 = vmatprep.subr.mxu0 0.0
    %432 = vmatpush2.msra.mxu0 0.0
    %433 = vmatprep.subr.mxu0 0.0
    %434 = vmatpush2.msra.mxu0 0.0
    %435 = vmatprep.subr.mxu0 0.0
    %436 = vmatpush2.msra.mxu0 0.0
    %437 = vmatprep.subr.mxu0 0.0
    %438 = vmatpush2.msra.mxu0 0.0
    %439 = vmatprep.subr.mxu0 0.0
    %440 = vmatpush2.msra.mxu0 0.0
    %441 = vmatprep.subr.mxu0 0.0
    %442 = vmatpush2.msra.mxu0 0.0
    %443 = vmatprep.subr.mxu0 0.0
    %444 = vmatpush2.msra.mxu0 0.0
    %445 = vmatprep.mubr.f32.mxu0 0.0
    %446 = vmatmul.mubr.f32.gmra.mxu0 %v206
    %v447 = vpop.f32.mrf.mxu0
    %v448 = vadd.f32 0.0, %v447
    %v449 = vpop.f32.mrf.mxu0
    %450 = vdwg.mxu0
    %v451 = vadd.f32 %v364, %v448
    %v452 = vtanh.pop %v451
    %s453 = scalar_lea.vmem [#allocation12], 8
    %454 = vst [vmem:[%s453] sm:$0xff] %v452
    %v455 = vpack.c.bf16 %v452, %v452
    %v456 = vld [vmem:[#allocation11] sm:$0xf]
    %v457 = vld [vmem:[#allocation11 + $0x4] sm:$0xf]
    %v458 = vld [vmem:[#allocation11 + $0x8] sm:$0xf]
    %v459 = vld [vmem:[#allocation11 + $0xc] sm:$0xf]
    %v460 = vld [vmem:[#allocation11 + $0x10] sm:$0xf]
    %v461 = vld [vmem:[#allocation11 + $0x14] sm:$0xf]
    %v462 = vld [vmem:[#allocation11 + $0x18] sm:$0xf]
    %v463 = vld [vmem:[#allocation11 + $0x1c] sm:$0xf]
    %v464 = vld [vmem:[#allocation11 + $0x20] sm:$0xf]
    %v465 = vld [vmem:[#allocation11 + $0x24] sm:$0xf]
    %v466 = vld [vmem:[#allocation11 + $0x28] sm:$0xf]
    %v467 = vld [vmem:[#allocation11 + $0x2c] sm:$0xf]
    %v468 = vld [vmem:[#allocation11 + $0x30] sm:$0xf]
    %v469 = vld [vmem:[#allocation11 + $0x34] sm:$0xf]
    %v470 = vld [vmem:[#allocation11 + $0x38] sm:$0xf]
    %v471 = vld [vmem:[#allocation11 + $0x3c] sm:$0xf]
    %v472 = vld [vmem:[%s4] sm:$0x1]
    %v474 = vlaneseq
    %v475 = vshrl.u32 %v474, 7
    %v476 = vsub.s32 0, %v475
    %v477 = vrot.slane %v472, %v476
    %v495 = vunpack.c.l.b16 %v456
    %v496 = vunpack.c.l.b16 %v457
    %v497 = vunpack.c.l.b16 %v458
    %v498 = vunpack.c.l.b16 %v459
    %v499 = vunpack.c.l.b16 %v460
    %v500 = vunpack.c.l.b16 %v461
    %v501 = vunpack.c.l.b16 %v462
    %v502 = vunpack.c.l.b16 %v463
    %v503 = vunpack.c.l.b16 %v464
    %v504 = vunpack.c.l.b16 %v465
    %v505 = vunpack.c.l.b16 %v466
    %v506 = vunpack.c.l.b16 %v467
    %v507 = vunpack.c.l.b16 %v468
    %v508 = vunpack.c.l.b16 %v469
    %v509 = vunpack.c.l.b16 %v470
    %v510 = vunpack.c.l.b16 %v471
    %v511 = vpack.c.b16 %v496, %v495
    %v512 = vpack.c.b16 %v498, %v497
    %v513 = vpack.c.b16 %v500, %v499
    %v514 = vpack.c.b16 %v502, %v501
    %v515 = vpack.c.b16 %v504, %v503
    %v516 = vpack.c.b16 %v506, %v505
    %v517 = vpack.c.b16 %v508, %v507
    %v518 = vpack.c.b16 %v510, %v509
    %527 = vmatprep.subr.bf16.mxu0 0
    %528 = vmatpush1.bf16.msra.mxu0 %v518
    %529 = vmatprep.subr.bf16.mxu0 0
    %530 = vmatpush1.bf16.msra.mxu0 %v517
    %531 = vmatprep.subr.bf16.mxu0 0
    %532 = vmatpush1.bf16.msra.mxu0 %v516
    %533 = vmatprep.subr.bf16.mxu0 0
    %534 = vmatpush1.bf16.msra.mxu0 %v515
    %535 = vmatprep.subr.bf16.mxu0 0
    %536 = vmatpush1.bf16.msra.mxu0 %v514
    %537 = vmatprep.subr.bf16.mxu0 0
    %538 = vmatpush1.bf16.msra.mxu0 %v513
    %539 = vmatprep.subr.bf16.mxu0 0
    %540 = vmatpush1.bf16.msra.mxu0 %v512
    %541 = vmatprep.subr.bf16.mxu0 0
    %542 = vmatpush1.bf16.msra.mxu0 %v511
    %543 = vmatprep.subr.bf16.mxu0 0
    %544 = vmatpush2.bf16.msra.mxu0 0
    %545 = vmatprep.subr.bf16.mxu0 0
    %546 = vmatpush2.bf16.msra.mxu0 0
    %547 = vmatprep.subr.bf16.mxu0 0
    %548 = vmatpush2.bf16.msra.mxu0 0
    %549 = vmatprep.subr.bf16.mxu0 0
    %550 = vmatpush2.bf16.msra.mxu0 0
    %551 = vmatprep.subr.bf16.mxu0 0
    %552 = vmatpush2.bf16.msra.mxu0 0
    %553 = vmatprep.subr.bf16.mxu0 0
    %554 = vmatpush2.bf16.msra.mxu0 0
    %555 = vmatprep.subr.bf16.mxu0 0
    %556 = vmatpush2.bf16.msra.mxu0 0
    %557 = vmatprep.subr.bf16.mxu0 0
    %558 = vmatpush2.bf16.msra.mxu0 0
    %559 = vmatprep.mubr.bf16.mxu0 0
    %560 = vmatmul.mubr.bf16.gmra.mxu0 %v455
    %v561 = vpop.f32.mrf.mxu0
    %v562 = vadd.f32 %v477, %v561
    %v563 = vpop.f32.mrf.mxu0
    %v564 = vpop.f32.mrf.mxu0
    %v565 = vpop.f32.mrf.mxu0
    %566 = vdwg.mxu0
    %v567 = vpack.c.bf16 %v562, %v562
    %s568 = scalar_lea.vmem [#allocation13], 4
    %569 = vst [vmem:[%s568] sm:$0xf] %v567
    %s570 = sadd.s32 %s322, 2
    %s571 = smul.u32 %s570, 8
    %s572 = sld [smem:[#allocation5 + %s571]]
    %s573 = scalar_lea.vmem [#allocation6], %s572
    %v574 = vld [vmem:[%s573] sm:$0x1]
    %575 = vst [vmem:[#allocation3] sm:$0x1] %v574
    %s576 = sadd.s32 %s571, 1
    %s577 = sld [smem:[#allocation5 + %s576]]
    %s578 = scalar_lea.vmem [#allocation6], %s577
    %v579 = vld [vmem:[%s578] sm:$0x1]
    %580 = vst [vmem:[#allocation3 + $0x1] sm:$0x1] %v579
    %s581 = sadd.s32 %s571, 2
    %s582 = sld [smem:[#allocation5 + %s581]]
    %s583 = scalar_lea.vmem [#allocation6], %s582
    %v584 = vld [vmem:[%s583] sm:$0x1]
    %585 = vst [vmem:[#allocation3 + $0x2] sm:$0x1] %v584
    %s586 = sadd.s32 %s571, 3
    %s587 = sld [smem:[#allocation5 + %s586]]
    %s588 = scalar_lea.vmem [#allocation6], %s587
    %v589 = vld [vmem:[%s588] sm:$0x1]
    %590 = vst [vmem:[#allocation3 + $0x3] sm:$0x1] %v589
    %s591 = sadd.s32 %s571, 4
    %s592 = sld [smem:[#allocation5 + %s591]]
    %s593 = scalar_lea.vmem [#allocation6], %s592
    %v594 = vld [vmem:[%s593] sm:$0x1]
    %595 = vst [vmem:[#allocation3 + $0x4] sm:$0x1] %v594
    %s596 = sadd.s32 %s571, 5
    %s597 = sld [smem:[#allocation5 + %s596]]
    %s598 = scalar_lea.vmem [#allocation6], %s597
    %v599 = vld [vmem:[%s598] sm:$0x1]
    %600 = vst [vmem:[#allocation3 + $0x5] sm:$0x1] %v599
    %s601 = sadd.s32 %s571, 6
    %s602 = sld [smem:[#allocation5 + %s601]]
    %s603 = scalar_lea.vmem [#allocation6], %s602
    %v604 = vld [vmem:[%s603] sm:$0x1]
    %605 = vst [vmem:[#allocation3 + $0x6] sm:$0x1] %v604
    %s606 = sadd.s32 %s571, 7
    %s607 = sld [smem:[#allocation5 + %s606]]
    %s608 = scalar_lea.vmem [#allocation6], %s607
    %v609 = vld [vmem:[%s608] sm:$0x1]
    %610 = vst [vmem:[#allocation3 + $0x7] sm:$0x1] %v609
    %v611 = vld [vmem:[#allocation3] sm:$0xff]
    %v612 = vld [vmem:[#allocation9] sm:$0xff]
    %v613 = vld [vmem:[#allocation9 + $0x8] sm:$0xff]
    %v614 = vld [vmem:[#allocation9 + $0x10] sm:$0xff]
    %v615 = vld [vmem:[#allocation9 + $0x18] sm:$0xff]
    %v616 = vld [vmem:[#allocation9 + $0x20] sm:$0xff]
    %v617 = vld [vmem:[#allocation9 + $0x28] sm:$0xff]
    %v618 = vld [vmem:[#allocation9 + $0x30] sm:$0xff]
    %v619 = vld [vmem:[#allocation9 + $0x38] sm:$0xff]
    %v620 = vld [vmem:[#allocation9 + $0x40] sm:$0xff]
    %v621 = vld [vmem:[#allocation9 + $0x48] sm:$0xff]
    %v622 = vld [vmem:[#allocation9 + $0x50] sm:$0xff]
    %v623 = vld [vmem:[#allocation9 + $0x58] sm:$0xff]
    %v624 = vld [vmem:[#allocation9 + $0x60] sm:$0xff]
    %v625 = vld [vmem:[#allocation9 + $0x68] sm:$0xff]
    %v626 = vld [vmem:[#allocation9 + $0x70] sm:$0xff]
    %v627 = vld [vmem:[#allocation9 + $0x78] sm:$0xff]
    %628 = vmatprep.subr.mxu0 0.0
    %629 = vmatpush1.msra.mxu0 %v627
    %630 = vmatprep.subr.mxu0 0.0
    %631 = vmatpush1.msra.mxu0 %v626
    %632 = vmatprep.subr.mxu0 0.0
    %633 = vmatpush1.msra.mxu0 %v625
    %634 = vmatprep.subr.mxu0 0.0
    %635 = vmatpush1.msra.mxu0 %v624
    %636 = vmatprep.subr.mxu0 0.0
    %637 = vmatpush1.msra.mxu0 %v623
    %638 = vmatprep.subr.mxu0 0.0
    %639 = vmatpush1.msra.mxu0 %v622
    %640 = vmatprep.subr.mxu0 0.0
    %641 = vmatpush1.msra.mxu0 %v621
    %642 = vmatprep.subr.mxu0 0.0
    %643 = vmatpush1.msra.mxu0 %v620
    %644 = vmatprep.subr.mxu0 0.0
    %645 = vmatpush1.msra.mxu0 %v619
    %646 = vmatprep.subr.mxu0 0.0
    %647 = vmatpush1.msra.mxu0 %v618
    %648 = vmatprep.subr.mxu0 0.0
    %649 = vmatpush1.msra.mxu0 %v617
    %650 = vmatprep.subr.mxu0 0.0
    %651 = vmatpush1.msra.mxu0 %v616
    %652 = vmatprep.subr.mxu0 0.0
    %653 = vmatpush1.msra.mxu0 %v615
    %654 = vmatprep.subr.mxu0 0.0
    %655 = vmatpush1.msra.mxu0 %v614
    %656 = vmatprep.subr.mxu0 0.0
    %657 = vmatpush1.msra.mxu0 %v613
    %658 = vmatprep.subr.mxu0 0.0
    %659 = vmatpush1.msra.mxu0 %v612
    %660 = vmatprep.subr.mxu0 0.0
    %661 = vmatpush2.msra.mxu0 0.0
    %662 = vmatprep.subr.mxu0 0.0
    %663 = vmatpush2.msra.mxu0 0.0
    %664 = vmatprep.subr.mxu0 0.0
    %665 = vmatpush2.msra.mxu0 0.0
    %666 = vmatprep.subr.mxu0 0.0
    %667 = vmatpush2.msra.mxu0 0.0
    %668 = vmatprep.subr.mxu0 0.0
    %669 = vmatpush2.msra.mxu0 0.0
    %670 = vmatprep.subr.mxu0 0.0
    %671 = vmatpush2.msra.mxu0 0.0
    %672 = vmatprep.subr.mxu0 0.0
    %673 = vmatpush2.msra.mxu0 0.0
    %674 = vmatprep.subr.mxu0 0.0
    %675 = vmatpush2.msra.mxu0 0.0
    %676 = vmatprep.subr.mxu0 0.0
    %677 = vmatpush2.msra.mxu0 0.0
    %678 = vmatprep.subr.mxu0 0.0
    %679 = vmatpush2.msra.mxu0 0.0
    %680 = vmatprep.subr.mxu0 0.0
    %681 = vmatpush2.msra.mxu0 0.0
    %682 = vmatprep.subr.mxu0 0.0
    %683 = vmatpush2.msra.mxu0 0.0
    %684 = vmatprep.subr.mxu0 0.0
    %685 = vmatpush2.msra.mxu0 0.0
    %686 = vmatprep.subr.mxu0 0.0
    %687 = vmatpush2.msra.mxu0 0.0
    %688 = vmatprep.subr.mxu0 0.0
    %689 = vmatpush2.msra.mxu0 0.0
    %690 = vmatprep.subr.mxu0 0.0
    %691 = vmatpush2.msra.mxu0 0.0
    %692 = vmatprep.mubr.f32.mxu0 0.0
    %693 = vmatmul.mubr.f32.gmra.mxu0 %v452
    %v694 = vpop.f32.mrf.mxu0
    %v695 = vadd.f32 0.0, %v694
    %v696 = vpop.f32.mrf.mxu0
    %697 = vdwg.mxu0
    %v698 = vadd.f32 %v611, %v695
    %v699 = vtanh.pop %v698
    %s700 = scalar_lea.vmem [#allocation12], 16
    %701 = vst [vmem:[%s700] sm:$0xff] %v699
    %v702 = vpack.c.bf16 %v699, %v699
    %v703 = vld [vmem:[#allocation11] sm:$0xf]
    %v704 = vld [vmem:[#allocation11 + $0x4] sm:$0xf]
    %v705 = vld [vmem:[#allocation11 + $0x8] sm:$0xf]
    %v706 = vld [vmem:[#allocation11 + $0xc] sm:$0xf]
    %v707 = vld [vmem:[#allocation11 + $0x10] sm:$0xf]
    %v708 = vld [vmem:[#allocation11 + $0x14] sm:$0xf]
    %v709 = vld [vmem:[#allocation11 + $0x18] sm:$0xf]
    %v710 = vld [vmem:[#allocation11 + $0x1c] sm:$0xf]
    %v711 = vld [vmem:[#allocation11 + $0x20] sm:$0xf]
    %v712 = vld [vmem:[#allocation11 + $0x24] sm:$0xf]
    %v713 = vld [vmem:[#allocation11 + $0x28] sm:$0xf]
    %v714 = vld [vmem:[#allocation11 + $0x2c] sm:$0xf]
    %v715 = vld [vmem:[#allocation11 + $0x30] sm:$0xf]
    %v716 = vld [vmem:[#allocation11 + $0x34] sm:$0xf]
    %v717 = vld [vmem:[#allocation11 + $0x38] sm:$0xf]
    %v718 = vld [vmem:[#allocation11 + $0x3c] sm:$0xf]
    %v719 = vld [vmem:[%s4] sm:$0x1]
    %v721 = vlaneseq
    %v722 = vshrl.u32 %v721, 7
    %v723 = vsub.s32 0, %v722
    %v724 = vrot.slane %v719, %v723
    %v742 = vunpack.c.l.b16 %v703
    %v743 = vunpack.c.l.b16 %v704
    %v744 = vunpack.c.l.b16 %v705
    %v745 = vunpack.c.l.b16 %v706
    %v746 = vunpack.c.l.b16 %v707
    %v747 = vunpack.c.l.b16 %v708
    %v748 = vunpack.c.l.b16 %v709
    %v749 = vunpack.c.l.b16 %v710
    %v750 = vunpack.c.l.b16 %v711
    %v751 = vunpack.c.l.b16 %v712
    %v752 = vunpack.c.l.b16 %v713
    %v753 = vunpack.c.l.b16 %v714
    %v754 = vunpack.c.l.b16 %v715
    %v755 = vunpack.c.l.b16 %v716
    %v756 = vunpack.c.l.b16 %v717
    %v757 = vunpack.c.l.b16 %v718
    %v758 = vpack.c.b16 %v743, %v742
    %v759 = vpack.c.b16 %v745, %v744
    %v760 = vpack.c.b16 %v747, %v746
    %v761 = vpack.c.b16 %v749, %v748
    %v762 = vpack.c.b16 %v751, %v750
    %v763 = vpack.c.b16 %v753, %v752
    %v764 = vpack.c.b16 %v755, %v754
    %v765 = vpack.c.b16 %v757, %v756
    %774 = vmatprep.subr.bf16.mxu0 0
    %775 = vmatpush1.bf16.msra.mxu0 %v765
    %776 = vmatprep.subr.bf16.mxu0 0
    %777 = vmatpush1.bf16.msra.mxu0 %v764
    %778 = vmatprep.subr.bf16.mxu0 0
    %779 = vmatpush1.bf16.msra.mxu0 %v763
    %780 = vmatprep.subr.bf16.mxu0 0
    %781 = vmatpush1.bf16.msra.mxu0 %v762
    %782 = vmatprep.subr.bf16.mxu0 0
    %783 = vmatpush1.bf16.msra.mxu0 %v761
    %784 = vmatprep.subr.bf16.mxu0 0
    %785 = vmatpush1.bf16.msra.mxu0 %v760
    %786 = vmatprep.subr.bf16.mxu0 0
    %787 = vmatpush1.bf16.msra.mxu0 %v759
    %788 = vmatprep.subr.bf16.mxu0 0
    %789 = vmatpush1.bf16.msra.mxu0 %v758
    %790 = vmatprep.subr.bf16.mxu0 0
    %791 = vmatpush2.bf16.msra.mxu0 0
    %792 = vmatprep.subr.bf16.mxu0 0
    %793 = vmatpush2.bf16.msra.mxu0 0
    %794 = vmatprep.subr.bf16.mxu0 0
    %795 = vmatpush2.bf16.msra.mxu0 0
    %796 = vmatprep.subr.bf16.mxu0 0
    %797 = vmatpush2.bf16.msra.mxu0 0
    %798 = vmatprep.subr.bf16.mxu0 0
    %799 = vmatpush2.bf16.msra.mxu0 0
    %800 = vmatprep.subr.bf16.mxu0 0
    %801 = vmatpush2.bf16.msra.mxu0 0
    %802 = vmatprep.subr.bf16.mxu0 0
    %803 = vmatpush2.bf16.msra.mxu0 0
    %804 = vmatprep.subr.bf16.mxu0 0
    %805 = vmatpush2.bf16.msra.mxu0 0
    %806 = vmatprep.mubr.bf16.mxu0 0
    %807 = vmatmul.mubr.bf16.gmra.mxu0 %v702
    %v808 = vpop.f32.mrf.mxu0
    %v809 = vadd.f32 %v724, %v808
    %v810 = vpop.f32.mrf.mxu0
    %v811 = vpop.f32.mrf.mxu0
    %v812 = vpop.f32.mrf.mxu0
    %813 = vdwg.mxu0
    %v814 = vpack.c.bf16 %v809, %v809
    %s815 = scalar_lea.vmem [#allocation13], 8
    %816 = vst [vmem:[%s815] sm:$0xf] %v814
    %s817 = sadd.s32 %s322, 3
    %s818 = smul.u32 %s817, 8
    %s819 = sld [smem:[#allocation5 + %s818]]
    %s820 = scalar_lea.vmem [#allocation6], %s819
    %v821 = vld [vmem:[%s820] sm:$0x1]
    %822 = vst [vmem:[#allocation3] sm:$0x1] %v821
    %s823 = sadd.s32 %s818, 1
    %s824 = sld [smem:[#allocation5 + %s823]]
    %s825 = scalar_lea.vmem [#allocation6], %s824
    %v826 = vld [vmem:[%s825] sm:$0x1]
    %827 = vst [vmem:[#allocation3 + $0x1] sm:$0x1] %v826
    %s828 = sadd.s32 %s818, 2
    %s829 = sld [smem:[#allocation5 + %s828]]
    %s830 = scalar_lea.vmem [#allocation6], %s829
    %v831 = vld [vmem:[%s830] sm:$0x1]
    %832 = vst [vmem:[#allocation3 + $0x2] sm:$0x1] %v831
    %s833 = sadd.s32 %s818, 3
    %s834 = sld [smem:[#allocation5 + %s833]]
    %s835 = scalar_lea.vmem [#allocation6], %s834
    %v836 = vld [vmem:[%s835] sm:$0x1]
    %837 = vst [vmem:[#allocation3 + $0x3] sm:$0x1] %v836
    %s838 = sadd.s32 %s818, 4
    %s839 = sld [smem:[#allocation5 + %s838]]
    %s840 = scalar_lea.vmem [#allocation6], %s839
    %v841 = vld [vmem:[%s840] sm:$0x1]
    %842 = vst [vmem:[#allocation3 + $0x4] sm:$0x1] %v841
    %s843 = sadd.s32 %s818, 5
    %s844 = sld [smem:[#allocation5 + %s843]]
    %s845 = scalar_lea.vmem [#allocation6], %s844
    %v846 = vld [vmem:[%s845] sm:$0x1]
    %847 = vst [vmem:[#allocation3 + $0x5] sm:$0x1] %v846
    %s848 = sadd.s32 %s818, 6
    %s849 = sld [smem:[#allocation5 + %s848]]
    %s850 = scalar_lea.vmem [#allocation6], %s849
    %v851 = vld [vmem:[%s850] sm:$0x1]
    %852 = vst [vmem:[#allocation3 + $0x6] sm:$0x1] %v851
    %s853 = sadd.s32 %s818, 7
    %s854 = sld [smem:[#allocation5 + %s853]]
    %s855 = scalar_lea.vmem [#allocation6], %s854
    %v856 = vld [vmem:[%s855] sm:$0x1]
    %857 = vst [vmem:[#allocation3 + $0x7] sm:$0x1] %v856
    %v858 = vld [vmem:[#allocation3] sm:$0xff]
    %v859 = vld [vmem:[#allocation9] sm:$0xff]
    %v860 = vld [vmem:[#allocation9 + $0x8] sm:$0xff]
    %v861 = vld [vmem:[#allocation9 + $0x10] sm:$0xff]
    %v862 = vld [vmem:[#allocation9 + $0x18] sm:$0xff]
    %v863 = vld [vmem:[#allocation9 + $0x20] sm:$0xff]
    %v864 = vld [vmem:[#allocation9 + $0x28] sm:$0xff]
    %v865 = vld [vmem:[#allocation9 + $0x30] sm:$0xff]
    %v866 = vld [vmem:[#allocation9 + $0x38] sm:$0xff]
    %v867 = vld [vmem:[#allocation9 + $0x40] sm:$0xff]
    %v868 = vld [vmem:[#allocation9 + $0x48] sm:$0xff]
    %v869 = vld [vmem:[#allocation9 + $0x50] sm:$0xff]
    %v870 = vld [vmem:[#allocation9 + $0x58] sm:$0xff]
    %v871 = vld [vmem:[#allocation9 + $0x60] sm:$0xff]
    %v872 = vld [vmem:[#allocation9 + $0x68] sm:$0xff]
    %v873 = vld [vmem:[#allocation9 + $0x70] sm:$0xff]
    %v874 = vld [vmem:[#allocation9 + $0x78] sm:$0xff]
    %875 = vmatprep.subr.mxu0 0.0
    %876 = vmatpush1.msra.mxu0 %v874
    %877 = vmatprep.subr.mxu0 0.0
    %878 = vmatpush1.msra.mxu0 %v873
    %879 = vmatprep.subr.mxu0 0.0
    %880 = vmatpush1.msra.mxu0 %v872
    %881 = vmatprep.subr.mxu0 0.0
    %882 = vmatpush1.msra.mxu0 %v871
    %883 = vmatprep.subr.mxu0 0.0
    %884 = vmatpush1.msra.mxu0 %v870
    %885 = vmatprep.subr.mxu0 0.0
    %886 = vmatpush1.msra.mxu0 %v869
    %887 = vmatprep.subr.mxu0 0.0
    %888 = vmatpush1.msra.mxu0 %v868
    %889 = vmatprep.subr.mxu0 0.0
    %890 = vmatpush1.msra.mxu0 %v867
    %891 = vmatprep.subr.mxu0 0.0
    %892 = vmatpush1.msra.mxu0 %v866
    %893 = vmatprep.subr.mxu0 0.0
    %894 = vmatpush1.msra.mxu0 %v865
    %895 = vmatprep.subr.mxu0 0.0
    %896 = vmatpush1.msra.mxu0 %v864
    %897 = vmatprep.subr.mxu0 0.0
    %898 = vmatpush1.msra.mxu0 %v863
    %899 = vmatprep.subr.mxu0 0.0
    %900 = vmatpush1.msra.mxu0 %v862
    %901 = vmatprep.subr.mxu0 0.0
    %902 = vmatpush1.msra.mxu0 %v861
    %903 = vmatprep.subr.mxu0 0.0
    %904 = vmatpush1.msra.mxu0 %v860
    %905 = vmatprep.subr.mxu0 0.0
    %906 = vmatpush1.msra.mxu0 %v859
    %907 = vmatprep.subr.mxu0 0.0
    %908 = vmatpush2.msra.mxu0 0.0
    %909 = vmatprep.subr.mxu0 0.0
    %910 = vmatpush2.msra.mxu0 0.0
    %911 = vmatprep.subr.mxu0 0.0
    %912 = vmatpush2.msra.mxu0 0.0
    %913 = vmatprep.subr.mxu0 0.0
    %914 = vmatpush2.msra.mxu0 0.0
    %915 = vmatprep.subr.mxu0 0.0
    %916 = vmatpush2.msra.mxu0 0.0
    %917 = vmatprep.subr.mxu0 0.0
    %918 = vmatpush2.msra.mxu0 0.0
    %919 = vmatprep.subr.mxu0 0.0
    %920 = vmatpush2.msra.mxu0 0.0
    %921 = vmatprep.subr.mxu0 0.0
    %922 = vmatpush2.msra.mxu0 0.0
    %923 = vmatprep.subr.mxu0 0.0
    %924 = vmatpush2.msra.mxu0 0.0
    %925 = vmatprep.subr.mxu0 0.0
    %926 = vmatpush2.msra.mxu0 0.0
    %927 = vmatprep.subr.mxu0 0.0
    %928 = vmatpush2.msra.mxu0 0.0
    %929 = vmatprep.subr.mxu0 0.0
    %930 = vmatpush2.msra.mxu0 0.0
    %931 = vmatprep.subr.mxu0 0.0
    %932 = vmatpush2.msra.mxu0 0.0
    %933 = vmatprep.subr.mxu0 0.0
    %934 = vmatpush2.msra.mxu0 0.0
    %935 = vmatprep.subr.mxu0 0.0
    %936 = vmatpush2.msra.mxu0 0.0
    %937 = vmatprep.subr.mxu0 0.0
    %938 = vmatpush2.msra.mxu0 0.0
    %939 = vmatprep.mubr.f32.mxu0 0.0
    %940 = vmatmul.mubr.f32.gmra.mxu0 %v699
    %v941 = vpop.f32.mrf.mxu0
    %v942 = vadd.f32 0.0, %v941
    %v943 = vpop.f32.mrf.mxu0
    %944 = vdwg.mxu0
    %v945 = vadd.f32 %v858, %v942
    %v946 = vtanh.pop %v945
    %s947 = scalar_lea.vmem [#allocation12], 24
    %948 = vst [vmem:[%s947] sm:$0xff] %v946
    %v949 = vpack.c.bf16 %v946, %v946
    %v950 = vld [vmem:[#allocation11] sm:$0xf]
    %v951 = vld [vmem:[#allocation11 + $0x4] sm:$0xf]
    %v952 = vld [vmem:[#allocation11 + $0x8] sm:$0xf]
    %v953 = vld [vmem:[#allocation11 + $0xc] sm:$0xf]
    %v954 = vld [vmem:[#allocation11 + $0x10] sm:$0xf]
    %v955 = vld [vmem:[#allocation11 + $0x14] sm:$0xf]
    %v956 = vld [vmem:[#allocation11 + $0x18] sm:$0xf]
    %v957 = vld [vmem:[#allocation11 + $0x1c] sm:$0xf]
    %v958 = vld [vmem:[#allocation11 + $0x20] sm:$0xf]
    %v959 = vld [vmem:[#allocation11 + $0x24] sm:$0xf]
    %v960 = vld [vmem:[#allocation11 + $0x28] sm:$0xf]
    %v961 = vld [vmem:[#allocation11 + $0x2c] sm:$0xf]
    %v962 = vld [vmem:[#allocation11 + $0x30] sm:$0xf]
    %v963 = vld [vmem:[#allocation11 + $0x34] sm:$0xf]
    %v964 = vld [vmem:[#allocation11 + $0x38] sm:$0xf]
    %v965 = vld [vmem:[#allocation11 + $0x3c] sm:$0xf]
    %v966 = vld [vmem:[%s4] sm:$0x1]
    %v968 = vlaneseq
    %v969 = vshrl.u32 %v968, 7
    %v970 = vsub.s32 0, %v969
    %v971 = vrot.slane %v966, %v970
    %v989 = vunpack.c.l.b16 %v950
    %v990 = vunpack.c.l.b16 %v951
    %v991 = vunpack.c.l.b16 %v952
    %v992 = vunpack.c.l.b16 %v953
    %v993 = vunpack.c.l.b16 %v954
    %v994 = vunpack.c.l.b16 %v955
    %v995 = vunpack.c.l.b16 %v956
    %v996 = vunpack.c.l.b16 %v957
    %v997 = vunpack.c.l.b16 %v958
    %v998 = vunpack.c.l.b16 %v959
    %v999 = vunpack.c.l.b16 %v960
    %v1000 = vunpack.c.l.b16 %v961
    %v1001 = vunpack.c.l.b16 %v962
    %v1002 = vunpack.c.l.b16 %v963
    %v1003 = vunpack.c.l.b16 %v964
    %v1004 = vunpack.c.l.b16 %v965
    %v1005 = vpack.c.b16 %v990, %v989
    %v1006 = vpack.c.b16 %v992, %v991
    %v1007 = vpack.c.b16 %v994, %v993
    %v1008 = vpack.c.b16 %v996, %v995
    %v1009 = vpack.c.b16 %v998, %v997
    %v1010 = vpack.c.b16 %v1000, %v999
    %v1011 = vpack.c.b16 %v1002, %v1001
    %v1012 = vpack.c.b16 %v1004, %v1003
    %1021 = vmatprep.subr.bf16.mxu0 0
    %1022 = vmatpush1.bf16.msra.mxu0 %v1012
    %1023 = vmatprep.subr.bf16.mxu0 0
    %1024 = vmatpush1.bf16.msra.mxu0 %v1011
    %1025 = vmatprep.subr.bf16.mxu0 0
    %1026 = vmatpush1.bf16.msra.mxu0 %v1010
    %1027 = vmatprep.subr.bf16.mxu0 0
    %1028 = vmatpush1.bf16.msra.mxu0 %v1009
    %1029 = vmatprep.subr.bf16.mxu0 0
    %1030 = vmatpush1.bf16.msra.mxu0 %v1008
    %1031 = vmatprep.subr.bf16.mxu0 0
    %1032 = vmatpush1.bf16.msra.mxu0 %v1007
    %1033 = vmatprep.subr.bf16.mxu0 0
    %1034 = vmatpush1.bf16.msra.mxu0 %v1006
    %1035 = vmatprep.subr.bf16.mxu0 0
    %1036 = vmatpush1.bf16.msra.mxu0 %v1005
    %1037 = vmatprep.subr.bf16.mxu0 0
    %1038 = vmatpush2.bf16.msra.mxu0 0
    %1039 = vmatprep.subr.bf16.mxu0 0
    %1040 = vmatpush2.bf16.msra.mxu0 0
    %1041 = vmatprep.subr.bf16.mxu0 0
    %1042 = vmatpush2.bf16.msra.mxu0 0
    %1043 = vmatprep.subr.bf16.mxu0 0
    %1044 = vmatpush2.bf16.msra.mxu0 0
    %1045 = vmatprep.subr.bf16.mxu0 0
    %1046 = vmatpush2.bf16.msra.mxu0 0
    %1047 = vmatprep.subr.bf16.mxu0 0
    %1048 = vmatpush2.bf16.msra.mxu0 0
    %1049 = vmatprep.subr.bf16.mxu0 0
    %1050 = vmatpush2.bf16.msra.mxu0 0
    %1051 = vmatprep.subr.bf16.mxu0 0
    %1052 = vmatpush2.bf16.msra.mxu0 0
    %1053 = vmatprep.mubr.bf16.mxu0 0
    %1054 = vmatmul.mubr.bf16.gmra.mxu0 %v949
    %v1055 = vpop.f32.mrf.mxu0
    %v1056 = vadd.f32 %v971, %v1055
    %v1057 = vpop.f32.mrf.mxu0
    %v1058 = vpop.f32.mrf.mxu0
    %v1059 = vpop.f32.mrf.mxu0
    %1060 = vdwg.mxu0
    %v1061 = vpack.c.bf16 %v1056, %v1056
    %s1062 = scalar_lea.vmem [#allocation13], 12
    %1063 = vst [vmem:[%s1062] sm:$0xf] %v1061
    %s1064 = sadd.s32 %s322, 4
    %s1065 = smul.u32 %s1064, 8
    %s1066 = sld [smem:[#allocation5 + %s1065]]
    %s1067 = scalar_lea.vmem [#allocation6], %s1066
    %v1068 = vld [vmem:[%s1067] sm:$0x1]
    %1069 = vst [vmem:[#allocation3] sm:$0x1] %v1068
    %s1070 = sadd.s32 %s1065, 1
    %s1071 = sld [smem:[#allocation5 + %s1070]]
    %s1072 = scalar_lea.vmem [#allocation6], %s1071
    %v1073 = vld [vmem:[%s1072] sm:$0x1]
    %1074 = vst [vmem:[#allocation3 + $0x1] sm:$0x1] %v1073
    %s1075 = sadd.s32 %s1065, 2
    %s1076 = sld [smem:[#allocation5 + %s1075]]
    %s1077 = scalar_lea.vmem [#allocation6], %s1076
    %v1078 = vld [vmem:[%s1077] sm:$0x1]
    %1079 = vst [vmem:[#allocation3 + $0x2] sm:$0x1] %v1078
    %s1080 = sadd.s32 %s1065, 3
    %s1081 = sld [smem:[#allocation5 + %s1080]]
    %s1082 = scalar_lea.vmem [#allocation6], %s1081
    %v1083 = vld [vmem:[%s1082] sm:$0x1]
    %1084 = vst [vmem:[#allocation3 + $0x3] sm:$0x1] %v1083
    %s1085 = sadd.s32 %s1065, 4
    %s1086 = sld [smem:[#allocation5 + %s1085]]
    %s1087 = scalar_lea.vmem [#allocation6], %s1086
    %v1088 = vld [vmem:[%s1087] sm:$0x1]
    %1089 = vst [vmem:[#allocation3 + $0x4] sm:$0x1] %v1088
    %s1090 = sadd.s32 %s1065, 5
    %s1091 = sld [smem:[#allocation5 + %s1090]]
    %s1092 = scalar_lea.vmem [#allocation6], %s1091
    %v1093 = vld [vmem:[%s1092] sm:$0x1]
    %1094 = vst [vmem:[#allocation3 + $0x5] sm:$0x1] %v1093
    %s1095 = sadd.s32 %s1065, 6
    %s1096 = sld [smem:[#allocation5 + %s1095]]
    %s1097 = scalar_lea.vmem [#allocation6], %s1096
    %v1098 = vld [vmem:[%s1097] sm:$0x1]
    %1099 = vst [vmem:[#allocation3 + $0x6] sm:$0x1] %v1098
    %s1100 = sadd.s32 %s1065, 7
    %s1101 = sld [smem:[#allocation5 + %s1100]]
    %s1102 = scalar_lea.vmem [#allocation6], %s1101
    %v1103 = vld [vmem:[%s1102] sm:$0x1]
    %1104 = vst [vmem:[#allocation3 + $0x7] sm:$0x1] %v1103
    %v1105 = vld [vmem:[#allocation3] sm:$0xff]
    %v1106 = vld [vmem:[#allocation9] sm:$0xff]
    %v1107 = vld [vmem:[#allocation9 + $0x8] sm:$0xff]
    %v1108 = vld [vmem:[#allocation9 + $0x10] sm:$0xff]
    %v1109 = vld [vmem:[#allocation9 + $0x18] sm:$0xff]
    %v1110 = vld [vmem:[#allocation9 + $0x20] sm:$0xff]
    %v1111 = vld [vmem:[#allocation9 + $0x28] sm:$0xff]
    %v1112 = vld [vmem:[#allocation9 + $0x30] sm:$0xff]
    %v1113 = vld [vmem:[#allocation9 + $0x38] sm:$0xff]
    %v1114 = vld [vmem:[#allocation9 + $0x40] sm:$0xff]
    %v1115 = vld [vmem:[#allocation9 + $0x48] sm:$0xff]
    %v1116 = vld [vmem:[#allocation9 + $0x50] sm:$0xff]
    %v1117 = vld [vmem:[#allocation9 + $0x58] sm:$0xff]
    %v1118 = vld [vmem:[#allocation9 + $0x60] sm:$0xff]
    %v1119 = vld [vmem:[#allocation9 + $0x68] sm:$0xff]
    %v1120 = vld [vmem:[#allocation9 + $0x70] sm:$0xff]
    %v1121 = vld [vmem:[#allocation9 + $0x78] sm:$0xff]
    %1122 = vmatprep.subr.mxu0 0.0
    %1123 = vmatpush1.msra.mxu0 %v1121
    %1124 = vmatprep.subr.mxu0 0.0
    %1125 = vmatpush1.msra.mxu0 %v1120
    %1126 = vmatprep.subr.mxu0 0.0
    %1127 = vmatpush1.msra.mxu0 %v1119
    %1128 = vmatprep.subr.mxu0 0.0
    %1129 = vmatpush1.msra.mxu0 %v1118
    %1130 = vmatprep.subr.mxu0 0.0
    %1131 = vmatpush1.msra.mxu0 %v1117
    %1132 = vmatprep.subr.mxu0 0.0
    %1133 = vmatpush1.msra.mxu0 %v1116
    %1134 = vmatprep.subr.mxu0 0.0
    %1135 = vmatpush1.msra.mxu0 %v1115
    %1136 = vmatprep.subr.mxu0 0.0
    %1137 = vmatpush1.msra.mxu0 %v1114
    %1138 = vmatprep.subr.mxu0 0.0
    %1139 = vmatpush1.msra.mxu0 %v1113
    %1140 = vmatprep.subr.mxu0 0.0
    %1141 = vmatpush1.msra.mxu0 %v1112
    %1142 = vmatprep.subr.mxu0 0.0
    %1143 = vmatpush1.msra.mxu0 %v1111
    %1144 = vmatprep.subr.mxu0 0.0
    %1145 = vmatpush1.msra.mxu0 %v1110
    %1146 = vmatprep.subr.mxu0 0.0
    %1147 = vmatpush1.msra.mxu0 %v1109
    %1148 = vmatprep.subr.mxu0 0.0
    %1149 = vmatpush1.msra.mxu0 %v1108
    %1150 = vmatprep.subr.mxu0 0.0
    %1151 = vmatpush1.msra.mxu0 %v1107
    %1152 = vmatprep.subr.mxu0 0.0
    %1153 = vmatpush1.msra.mxu0 %v1106
    %1154 = vmatprep.subr.mxu0 0.0
    %1155 = vmatpush2.msra.mxu0 0.0
    %1156 = vmatprep.subr.mxu0 0.0
    %1157 = vmatpush2.msra.mxu0 0.0
    %1158 = vmatprep.subr.mxu0 0.0
    %1159 = vmatpush2.msra.mxu0 0.0
    %1160 = vmatprep.subr.mxu0 0.0
    %1161 = vmatpush2.msra.mxu0 0.0
    %1162 = vmatprep.subr.mxu0 0.0
    %1163 = vmatpush2.msra.mxu0 0.0
    %1164 = vmatprep.subr.mxu0 0.0
    %1165 = vmatpush2.msra.mxu0 0.0
    %1166 = vmatprep.subr.mxu0 0.0
    %1167 = vmatpush2.msra.mxu0 0.0
    %1168 = vmatprep.subr.mxu0 0.0
    %1169 = vmatpush2.msra.mxu0 0.0
    %1170 = vmatprep.subr.mxu0 0.0
    %1171 = vmatpush2.msra.mxu0 0.0
    %1172 = vmatprep.subr.mxu0 0.0
    %1173 = vmatpush2.msra.mxu0 0.0
    %1174 = vmatprep.subr.mxu0 0.0
    %1175 = vmatpush2.msra.mxu0 0.0
    %1176 = vmatprep.subr.mxu0 0.0
    %1177 = vmatpush2.msra.mxu0 0.0
    %1178 = vmatprep.subr.mxu0 0.0
    %1179 = vmatpush2.msra.mxu0 0.0
    %1180 = vmatprep.subr.mxu0 0.0
    %1181 = vmatpush2.msra.mxu0 0.0
    %1182 = vmatprep.subr.mxu0 0.0
    %1183 = vmatpush2.msra.mxu0 0.0
    %1184 = vmatprep.subr.mxu0 0.0
    %1185 = vmatpush2.msra.mxu0 0.0
    %1186 = vmatprep.mubr.f32.mxu0 0.0
    %1187 = vmatmul.mubr.f32.gmra.mxu0 %v946
    %v1188 = vpop.f32.mrf.mxu0
    %v1189 = vadd.f32 0.0, %v1188
    %v1190 = vpop.f32.mrf.mxu0
    %1191 = vdwg.mxu0
    %v1192 = vadd.f32 %v1105, %v1189
    %v1193 = vtanh.pop %v1192
    %s1194 = scalar_lea.vmem [#allocation12], 32
    %1195 = vst [vmem:[%s1194] sm:$0xff] %v1193
    %v1196 = vpack.c.bf16 %v1193, %v1193
    %v1197 = vld [vmem:[#allocation11] sm:$0xf]
    %v1198 = vld [vmem:[#allocation11 + $0x4] sm:$0xf]
    %v1199 = vld [vmem:[#allocation11 + $0x8] sm:$0xf]
    %v1200 = vld [vmem:[#allocation11 + $0xc] sm:$0xf]
    %v1201 = vld [vmem:[#allocation11 + $0x10] sm:$0xf]
    %v1202 = vld [vmem:[#allocation11 + $0x14] sm:$0xf]
    %v1203 = vld [vmem:[#allocation11 + $0x18] sm:$0xf]
    %v1204 = vld [vmem:[#allocation11 + $0x1c] sm:$0xf]
    %v1205 = vld [vmem:[#allocation11 + $0x20] sm:$0xf]
    %v1206 = vld [vmem:[#allocation11 + $0x24] sm:$0xf]
    %v1207 = vld [vmem:[#allocation11 + $0x28] sm:$0xf]
    %v1208 = vld [vmem:[#allocation11 + $0x2c] sm:$0xf]
    %v1209 = vld [vmem:[#allocation11 + $0x30] sm:$0xf]
    %v1210 = vld [vmem:[#allocation11 + $0x34] sm:$0xf]
    %v1211 = vld [vmem:[#allocation11 + $0x38] sm:$0xf]
    %v1212 = vld [vmem:[#allocation11 + $0x3c] sm:$0xf]
    %v1213 = vld [vmem:[%s4] sm:$0x1]
    %v1215 = vlaneseq
    %v1216 = vshrl.u32 %v1215, 7
    %v1217 = vsub.s32 0, %v1216
    %v1218 = vrot.slane %v1213, %v1217
    %v1236 = vunpack.c.l.b16 %v1197
    %v1237 = vunpack.c.l.b16 %v1198
    %v1238 = vunpack.c.l.b16 %v1199
    %v1239 = vunpack.c.l.b16 %v1200
    %v1240 = vunpack.c.l.b16 %v1201
    %v1241 = vunpack.c.l.b16 %v1202
    %v1242 = vunpack.c.l.b16 %v1203
    %v1243 = vunpack.c.l.b16 %v1204
    %v1244 = vunpack.c.l.b16 %v1205
    %v1245 = vunpack.c.l.b16 %v1206
    %v1246 = vunpack.c.l.b16 %v1207
    %v1247 = vunpack.c.l.b16 %v1208
    %v1248 = vunpack.c.l.b16 %v1209
    %v1249 = vunpack.c.l.b16 %v1210
    %v1250 = vunpack.c.l.b16 %v1211
    %v1251 = vunpack.c.l.b16 %v1212
    %v1252 = vpack.c.b16 %v1237, %v1236
    %v1253 = vpack.c.b16 %v1239, %v1238
    %v1254 = vpack.c.b16 %v1241, %v1240
    %v1255 = vpack.c.b16 %v1243, %v1242
    %v1256 = vpack.c.b16 %v1245, %v1244
    %v1257 = vpack.c.b16 %v1247, %v1246
    %v1258 = vpack.c.b16 %v1249, %v1248
    %v1259 = vpack.c.b16 %v1251, %v1250
    %1268 = vmatprep.subr.bf16.mxu0 0
    %1269 = vmatpush1.bf16.msra.mxu0 %v1259
    %1270 = vmatprep.subr.bf16.mxu0 0
    %1271 = vmatpush1.bf16.msra.mxu0 %v1258
    %1272 = vmatprep.subr.bf16.mxu0 0
    %1273 = vmatpush1.bf16.msra.mxu0 %v1257
    %1274 = vmatprep.subr.bf16.mxu0 0
    %1275 = vmatpush1.bf16.msra.mxu0 %v1256
    %1276 = vmatprep.subr.bf16.mxu0 0
    %1277 = vmatpush1.bf16.msra.mxu0 %v1255
    %1278 = vmatprep.subr.bf16.mxu0 0
    %1279 = vmatpush1.bf16.msra.mxu0 %v1254
    %1280 = vmatprep.subr.bf16.mxu0 0
    %1281 = vmatpush1.bf16.msra.mxu0 %v1253
    %1282 = vmatprep.subr.bf16.mxu0 0
    %1283 = vmatpush1.bf16.msra.mxu0 %v1252
    %1284 = vmatprep.subr.bf16.mxu0 0
    %1285 = vmatpush2.bf16.msra.mxu0 0
    %1286 = vmatprep.subr.bf16.mxu0 0
    %1287 = vmatpush2.bf16.msra.mxu0 0
    %1288 = vmatprep.subr.bf16.mxu0 0
    %1289 = vmatpush2.bf16.msra.mxu0 0
    %1290 = vmatprep.subr.bf16.mxu0 0
    %1291 = vmatpush2.bf16.msra.mxu0 0
    %1292 = vmatprep.subr.bf16.mxu0 0
    %1293 = vmatpush2.bf16.msra.mxu0 0
    %1294 = vmatprep.subr.bf16.mxu0 0
    %1295 = vmatpush2.bf16.msra.mxu0 0
    %1296 = vmatprep.subr.bf16.mxu0 0
    %1297 = vmatpush2.bf16.msra.mxu0 0
    %1298 = vmatprep.subr.bf16.mxu0 0
    %1299 = vmatpush2.bf16.msra.mxu0 0
    %1300 = vmatprep.mubr.bf16.mxu0 0
    %1301 = vmatmul.mubr.bf16.gmra.mxu0 %v1196
    %v1302 = vpop.f32.mrf.mxu0
    %v1303 = vadd.f32 %v1218, %v1302
    %v1304 = vpop.f32.mrf.mxu0
    %v1305 = vpop.f32.mrf.mxu0
    %v1306 = vpop.f32.mrf.mxu0
    %1307 = vdwg.mxu0
    %v1308 = vpack.c.bf16 %v1303, %v1303
    %s1309 = scalar_lea.vmem [#allocation13], 16
    %1310 = vst [vmem:[%s1309] sm:$0xf] %v1308
    %s1311 = sadd.s32 %s322, 5
    %s1312 = smul.u32 %s1311, 8
    %s1313 = sld [smem:[#allocation5 + %s1312]]
    %s1314 = scalar_lea.vmem [#allocation6], %s1313
    %v1315 = vld [vmem:[%s1314] sm:$0x1]
    %1316 = vst [vmem:[#allocation3] sm:$0x1] %v1315
    %s1317 = sadd.s32 %s1312, 1
    %s1318 = sld [smem:[#allocation5 + %s1317]]
    %s1319 = scalar_lea.vmem [#allocation6], %s1318
    %v1320 = vld [vmem:[%s1319] sm:$0x1]
    %1321 = vst [vmem:[#allocation3 + $0x1] sm:$0x1] %v1320
    %s1322 = sadd.s32 %s1312, 2
    %s1323 = sld [smem:[#allocation5 + %s1322]]
    %s1324 = scalar_lea.vmem [#allocation6], %s1323
    %v1325 = vld [vmem:[%s1324] sm:$0x1]
    %1326 = vst [vmem:[#allocation3 + $0x2] sm:$0x1] %v1325
    %s1327 = sadd.s32 %s1312, 3
    %s1328 = sld [smem:[#allocation5 + %s1327]]
    %s1329 = scalar_lea.vmem [#allocation6], %s1328
    %v1330 = vld [vmem:[%s1329] sm:$0x1]
    %1331 = vst [vmem:[#allocation3 + $0x3] sm:$0x1] %v1330
    %s1332 = sadd.s32 %s1312, 4
    %s1333 = sld [smem:[#allocation5 + %s1332]]
    %s1334 = scalar_lea.vmem [#allocation6], %s1333
    %v1335 = vld [vmem:[%s1334] sm:$0x1]
    %1336 = vst [vmem:[#allocation3 + $0x4] sm:$0x1] %v1335
    %s1337 = sadd.s32 %s1312, 5
    %s1338 = sld [smem:[#allocation5 + %s1337]]
    %s1339 = scalar_lea.vmem [#allocation6], %s1338
    %v1340 = vld [vmem:[%s1339] sm:$0x1]
    %1341 = vst [vmem:[#allocation3 + $0x5] sm:$0x1] %v1340
    %s1342 = sadd.s32 %s1312, 6
    %s1343 = sld [smem:[#allocation5 + %s1342]]
    %s1344 = scalar_lea.vmem [#allocation6], %s1343
    %v1345 = vld [vmem:[%s1344] sm:$0x1]
    %1346 = vst [vmem:[#allocation3 + $0x6] sm:$0x1] %v1345
    %s1347 = sadd.s32 %s1312, 7
    %s1348 = sld [smem:[#allocation5 + %s1347]]
    %s1349 = scalar_lea.vmem [#allocation6], %s1348
    %v1350 = vld [vmem:[%s1349] sm:$0x1]
    %1351 = vst [vmem:[#allocation3 + $0x7] sm:$0x1] %v1350
    %v1352 = vld [vmem:[#allocation3] sm:$0xff]
    %v1353 = vld [vmem:[#allocation9] sm:$0xff]
    %v1354 = vld [vmem:[#allocation9 + $0x8] sm:$0xff]
    %v1355 = vld [vmem:[#allocation9 + $0x10] sm:$0xff]
    %v1356 = vld [vmem:[#allocation9 + $0x18] sm:$0xff]
    %v1357 = vld [vmem:[#allocation9 + $0x20] sm:$0xff]
    %v1358 = vld [vmem:[#allocation9 + $0x28] sm:$0xff]
    %v1359 = vld [vmem:[#allocation9 + $0x30] sm:$0xff]
    %v1360 = vld [vmem:[#allocation9 + $0x38] sm:$0xff]
    %v1361 = vld [vmem:[#allocation9 + $0x40] sm:$0xff]
    %v1362 = vld [vmem:[#allocation9 + $0x48] sm:$0xff]
    %v1363 = vld [vmem:[#allocation9 + $0x50] sm:$0xff]
    %v1364 = vld [vmem:[#allocation9 + $0x58] sm:$0xff]
    %v1365 = vld [vmem:[#allocation9 + $0x60] sm:$0xff]
    %v1366 = vld [vmem:[#allocation9 + $0x68] sm:$0xff]
    %v1367 = vld [vmem:[#allocation9 + $0x70] sm:$0xff]
    %v1368 = vld [vmem:[#allocation9 + $0x78] sm:$0xff]
    %1369 = vmatprep.subr.mxu0 0.0
    %1370 = vmatpush1.msra.mxu0 %v1368
    %1371 = vmatprep.subr.mxu0 0.0
    %1372 = vmatpush1.msra.mxu0 %v1367
    %1373 = vmatprep.subr.mxu0 0.0
    %1374 = vmatpush1.msra.mxu0 %v1366
    %1375 = vmatprep.subr.mxu0 0.0
    %1376 = vmatpush1.msra.mxu0 %v1365
    %1377 = vmatprep.subr.mxu0 0.0
    %1378 = vmatpush1.msra.mxu0 %v1364
    %1379 = vmatprep.subr.mxu0 0.0
    %1380 = vmatpush1.msra.mxu0 %v1363
    %1381 = vmatprep.subr.mxu0 0.0
    %1382 = vmatpush1.msra.mxu0 %v1362
    %1383 = vmatprep.subr.mxu0 0.0
    %1384 = vmatpush1.msra.mxu0 %v1361
    %1385 = vmatprep.subr.mxu0 0.0
    %1386 = vmatpush1.msra.mxu0 %v1360
    %1387 = vmatprep.subr.mxu0 0.0
    %1388 = vmatpush1.msra.mxu0 %v1359
    %1389 = vmatprep.subr.mxu0 0.0
    %1390 = vmatpush1.msra.mxu0 %v1358
    %1391 = vmatprep.subr.mxu0 0.0
    %1392 = vmatpush1.msra.mxu0 %v1357
    %1393 = vmatprep.subr.mxu0 0.0
    %1394 = vmatpush1.msra.mxu0 %v1356
    %1395 = vmatprep.subr.mxu0 0.0
    %1396 = vmatpush1.msra.mxu0 %v1355
    %1397 = vmatprep.subr.mxu0 0.0
    %1398 = vmatpush1.msra.mxu0 %v1354
    %1399 = vmatprep.subr.mxu0 0.0
    %1400 = vmatpush1.msra.mxu0 %v1353
    %1401 = vmatprep.subr.mxu0 0.0
    %1402 = vmatpush2.msra.mxu0 0.0
    %1403 = vmatprep.subr.mxu0 0.0
    %1404 = vmatpush2.msra.mxu0 0.0
    %1405 = vmatprep.subr.mxu0 0.0
    %1406 = vmatpush2.msra.mxu0 0.0
    %1407 = vmatprep.subr.mxu0 0.0
    %1408 = vmatpush2.msra.mxu0 0.0
    %1409 = vmatprep.subr.mxu0 0.0
    %1410 = vmatpush2.msra.mxu0 0.0
    %1411 = vmatprep.subr.mxu0 0.0
    %1412 = vmatpush2.msra.mxu0 0.0
    %1413 = vmatprep.subr.mxu0 0.0
    %1414 = vmatpush2.msra.mxu0 0.0
    %1415 = vmatprep.subr.mxu0 0.0
    %1416 = vmatpush2.msra.mxu0 0.0
    %1417 = vmatprep.subr.mxu0 0.0
    %1418 = vmatpush2.msra.mxu0 0.0
    %1419 = vmatprep.subr.mxu0 0.0
    %1420 = vmatpush2.msra.mxu0 0.0
    %1421 = vmatprep.subr.mxu0 0.0
    %1422 = vmatpush2.msra.mxu0 0.0
    %1423 = vmatprep.subr.mxu0 0.0
    %1424 = vmatpush2.msra.mxu0 0.0
    %1425 = vmatprep.subr.mxu0 0.0
    %1426 = vmatpush2.msra.mxu0 0.0
    %1427 = vmatprep.subr.mxu0 0.0
    %1428 = vmatpush2.msra.mxu0 0.0
    %1429 = vmatprep.subr.mxu0 0.0
    %1430 = vmatpush2.msra.mxu0 0.0
    %1431 = vmatprep.subr.mxu0 0.0
    %1432 = vmatpush2.msra.mxu0 0.0
    %1433 = vmatprep.mubr.f32.mxu0 0.0
    %1434 = vmatmul.mubr.f32.gmra.mxu0 %v1193
    %v1435 = vpop.f32.mrf.mxu0
    %v1436 = vadd.f32 0.0, %v1435
    %v1437 = vpop.f32.mrf.mxu0
    %1438 = vdwg.mxu0
    %v1439 = vadd.f32 %v1352, %v1436
    %v1440 = vtanh.pop %v1439
    %s1441 = scalar_lea.vmem [#allocation12], 40
    %1442 = vst [vmem:[%s1441] sm:$0xff] %v1440
    %v1443 = vpack.c.bf16 %v1440, %v1440
    %v1444 = vld [vmem:[#allocation11] sm:$0xf]
    %v1445 = vld [vmem:[#allocation11 + $0x4] sm:$0xf]
    %v1446 = vld [vmem:[#allocation11 + $0x8] sm:$0xf]
    %v1447 = vld [vmem:[#allocation11 + $0xc] sm:$0xf]
    %v1448 = vld [vmem:[#allocation11 + $0x10] sm:$0xf]
    %v1449 = vld [vmem:[#allocation11 + $0x14] sm:$0xf]
    %v1450 = vld [vmem:[#allocation11 + $0x18] sm:$0xf]
    %v1451 = vld [vmem:[#allocation11 + $0x1c] sm:$0xf]
    %v1452 = vld [vmem:[#allocation11 + $0x20] sm:$0xf]
    %v1453 = vld [vmem:[#allocation11 + $0x24] sm:$0xf]
    %v1454 = vld [vmem:[#allocation11 + $0x28] sm:$0xf]
    %v1455 = vld [vmem:[#allocation11 + $0x2c] sm:$0xf]
    %v1456 = vld [vmem:[#allocation11 + $0x30] sm:$0xf]
    %v1457 = vld [vmem:[#allocation11 + $0x34] sm:$0xf]
    %v1458 = vld [vmem:[#allocation11 + $0x38] sm:$0xf]
    %v1459 = vld [vmem:[#allocation11 + $0x3c] sm:$0xf]
    %v1460 = vld [vmem:[%s4] sm:$0x1]
    %v1462 = vlaneseq
    %v1463 = vshrl.u32 %v1462, 7
    %v1464 = vsub.s32 0, %v1463
    %v1465 = vrot.slane %v1460, %v1464
    %v1483 = vunpack.c.l.b16 %v1444
    %v1484 = vunpack.c.l.b16 %v1445
    %v1485 = vunpack.c.l.b16 %v1446
    %v1486 = vunpack.c.l.b16 %v1447
    %v1487 = vunpack.c.l.b16 %v1448
    %v1488 = vunpack.c.l.b16 %v1449
    %v1489 = vunpack.c.l.b16 %v1450
    %v1490 = vunpack.c.l.b16 %v1451
    %v1491 = vunpack.c.l.b16 %v1452
    %v1492 = vunpack.c.l.b16 %v1453
    %v1493 = vunpack.c.l.b16 %v1454
    %v1494 = vunpack.c.l.b16 %v1455
    %v1495 = vunpack.c.l.b16 %v1456
    %v1496 = vunpack.c.l.b16 %v1457
    %v1497 = vunpack.c.l.b16 %v1458
    %v1498 = vunpack.c.l.b16 %v1459
    %v1499 = vpack.c.b16 %v1484, %v1483
    %v1500 = vpack.c.b16 %v1486, %v1485
    %v1501 = vpack.c.b16 %v1488, %v1487
    %v1502 = vpack.c.b16 %v1490, %v1489
    %v1503 = vpack.c.b16 %v1492, %v1491
    %v1504 = vpack.c.b16 %v1494, %v1493
    %v1505 = vpack.c.b16 %v1496, %v1495
    %v1506 = vpack.c.b16 %v1498, %v1497
    %1515 = vmatprep.subr.bf16.mxu0 0
    %1516 = vmatpush1.bf16.msra.mxu0 %v1506
    %1517 = vmatprep.subr.bf16.mxu0 0
    %1518 = vmatpush1.bf16.msra.mxu0 %v1505
    %1519 = vmatprep.subr.bf16.mxu0 0
    %1520 = vmatpush1.bf16.msra.mxu0 %v1504
    %1521 = vmatprep.subr.bf16.mxu0 0
    %1522 = vmatpush1.bf16.msra.mxu0 %v1503
    %1523 = vmatprep.subr.bf16.mxu0 0
    %1524 = vmatpush1.bf16.msra.mxu0 %v1502
    %1525 = vmatprep.subr.bf16.mxu0 0
    %1526 = vmatpush1.bf16.msra.mxu0 %v1501
    %1527 = vmatprep.subr.bf16.mxu0 0
    %1528 = vmatpush1.bf16.msra.mxu0 %v1500
    %1529 = vmatprep.subr.bf16.mxu0 0
    %1530 = vmatpush1.bf16.msra.mxu0 %v1499
    %1531 = vmatprep.subr.bf16.mxu0 0
    %1532 = vmatpush2.bf16.msra.mxu0 0
    %1533 = vmatprep.subr.bf16.mxu0 0
    %1534 = vmatpush2.bf16.msra.mxu0 0
    %1535 = vmatprep.subr.bf16.mxu0 0
    %1536 = vmatpush2.bf16.msra.mxu0 0
    %1537 = vmatprep.subr.bf16.mxu0 0
    %1538 = vmatpush2.bf16.msra.mxu0 0
    %1539 = vmatprep.subr.bf16.mxu0 0
    %1540 = vmatpush2.bf16.msra.mxu0 0
    %1541 = vmatprep.subr.bf16.mxu0 0
    %1542 = vmatpush2.bf16.msra.mxu0 0
    %1543 = vmatprep.subr.bf16.mxu0 0
    %1544 = vmatpush2.bf16.msra.mxu0 0
    %1545 = vmatprep.subr.bf16.mxu0 0
    %1546 = vmatpush2.bf16.msra.mxu0 0
    %1547 = vmatprep.mubr.bf16.mxu0 0
    %1548 = vmatmul.mubr.bf16.gmra.mxu0 %v1443
    %v1549 = vpop.f32.mrf.mxu0
    %v1550 = vadd.f32 %v1465, %v1549
    %v1551 = vpop.f32.mrf.mxu0
    %v1552 = vpop.f32.mrf.mxu0
    %v1553 = vpop.f32.mrf.mxu0
    %1554 = vdwg.mxu0
    %v1555 = vpack.c.bf16 %v1550, %v1550
    %s1556 = scalar_lea.vmem [#allocation13], 20
    %1557 = vst [vmem:[%s1556] sm:$0xf] %v1555
    %s1558 = sadd.s32 %s322, 6
    %s1559 = smul.u32 %s1558, 8
    %s1560 = sld [smem:[#allocation5 + %s1559]]
    %s1561 = scalar_lea.vmem [#allocation6], %s1560
    %v1562 = vld [vmem:[%s1561] sm:$0x1]
    %1563 = vst [vmem:[#allocation3] sm:$0x1] %v1562
    %s1564 = sadd.s32 %s1559, 1
    %s1565 = sld [smem:[#allocation5 + %s1564]]
    %s1566 = scalar_lea.vmem [#allocation6], %s1565
    %v1567 = vld [vmem:[%s1566] sm:$0x1]
    %1568 = vst [vmem:[#allocation3 + $0x1] sm:$0x1] %v1567
    %s1569 = sadd.s32 %s1559, 2
    %s1570 = sld [smem:[#allocation5 + %s1569]]
    %s1571 = scalar_lea.vmem [#allocation6], %s1570
    %v1572 = vld [vmem:[%s1571] sm:$0x1]
    %1573 = vst [vmem:[#allocation3 + $0x2] sm:$0x1] %v1572
    %s1574 = sadd.s32 %s1559, 3
    %s1575 = sld [smem:[#allocation5 + %s1574]]
    %s1576 = scalar_lea.vmem [#allocation6], %s1575
    %v1577 = vld [vmem:[%s1576] sm:$0x1]
    %1578 = vst [vmem:[#allocation3 + $0x3] sm:$0x1] %v1577
    %s1579 = sadd.s32 %s1559, 4
    %s1580 = sld [smem:[#allocation5 + %s1579]]
    %s1581 = scalar_lea.vmem [#allocation6], %s1580
    %v1582 = vld [vmem:[%s1581] sm:$0x1]
    %1583 = vst [vmem:[#allocation3 + $0x4] sm:$0x1] %v1582
    %s1584 = sadd.s32 %s1559, 5
    %s1585 = sld [smem:[#allocation5 + %s1584]]
    %s1586 = scalar_lea.vmem [#allocation6], %s1585
    %v1587 = vld [vmem:[%s1586] sm:$0x1]
    %1588 = vst [vmem:[#allocation3 + $0x5] sm:$0x1] %v1587
    %s1589 = sadd.s32 %s1559, 6
    %s1590 = sld [smem:[#allocation5 + %s1589]]
    %s1591 = scalar_lea.vmem [#allocation6], %s1590
    %v1592 = vld [vmem:[%s1591] sm:$0x1]
    %1593 = vst [vmem:[#allocation3 + $0x6] sm:$0x1] %v1592
    %s1594 = sadd.s32 %s1559, 7
    %s1595 = sld [smem:[#allocation5 + %s1594]]
    %s1596 = scalar_lea.vmem [#allocation6], %s1595
    %v1597 = vld [vmem:[%s1596] sm:$0x1]
    %1598 = vst [vmem:[#allocation3 + $0x7] sm:$0x1] %v1597
    %v1599 = vld [vmem:[#allocation3] sm:$0xff]
    %v1600 = vld [vmem:[#allocation9] sm:$0xff]
    %v1601 = vld [vmem:[#allocation9 + $0x8] sm:$0xff]
    %v1602 = vld [vmem:[#allocation9 + $0x10] sm:$0xff]
    %v1603 = vld [vmem:[#allocation9 + $0x18] sm:$0xff]
    %v1604 = vld [vmem:[#allocation9 + $0x20] sm:$0xff]
    %v1605 = vld [vmem:[#allocation9 + $0x28] sm:$0xff]
    %v1606 = vld [vmem:[#allocation9 + $0x30] sm:$0xff]
    %v1607 = vld [vmem:[#allocation9 + $0x38] sm:$0xff]
    %v1608 = vld [vmem:[#allocation9 + $0x40] sm:$0xff]
    %v1609 = vld [vmem:[#allocation9 + $0x48] sm:$0xff]
    %v1610 = vld [vmem:[#allocation9 + $0x50] sm:$0xff]
    %v1611 = vld [vmem:[#allocation9 + $0x58] sm:$0xff]
    %v1612 = vld [vmem:[#allocation9 + $0x60] sm:$0xff]
    %v1613 = vld [vmem:[#allocation9 + $0x68] sm:$0xff]
    %v1614 = vld [vmem:[#allocation9 + $0x70] sm:$0xff]
    %v1615 = vld [vmem:[#allocation9 + $0x78] sm:$0xff]
    %1616 = vmatprep.subr.mxu0 0.0
    %1617 = vmatpush1.msra.mxu0 %v1615
    %1618 = vmatprep.subr.mxu0 0.0
    %1619 = vmatpush1.msra.mxu0 %v1614
    %1620 = vmatprep.subr.mxu0 0.0
    %1621 = vmatpush1.msra.mxu0 %v1613
    %1622 = vmatprep.subr.mxu0 0.0
    %1623 = vmatpush1.msra.mxu0 %v1612
    %1624 = vmatprep.subr.mxu0 0.0
    %1625 = vmatpush1.msra.mxu0 %v1611
    %1626 = vmatprep.subr.mxu0 0.0
    %1627 = vmatpush1.msra.mxu0 %v1610
    %1628 = vmatprep.subr.mxu0 0.0
    %1629 = vmatpush1.msra.mxu0 %v1609
    %1630 = vmatprep.subr.mxu0 0.0
    %1631 = vmatpush1.msra.mxu0 %v1608
    %1632 = vmatprep.subr.mxu0 0.0
    %1633 = vmatpush1.msra.mxu0 %v1607
    %1634 = vmatprep.subr.mxu0 0.0
    %1635 = vmatpush1.msra.mxu0 %v1606
    %1636 = vmatprep.subr.mxu0 0.0
    %1637 = vmatpush1.msra.mxu0 %v1605
    %1638 = vmatprep.subr.mxu0 0.0
    %1639 = vmatpush1.msra.mxu0 %v1604
    %1640 = vmatprep.subr.mxu0 0.0
    %1641 = vmatpush1.msra.mxu0 %v1603
    %1642 = vmatprep.subr.mxu0 0.0
    %1643 = vmatpush1.msra.mxu0 %v1602
    %1644 = vmatprep.subr.mxu0 0.0
    %1645 = vmatpush1.msra.mxu0 %v1601
    %1646 = vmatprep.subr.mxu0 0.0
    %1647 = vmatpush1.msra.mxu0 %v1600
    %1648 = vmatprep.subr.mxu0 0.0
    %1649 = vmatpush2.msra.mxu0 0.0
    %1650 = vmatprep.subr.mxu0 0.0
    %1651 = vmatpush2.msra.mxu0 0.0
    %1652 = vmatprep.subr.mxu0 0.0
    %1653 = vmatpush2.msra.mxu0 0.0
    %1654 = vmatprep.subr.mxu0 0.0
    %1655 = vmatpush2.msra.mxu0 0.0
    %1656 = vmatprep.subr.mxu0 0.0
    %1657 = vmatpush2.msra.mxu0 0.0
    %1658 = vmatprep.subr.mxu0 0.0
    %1659 = vmatpush2.msra.mxu0 0.0
    %1660 = vmatprep.subr.mxu0 0.0
    %1661 = vmatpush2.msra.mxu0 0.0
    %1662 = vmatprep.subr.mxu0 0.0
    %1663 = vmatpush2.msra.mxu0 0.0
    %1664 = vmatprep.subr.mxu0 0.0
    %1665 = vmatpush2.msra.mxu0 0.0
    %1666 = vmatprep.subr.mxu0 0.0
    %1667 = vmatpush2.msra.mxu0 0.0
    %1668 = vmatprep.subr.mxu0 0.0
    %1669 = vmatpush2.msra.mxu0 0.0
    %1670 = vmatprep.subr.mxu0 0.0
    %1671 = vmatpush2.msra.mxu0 0.0
    %1672 = vmatprep.subr.mxu0 0.0
    %1673 = vmatpush2.msra.mxu0 0.0
    %1674 = vmatprep.subr.mxu0 0.0
    %1675 = vmatpush2.msra.mxu0 0.0
    %1676 = vmatprep.subr.mxu0 0.0
    %1677 = vmatpush2.msra.mxu0 0.0
    %1678 = vmatprep.subr.mxu0 0.0
    %1679 = vmatpush2.msra.mxu0 0.0
    %1680 = vmatprep.mubr.f32.mxu0 0.0
    %1681 = vmatmul.mubr.f32.gmra.mxu0 %v1440
    %v1682 = vpop.f32.mrf.mxu0
    %v1683 = vadd.f32 0.0, %v1682
    %v1684 = vpop.f32.mrf.mxu0
    %1685 = vdwg.mxu0
    %v1686 = vadd.f32 %v1599, %v1683
    %v1687 = vtanh.pop %v1686
    %s1688 = scalar_lea.vmem [#allocation12], 48
    %1689 = vst [vmem:[%s1688] sm:$0xff] %v1687
    %v1690 = vpack.c.bf16 %v1687, %v1687
    %v1691 = vld [vmem:[#allocation11] sm:$0xf]
    %v1692 = vld [vmem:[#allocation11 + $0x4] sm:$0xf]
    %v1693 = vld [vmem:[#allocation11 + $0x8] sm:$0xf]
    %v1694 = vld [vmem:[#allocation11 + $0xc] sm:$0xf]
    %v1695 = vld [vmem:[#allocation11 + $0x10] sm:$0xf]
    %v1696 = vld [vmem:[#allocation11 + $0x14] sm:$0xf]
    %v1697 = vld [vmem:[#allocation11 + $0x18] sm:$0xf]
    %v1698 = vld [vmem:[#allocation11 + $0x1c] sm:$0xf]
    %v1699 = vld [vmem:[#allocation11 + $0x20] sm:$0xf]
    %v1700 = vld [vmem:[#allocation11 + $0x24] sm:$0xf]
    %v1701 = vld [vmem:[#allocation11 + $0x28] sm:$0xf]
    %v1702 = vld [vmem:[#allocation11 + $0x2c] sm:$0xf]
    %v1703 = vld [vmem:[#allocation11 + $0x30] sm:$0xf]
    %v1704 = vld [vmem:[#allocation11 + $0x34] sm:$0xf]
    %v1705 = vld [vmem:[#allocation11 + $0x38] sm:$0xf]
    %v1706 = vld [vmem:[#allocation11 + $0x3c] sm:$0xf]
    %v1707 = vld [vmem:[%s4] sm:$0x1]
    %v1709 = vlaneseq
    %v1710 = vshrl.u32 %v1709, 7
    %v1711 = vsub.s32 0, %v1710
    %v1712 = vrot.slane %v1707, %v1711
    %v1730 = vunpack.c.l.b16 %v1691
    %v1731 = vunpack.c.l.b16 %v1692
    %v1732 = vunpack.c.l.b16 %v1693
    %v1733 = vunpack.c.l.b16 %v1694
    %v1734 = vunpack.c.l.b16 %v1695
    %v1735 = vunpack.c.l.b16 %v1696
    %v1736 = vunpack.c.l.b16 %v1697
    %v1737 = vunpack.c.l.b16 %v1698
    %v1738 = vunpack.c.l.b16 %v1699
    %v1739 = vunpack.c.l.b16 %v1700
    %v1740 = vunpack.c.l.b16 %v1701
    %v1741 = vunpack.c.l.b16 %v1702
    %v1742 = vunpack.c.l.b16 %v1703
    %v1743 = vunpack.c.l.b16 %v1704
    %v1744 = vunpack.c.l.b16 %v1705
    %v1745 = vunpack.c.l.b16 %v1706
    %v1746 = vpack.c.b16 %v1731, %v1730
    %v1747 = vpack.c.b16 %v1733, %v1732
    %v1748 = vpack.c.b16 %v1735, %v1734
    %v1749 = vpack.c.b16 %v1737, %v1736
    %v1750 = vpack.c.b16 %v1739, %v1738
    %v1751 = vpack.c.b16 %v1741, %v1740
    %v1752 = vpack.c.b16 %v1743, %v1742
    %v1753 = vpack.c.b16 %v1745, %v1744
    %1762 = vmatprep.subr.bf16.mxu0 0
    %1763 = vmatpush1.bf16.msra.mxu0 %v1753
    %1764 = vmatprep.subr.bf16.mxu0 0
    %1765 = vmatpush1.bf16.msra.mxu0 %v1752
    %1766 = vmatprep.subr.bf16.mxu0 0
    %1767 = vmatpush1.bf16.msra.mxu0 %v1751
    %1768 = vmatprep.subr.bf16.mxu0 0
    %1769 = vmatpush1.bf16.msra.mxu0 %v1750
    %1770 = vmatprep.subr.bf16.mxu0 0
    %1771 = vmatpush1.bf16.msra.mxu0 %v1749
    %1772 = vmatprep.subr.bf16.mxu0 0
    %1773 = vmatpush1.bf16.msra.mxu0 %v1748
    %1774 = vmatprep.subr.bf16.mxu0 0
    %1775 = vmatpush1.bf16.msra.mxu0 %v1747
    %1776 = vmatprep.subr.bf16.mxu0 0
    %1777 = vmatpush1.bf16.msra.mxu0 %v1746
    %1778 = vmatprep.subr.bf16.mxu0 0
    %1779 = vmatpush2.bf16.msra.mxu0 0
    %1780 = vmatprep.subr.bf16.mxu0 0
    %1781 = vmatpush2.bf16.msra.mxu0 0
    %1782 = vmatprep.subr.bf16.mxu0 0
    %1783 = vmatpush2.bf16.msra.mxu0 0
    %1784 = vmatprep.subr.bf16.mxu0 0
    %1785 = vmatpush2.bf16.msra.mxu0 0
    %1786 = vmatprep.subr.bf16.mxu0 0
    %1787 = vmatpush2.bf16.msra.mxu0 0
    %1788 = vmatprep.subr.bf16.mxu0 0
    %1789 = vmatpush2.bf16.msra.mxu0 0
    %1790 = vmatprep.subr.bf16.mxu0 0
    %1791 = vmatpush2.bf16.msra.mxu0 0
    %1792 = vmatprep.subr.bf16.mxu0 0
    %1793 = vmatpush2.bf16.msra.mxu0 0
    %1794 = vmatprep.mubr.bf16.mxu0 0
    %1795 = vmatmul.mubr.bf16.gmra.mxu0 %v1690
    %v1796 = vpop.f32.mrf.mxu0
    %v1797 = vadd.f32 %v1712, %v1796
    %v1798 = vpop.f32.mrf.mxu0
    %v1799 = vpop.f32.mrf.mxu0
    %v1800 = vpop.f32.mrf.mxu0
    %1801 = vdwg.mxu0
    %v1802 = vpack.c.bf16 %v1797, %v1797
    %s1803 = scalar_lea.vmem [#allocation13], 24
    %1804 = vst [vmem:[%s1803] sm:$0xf] %v1802
    %s1805 = sadd.s32 %s322, 7
    %s1806 = smul.u32 %s1805, 8
    %s1807 = sld [smem:[#allocation5 + %s1806]]
    %s1808 = scalar_lea.vmem [#allocation6], %s1807
    %v1809 = vld [vmem:[%s1808] sm:$0x1]
    %1810 = vst [vmem:[#allocation3] sm:$0x1] %v1809
    %s1811 = sadd.s32 %s1806, 1
    %s1812 = sld [smem:[#allocation5 + %s1811]]
    %s1813 = scalar_lea.vmem [#allocation6], %s1812
    %v1814 = vld [vmem:[%s1813] sm:$0x1]
    %1815 = vst [vmem:[#allocation3 + $0x1] sm:$0x1] %v1814
    %s1816 = sadd.s32 %s1806, 2
    %s1817 = sld [smem:[#allocation5 + %s1816]]
    %s1818 = scalar_lea.vmem [#allocation6], %s1817
    %v1819 = vld [vmem:[%s1818] sm:$0x1]
    %1820 = vst [vmem:[#allocation3 + $0x2] sm:$0x1] %v1819
    %s1821 = sadd.s32 %s1806, 3
    %s1822 = sld [smem:[#allocation5 + %s1821]]
    %s1823 = scalar_lea.vmem [#allocation6], %s1822
    %v1824 = vld [vmem:[%s1823] sm:$0x1]
    %1825 = vst [vmem:[#allocation3 + $0x3] sm:$0x1] %v1824
    %s1826 = sadd.s32 %s1806, 4
    %s1827 = sld [smem:[#allocation5 + %s1826]]
    %s1828 = scalar_lea.vmem [#allocation6], %s1827
    %v1829 = vld [vmem:[%s1828] sm:$0x1]
    %1830 = vst [vmem:[#allocation3 + $0x4] sm:$0x1] %v1829
    %s1831 = sadd.s32 %s1806, 5
    %s1832 = sld [smem:[#allocation5 + %s1831]]
    %s1833 = scalar_lea.vmem [#allocation6], %s1832
    %v1834 = vld [vmem:[%s1833] sm:$0x1]
    %1835 = vst [vmem:[#allocation3 + $0x5] sm:$0x1] %v1834
    %s1836 = sadd.s32 %s1806, 6
    %s1837 = sld [smem:[#allocation5 + %s1836]]
    %s1838 = scalar_lea.vmem [#allocation6], %s1837
    %v1839 = vld [vmem:[%s1838] sm:$0x1]
    %1840 = vst [vmem:[#allocation3 + $0x6] sm:$0x1] %v1839
    %s1841 = sadd.s32 %s1806, 7
    %s1842 = sld [smem:[#allocation5 + %s1841]]
    %s1843 = scalar_lea.vmem [#allocation6], %s1842
    %v1844 = vld [vmem:[%s1843] sm:$0x1]
    %1845 = vst [vmem:[#allocation3 + $0x7] sm:$0x1] %v1844
    %v1846 = vld [vmem:[#allocation3] sm:$0xff]
    %v1847 = vld [vmem:[#allocation9] sm:$0xff]
    %v1848 = vld [vmem:[#allocation9 + $0x8] sm:$0xff]
    %v1849 = vld [vmem:[#allocation9 + $0x10] sm:$0xff]
    %v1850 = vld [vmem:[#allocation9 + $0x18] sm:$0xff]
    %v1851 = vld [vmem:[#allocation9 + $0x20] sm:$0xff]
    %v1852 = vld [vmem:[#allocation9 + $0x28] sm:$0xff]
    %v1853 = vld [vmem:[#allocation9 + $0x30] sm:$0xff]
    %v1854 = vld [vmem:[#allocation9 + $0x38] sm:$0xff]
    %v1855 = vld [vmem:[#allocation9 + $0x40] sm:$0xff]
    %v1856 = vld [vmem:[#allocation9 + $0x48] sm:$0xff]
    %v1857 = vld [vmem:[#allocation9 + $0x50] sm:$0xff]
    %v1858 = vld [vmem:[#allocation9 + $0x58] sm:$0xff]
    %v1859 = vld [vmem:[#allocation9 + $0x60] sm:$0xff]
    %v1860 = vld [vmem:[#allocation9 + $0x68] sm:$0xff]
    %v1861 = vld [vmem:[#allocation9 + $0x70] sm:$0xff]
    %v1862 = vld [vmem:[#allocation9 + $0x78] sm:$0xff]
    %1863 = vmatprep.subr.mxu0 0.0
    %1864 = vmatpush1.msra.mxu0 %v1862
    %1865 = vmatprep.subr.mxu0 0.0
    %1866 = vmatpush1.msra.mxu0 %v1861
    %1867 = vmatprep.subr.mxu0 0.0
    %1868 = vmatpush1.msra.mxu0 %v1860
    %1869 = vmatprep.subr.mxu0 0.0
    %1870 = vmatpush1.msra.mxu0 %v1859
    %1871 = vmatprep.subr.mxu0 0.0
    %1872 = vmatpush1.msra.mxu0 %v1858
    %1873 = vmatprep.subr.mxu0 0.0
    %1874 = vmatpush1.msra.mxu0 %v1857
    %1875 = vmatprep.subr.mxu0 0.0
    %1876 = vmatpush1.msra.mxu0 %v1856
    %1877 = vmatprep.subr.mxu0 0.0
    %1878 = vmatpush1.msra.mxu0 %v1855
    %1879 = vmatprep.subr.mxu0 0.0
    %1880 = vmatpush1.msra.mxu0 %v1854
    %1881 = vmatprep.subr.mxu0 0.0
    %1882 = vmatpush1.msra.mxu0 %v1853
    %1883 = vmatprep.subr.mxu0 0.0
    %1884 = vmatpush1.msra.mxu0 %v1852
    %1885 = vmatprep.subr.mxu0 0.0
    %1886 = vmatpush1.msra.mxu0 %v1851
    %1887 = vmatprep.subr.mxu0 0.0
    %1888 = vmatpush1.msra.mxu0 %v1850
    %1889 = vmatprep.subr.mxu0 0.0
    %1890 = vmatpush1.msra.mxu0 %v1849
    %1891 = vmatprep.subr.mxu0 0.0
    %1892 = vmatpush1.msra.mxu0 %v1848
    %1893 = vmatprep.subr.mxu0 0.0
    %1894 = vmatpush1.msra.mxu0 %v1847
    %1895 = vmatprep.subr.mxu0 0.0
    %1896 = vmatpush2.msra.mxu0 0.0
    %1897 = vmatprep.subr.mxu0 0.0
    %1898 = vmatpush2.msra.mxu0 0.0
    %1899 = vmatprep.subr.mxu0 0.0
    %1900 = vmatpush2.msra.mxu0 0.0
    %1901 = vmatprep.subr.mxu0 0.0
    %1902 = vmatpush2.msra.mxu0 0.0
    %1903 = vmatprep.subr.mxu0 0.0
    %1904 = vmatpush2.msra.mxu0 0.0
    %1905 = vmatprep.subr.mxu0 0.0
    %1906 = vmatpush2.msra.mxu0 0.0
    %1907 = vmatprep.subr.mxu0 0.0
    %1908 = vmatpush2.msra.mxu0 0.0
    %1909 = vmatprep.subr.mxu0 0.0
    %1910 = vmatpush2.msra.mxu0 0.0
    %1911 = vmatprep.subr.mxu0 0.0
    %1912 = vmatpush2.msra.mxu0 0.0
    %1913 = vmatprep.subr.mxu0 0.0
    %1914 = vmatpush2.msra.mxu0 0.0
    %1915 = vmatprep.subr.mxu0 0.0
    %1916 = vmatpush2.msra.mxu0 0.0
    %1917 = vmatprep.subr.mxu0 0.0
    %1918 = vmatpush2.msra.mxu0 0.0
    %1919 = vmatprep.subr.mxu0 0.0
    %1920 = vmatpush2.msra.mxu0 0.0
    %1921 = vmatprep.subr.mxu0 0.0
    %1922 = vmatpush2.msra.mxu0 0.0
    %1923 = vmatprep.subr.mxu0 0.0
    %1924 = vmatpush2.msra.mxu0 0.0
    %1925 = vmatprep.subr.mxu0 0.0
    %1926 = vmatpush2.msra.mxu0 0.0
    %1927 = vmatprep.mubr.f32.mxu0 0.0
    %1928 = vmatmul.mubr.f32.gmra.mxu0 %v1687
    %v1929 = vpop.f32.mrf.mxu0
    %v1930 = vadd.f32 0.0, %v1929
    %v1931 = vpop.f32.mrf.mxu0
    %1932 = vdwg.mxu0
    %v1933 = vadd.f32 %v1846, %v1930
    %v1934 = vtanh.pop %v1933
    %s1935 = scalar_lea.vmem [#allocation12], 56
    %1936 = vst [vmem:[%s1935] sm:$0xff] %v1934
    %v1937 = vpack.c.bf16 %v1934, %v1934
    %v1938 = vld [vmem:[#allocation11] sm:$0xf]
    %v1939 = vld [vmem:[#allocation11 + $0x4] sm:$0xf]
    %v1940 = vld [vmem:[#allocation11 + $0x8] sm:$0xf]
    %v1941 = vld [vmem:[#allocation11 + $0xc] sm:$0xf]
    %v1942 = vld [vmem:[#allocation11 + $0x10] sm:$0xf]
    %v1943 = vld [vmem:[#allocation11 + $0x14] sm:$0xf]
    %v1944 = vld [vmem:[#allocation11 + $0x18] sm:$0xf]
    %v1945 = vld [vmem:[#allocation11 + $0x1c] sm:$0xf]
    %v1946 = vld [vmem:[#allocation11 + $0x20] sm:$0xf]
    %v1947 = vld [vmem:[#allocation11 + $0x24] sm:$0xf]
    %v1948 = vld [vmem:[#allocation11 + $0x28] sm:$0xf]
    %v1949 = vld [vmem:[#allocation11 + $0x2c] sm:$0xf]
    %v1950 = vld [vmem:[#allocation11 + $0x30] sm:$0xf]
    %v1951 = vld [vmem:[#allocation11 + $0x34] sm:$0xf]
    %v1952 = vld [vmem:[#allocation11 + $0x38] sm:$0xf]
    %v1953 = vld [vmem:[#allocation11 + $0x3c] sm:$0xf]
    %v1954 = vld [vmem:[%s4] sm:$0x1]
    %v1956 = vlaneseq
    %v1957 = vshrl.u32 %v1956, 7
    %v1958 = vsub.s32 0, %v1957
    %v1959 = vrot.slane %v1954, %v1958
    %v1977 = vunpack.c.l.b16 %v1938
    %v1978 = vunpack.c.l.b16 %v1939
    %v1979 = vunpack.c.l.b16 %v1940
    %v1980 = vunpack.c.l.b16 %v1941
    %v1981 = vunpack.c.l.b16 %v1942
    %v1982 = vunpack.c.l.b16 %v1943
    %v1983 = vunpack.c.l.b16 %v1944
    %v1984 = vunpack.c.l.b16 %v1945
    %v1985 = vunpack.c.l.b16 %v1946
    %v1986 = vunpack.c.l.b16 %v1947
    %v1987 = vunpack.c.l.b16 %v1948
    %v1988 = vunpack.c.l.b16 %v1949
    %v1989 = vunpack.c.l.b16 %v1950
    %v1990 = vunpack.c.l.b16 %v1951
    %v1991 = vunpack.c.l.b16 %v1952
    %v1992 = vunpack.c.l.b16 %v1953
    %v1993 = vpack.c.b16 %v1978, %v1977
    %v1994 = vpack.c.b16 %v1980, %v1979
    %v1995 = vpack.c.b16 %v1982, %v1981
    %v1996 = vpack.c.b16 %v1984, %v1983
    %v1997 = vpack.c.b16 %v1986, %v1985
    %v1998 = vpack.c.b16 %v1988, %v1987
    %v1999 = vpack.c.b16 %v1990, %v1989
    %v2000 = vpack.c.b16 %v1992, %v1991
    %2009 = vmatprep.subr.bf16.mxu0 0
    %2010 = vmatpush1.bf16.msra.mxu0 %v2000
    %2011 = vmatprep.subr.bf16.mxu0 0
    %2012 = vmatpush1.bf16.msra.mxu0 %v1999
    %2013 = vmatprep.subr.bf16.mxu0 0
    %2014 = vmatpush1.bf16.msra.mxu0 %v1998
    %2015 = vmatprep.subr.bf16.mxu0 0
    %2016 = vmatpush1.bf16.msra.mxu0 %v1997
    %2017 = vmatprep.subr.bf16.mxu0 0
    %2018 = vmatpush1.bf16.msra.mxu0 %v1996
    %2019 = vmatprep.subr.bf16.mxu0 0
    %2020 = vmatpush1.bf16.msra.mxu0 %v1995
    %2021 = vmatprep.subr.bf16.mxu0 0
    %2022 = vmatpush1.bf16.msra.mxu0 %v1994
    %2023 = vmatprep.subr.bf16.mxu0 0
    %2024 = vmatpush1.bf16.msra.mxu0 %v1993
    %2025 = vmatprep.subr.bf16.mxu0 0
    %2026 = vmatpush2.bf16.msra.mxu0 0
    %2027 = vmatprep.subr.bf16.mxu0 0
    %2028 = vmatpush2.bf16.msra.mxu0 0
    %2029 = vmatprep.subr.bf16.mxu0 0
    %2030 = vmatpush2.bf16.msra.mxu0 0
    %2031 = vmatprep.subr.bf16.mxu0 0
    %2032 = vmatpush2.bf16.msra.mxu0 0
    %2033 = vmatprep.subr.bf16.mxu0 0
    %2034 = vmatpush2.bf16.msra.mxu0 0
    %2035 = vmatprep.subr.bf16.mxu0 0
    %2036 = vmatpush2.bf16.msra.mxu0 0
    %2037 = vmatprep.subr.bf16.mxu0 0
    %2038 = vmatpush2.bf16.msra.mxu0 0
    %2039 = vmatprep.subr.bf16.mxu0 0
    %2040 = vmatpush2.bf16.msra.mxu0 0
    %2041 = vmatprep.mubr.bf16.mxu0 0
    %2042 = vmatmul.mubr.bf16.gmra.mxu0 %v1937
    %v2043 = vpop.f32.mrf.mxu0
    %v2044 = vadd.f32 %v1959, %v2043
    %v2045 = vpop.f32.mrf.mxu0
    %v2046 = vpop.f32.mrf.mxu0
    %v2047 = vpop.f32.mrf.mxu0
    %2048 = vdwg.mxu0
    %v2049 = vpack.c.bf16 %v2044, %v2044
    %s2050 = scalar_lea.vmem [#allocation13], 28
    %2051 = vst [vmem:[%s2050] sm:$0xf] %v2049
    %2052 = vst [vmem:[#allocation2] sm:$0xff] %v1934
    // Predicated region
    $region38: #{tpu_custom_call.1} parent=1 // pred_check
      _
    $region39: #{tpu_custom_call.1} parent=1 // pred_check_branch
      %2054 = sbr.rel (0) target = $region41
    $region40: #{tpu_custom_call.1} parent=1 // pred_region
      %s2056 = ssub.s32 1024, 1024
      %2057 = vsyncadd [#allocation8], %s2056
      %s2058 = sshll.u32 [#allocation12], 4
      %s2059 = int_to_ptr.vmem [resolvable:$true] %s2058
      %2064 = dma.vmem_to_hbm [thread:$0]  %s2059, 1024, %s6, [#allocation8], 128, 128, 8
    $region41: #{tpu_custom_call.1} parent=1 // pred_fallthru
      _
    // Predicated region
    $region42: #{tpu_custom_call.1} parent=1 // pred_check
      _
    $region43: #{tpu_custom_call.1} parent=1 // pred_check_branch
      %2066 = sbr.rel (0) target = $region45
    $region44: #{tpu_custom_call.1} parent=1 // pred_region
      %s2068 = ssub.s32 512, 512
      %2069 = vsyncadd [#allocation14], %s2068
      %s2070 = sshll.u32 [#allocation13], 4
      %s2071 = int_to_ptr.vmem [resolvable:$true] %s2070
      %2076 = dma.vmem_to_hbm [thread:$0]  %s2071, 512, %s7, [#allocation14], 64, 64, 4
    $region45: #{tpu_custom_call.1} parent=1 // pred_fallthru
      _
    // Predicated region
    $region46: #{tpu_custom_call.1} parent=1 // pred_check
      _
    $region47: #{tpu_custom_call.1} parent=1 // pred_check_branch
      %2078 = sbr.rel (0) target = $region49
    $region48: #{tpu_custom_call.1} parent=1 // pred_region
      %2079 = dma.done [#allocation8], 1024
    $region49: #{tpu_custom_call.1} parent=1 // pred_fallthru
      _
    // Predicated region
    $region50: #{tpu_custom_call.1} parent=1 // pred_check
      _
    $region51: #{tpu_custom_call.1} parent=1 // pred_check_branch
      %2081 = sbr.rel (0) target = $region53
    $region52: #{tpu_custom_call.1} parent=1 // pred_region
      %2082 = dma.done [#allocation14], 512
    $region53: #{tpu_custom_call.1} parent=1 // pred_fallthru
      _
    %2083 = vsyncpa [#allocation7], 1
    %2084 = vsyncpa [#allocation10], 1
    %2085 = vsyncpa [#allocation8], 1
    %2086 = vsyncpa [#allocation14], 1

</llo_original>
